<compile_context>
chip_gen: v7x
topology: tpu7x:2x2x1
jax: 0.10.0
libtpu: 0.0.40
codegen_flags: <defaults>
</compile_context>

<pallas_src>
import functools
import numpy as np

import jax
import jax.numpy as jnp
from jax import lax
from jax.experimental import pallas as pl
from jax.experimental.pallas import tpu as pltpu


def _layernorm(x, gamma, beta, eps=1e-5):
    # matches torch LayerNorm in the module: biased var, sqrt(var + eps)
    mean = jnp.mean(x, axis=-1, keepdims=True)
    var = jnp.mean((x - mean) ** 2, axis=-1, keepdims=True)
    inv_std = lax.rsqrt(var + eps)
    return gamma * ((x - mean) * inv_std) + beta


def encoder_layer_kernel(
        x_tile_ref, x_full_ref,
        wq_ref, bq_ref, wkv_ref, bkv_ref, wo_ref, bo_ref,
        ln1_g_ref, ln1_b_ref,
        w1_ref, b1_ref, w2_ref, b2_ref,
        ln2_g_ref, ln2_b_ref,
        o_ref,
        kv_ref, vals_ref,
        *, num_heads, head_dim, compute_dtype):
    cd = compute_dtype
    D = num_heads * head_dim

    # ---- K/V projection of the full sequence: once per (batch, chunk) -----
    # (query-tile axis is the inner "arbitrary" grid axis; the scratch
    #  persists across it).  Lane-dense (S, 2D) store; x_full is already in
    #  the compute dtype (pre-cast in the wrapper).
    @pl.when(pl.program_id(2) == 0)
    def _():
        xf = x_full_ref[0]                                            # (S, D)
        kv = jnp.dot(xf, wkv_ref[...], preferred_element_type=jnp.float32)
        kv_ref[...] = (kv + bkv_ref[...]).astype(cd)                  # (S, 2D)

    x_tile = x_tile_ref[0].astype(jnp.float32)                        # (TQ, D)

    # ---- multi-head attention (Q of this tile vs full-sequence K/V) -------
    # softmax 1/sqrt(head_dim) scale is folded into wq/bq (prepare step).
    q = jnp.dot(x_tile.astype(cd), wq_ref[...],
                preferred_element_type=jnp.float32) + bq_ref[...]     # (TQ, D)

    # Each head writes its (TQ, hd) values into the lane-contiguous concat
    # scratch (every column block overwritten each grid step -> no stale
    # data); Wo is applied once after the loop with a full-K MXU matmul.
    # TODO(synk): for large num_heads convert this static unroll to a
    # lax.fori_loop; that needs lane-aligned dynamic head slicing
    # (head_dim % 128 == 0) or a head-major (H, S, hd) scratch layout.
    for h in range(num_heads):
        lo = h * head_dim
        qh = q[:, lo:lo + head_dim].astype(cd)                        # (TQ, hd)
        kh = kv_ref[:, lo:lo + head_dim]                              # (S, hd)
        vh = kv_ref[:, D + lo: D + lo + head_dim]                     # (S, hd)

        # scores = qh @ kh^T : transpose folded into the MXU contraction
        s = lax.dot_general(qh, kh, (((1,), (1,)), ((), ())),
                            preferred_element_type=jnp.float32)       # (TQ, S)
        s = s - jnp.max(s, axis=-1, keepdims=True)
        p = jnp.exp(s)  # NOTE: bf16 exp is a further v6e/v7x option if EUP binds
        p = p * pl.reciprocal(jnp.sum(p, axis=-1, keepdims=True), approx=True)
        vals_ref[:, lo:lo + head_dim] = jnp.dot(
            p.astype(cd), vh, preferred_element_type=jnp.float32).astype(cd)

    # single fused output projection: (TQ, D) @ (D, D), full MXU K dimension
    attn_out = jnp.dot(vals_ref[...], wo_ref[...],
                       preferred_element_type=jnp.float32) + bo_ref[...]

    # drop_1 = identity (inference); residual + LayerNorm 1
    x1 = _layernorm(attn_out + x_tile, ln1_g_ref[...], ln1_b_ref[...])

    # ---- position-wise FFN (dropout = identity) ----------------------------
    h1 = jnp.dot(x1.astype(cd), w1_ref[...],
                 preferred_element_type=jnp.float32) + b1_ref[...]
    h1 = jnp.maximum(h1, 0.0)                                         # ReLU
    ffn = jnp.dot(h1.astype(cd), w2_ref[...],
                  preferred_element_type=jnp.float32) + b2_ref[...]

    # drop_2 = identity; residual + LayerNorm 2
    x2 = _layernorm(ffn + x1, ln2_g_ref[...], ln2_b_ref[...])
    o_ref[0] = x2.astype(o_ref.dtype)


def prepare_encoder_params(params, num_heads, compute_dtype=jnp.bfloat16):
    """One-time parameter repack / cast (kept out of the per-call path)."""
    wqkv = np.asarray(jax.device_get(params["wqkv"]), dtype=np.float32)
    bqkv = np.asarray(jax.device_get(params["bqkv"]), dtype=np.float32).reshape(-1)
    D = wqkv.shape[0]
    assert D % num_heads == 0
    hd = D // num_heads
    F = int(np.asarray(params["w1"]).shape[1])

    # repack fused QKV weight: per-head [q|k|v] interleave -> [Q | K | V]
    perm = np.concatenate(
        [np.arange(h * 3 * hd + p * hd, h * 3 * hd + (p + 1) * hd)
         for p in range(3) for h in range(num_heads)])
    wqkv = wqkv[:, perm]
    bqkv = bqkv[perm]

    scale = 1.0 / float(np.sqrt(hd))          # fold softmax scale into Wq / bq
    cd = compute_dtype
    f32 = jnp.float32

    def as2d(a, n):
        return jnp.asarray(a, f32).reshape(1, n)

    return {
        "compute_dtype": cd,
        "num_heads": num_heads,
        "d_model": D,
        "ffn_hidden": F,
        "wq": jnp.asarray(wqkv[:, :D] * scale, dtype=cd),
        "bq": jnp.asarray(bqkv[:D] * scale, dtype=np.float32).reshape(1, D),
        "wkv": jnp.asarray(wqkv[:, D:], dtype=cd),
        "bkv": jnp.asarray(bqkv[D:], dtype=np.float32).reshape(1, 2 * D),
        "wo": jnp.asarray(params["wo"], f32).astype(cd),
        "bo": as2d(params["bo"], D),
        "gamma1": as2d(params["gamma1"], D),
        "beta1": as2d(params["beta1"], D),
        "w1": jnp.asarray(params["w1"], f32).astype(cd),
        "b1": as2d(params["b1"], F),
        "w2": jnp.asarray(params["w2"], f32).astype(cd),
        "b2": as2d(params["b2"], D),
        "gamma2": as2d(params["gamma2"], D),
        "beta2": as2d(params["beta2"], D),
    }


def _vmem_capacity_bytes():
    try:
        info = pltpu.get_tpu_info()
        cap = getattr(info, "vmem_capacity_bytes", None)
        if cap:
            return int(cap)
    except Exception:
        pass
    return 128 * 1024 * 1024     # v5e / v6e default


def encoder_layer(x, prepared, *, q_block=None):
    cd = prepared["compute_dtype"]
    num_heads = prepared["num_heads"]
    B, S, D = x.shape
    assert D == prepared["d_model"] and D % num_heads == 0
    hd = D // num_heads
    F = prepared["ffn_hidden"]

    # --- query tile: prefer >= 256 when it divides S (fills the MXU M dim) ---
    if q_block is None:
        q_block = S
        for cand in (512, 256, 128, 64, 32, 16, 8):
            if cand <= S and S % cand == 0:
                q_block = cand
                break
    assert S % q_block == 0, "q_block must divide S"
    assert q_block == S or q_block % 8 == 0, "q_block must be a multiple of 8 (or == S)"
    n_qt = S // q_block

    # v7x has 2 TensorCores/chip; when batch alone cannot fill them, split the
    # query-tile axis into an outer "parallel" chunk.  The K/V projection is
    # recomputed once per (batch, chunk) -- cheap relative to 2x throughput.
    kv_splits = 2 if (B < 2 and n_qt >= 2 and n_qt % 2 == 0) else 1
    qpc = n_qt // kv_splits

    # Full-seq view only feeds the K/V projection -> pre-cast to the compute
    # dtype (halves its DMA and resident VMEM); the tiled view stays f32 for
    # the residual / LayerNorm path.
    x_full = x.astype(cd)

    args = [
        x, x_full,
        prepared["wq"], prepared["bq"], prepared["wkv"], prepared["bkv"],
        prepared["wo"], prepared["bo"],
        prepared["gamma1"], prepared["beta1"],
        prepared["w1"], prepared["b1"], prepared["w2"], prepared["b2"],
        prepared["gamma2"], prepared["beta2"],
    ]

    kernel = functools.partial(encoder_layer_kernel, num_heads=num_heads,
                               head_dim=hd, compute_dtype=cd)

    # ---- advisory cost estimate (lets XLA overlap neighbouring ops) --------
    cd_b = jnp.dtype(cd).itemsize
    x_b = jnp.dtype(x.dtype).itemsize
    weight_bytes = (4 * D * D + 2 * D * F) * cd_b
    flops = 2 * B * S * (3 * D * D + 2 * S * D + D * D + 2 * D * F)
    transcendentals = B * num_heads * S * S + 4 * B * S
    bytes_accessed = 2 * B * S * D * x_b + B * S * D * cd_b + weight_bytes
    cost = pl.CostEstimate(flops=int(flops),
                           transcendentals=int(transcendentals),
                           bytes_accessed=int(bytes_accessed))

    # ---- generation-aware VMEM budget (~51 MiB v7x, ~102 MiB v5e/v6e) ------
    budget = int(0.8 * _vmem_capacity_bytes())

    def build_and_call(single_buffer):
        def const(shape):
            nd = len(shape)
            idx = lambda b, c, qi, _n=nd: (0,) * _n
            if single_buffer:
                return pl.BlockSpec(shape, idx, pipeline_mode=pl.Buffered(1))
            return pl.BlockSpec(shape, idx)

        if single_buffer:
            x_full_spec = pl.BlockSpec((1, S, D), lambda b, c, qi: (b, 0, 0),
                                       pipeline_mode=pl.Buffered(1))
        else:
            x_full_spec = pl.BlockSpec((1, S, D), lambda b, c, qi: (b, 0, 0))

        in_specs = [
            pl.BlockSpec((1, q_block, D),
                         lambda b, c, qi: (b, c * qpc + qi, 0)),   # x: query tile (f32)
            x_full_spec,                                           # x: full seq (cd)
            const((D, D)), const((1, D)),                          # Wq (scale-folded), bq
            const((D, 2 * D)), const((1, 2 * D)),                  # Wkv, bkv
            const((D, D)), const((1, D)),                          # Wo, bo
            const((1, D)), const((1, D)),                          # gamma1, beta1
            const((D, F)), const((1, F)),                          # W1, b1
            const((F, D)), const((1, D)),                          # W2, b2
            const((1, D)), const((1, D)),                          # gamma2, beta2
        ]

        # rough VMEM estimate -> explicit limit (never above the gen budget)
        nbuf = 1 if single_buffer else 2
        weight_resident = weight_bytes * nbuf + (8 * D + F) * 4 * nbuf
        act_bytes = (nbuf * S * D * cd_b                        # full-seq view
                     + 4 * q_block * D * x_b                    # x tile + out tile
                     + S * 2 * D * cd_b + q_block * D * cd_b    # scratches
                     + (q_block * S + q_block * F + 8 * q_block * D) * 4)
        est = weight_resident + act_bytes
        vmem_limit = int(min(budget, max(32 * 1024 * 1024, 2 * est)))

        # TODO(synk): for long sequences where the resident (S, 2D) K/V
        # scratch + weights exceed the VMEM budget (esp. v7x 64 MiB/TC),
        # switch to a flash-style streamed K/V inner loop with running
        # max/sum instead of the whole-sequence scratch.
        return pl.pallas_call(
            kernel,
            out_shape=jax.ShapeDtypeStruct((B, S, D), x.dtype),
            grid_spec=pltpu.PrefetchScalarGridSpec(
                num_scalar_prefetch=0,
                grid=(B, kv_splits, qpc),
                in_specs=in_specs,
                out_specs=pl.BlockSpec((1, q_block, D),
                                       lambda b, c, qi: (b, c * qpc + qi, 0)),
                scratch_shapes=[pltpu.VMEM((S, 2 * D), cd),      # cached K/V proj
                                pltpu.VMEM((q_block, D), cd)]),  # head-concat vals
            compiler_params=pltpu.CompilerParams(
                dimension_semantics=("parallel", "parallel", "arbitrary"),
                vmem_limit_bytes=vmem_limit),
            cost_estimate=cost,
        )(*args)

    if hasattr(pl, "Buffered"):
        try:
            return build_and_call(True)           # single-buffer constants
        except Exception:
            pass                                  # Buffered(1) unsupported here
    return build_and_call(False)                  # default double-buffering


# ------------------------- pure-JAX reference --------------------------
def encoder_layer_ref(x, params, num_heads):
    B, S, D = x.shape
    hd = D // num_heads
    qkv = x @ params["wqkv"] + params["bqkv"]                     # (B,S,3D)
    qkv = qkv.reshape(B, S, num_heads, 3 * hd).transpose(0, 2, 1, 3)
    q, k, v = qkv[..., :hd], qkv[..., hd:2 * hd], qkv[..., 2 * hd:]
    scores = jnp.einsum("bhqd,bhkd->bhqk", q, k) / np.sqrt(hd)
    attn = jax.nn.softmax(scores, axis=-1)
    vals = jnp.einsum("bhqk,bhkd->bhqd", attn, v)
    vals = vals.transpose(0, 2, 1, 3).reshape(B, S, D)
    attn_out = vals @ params["wo"] + params["bo"]
    x1 = _layernorm(attn_out + x, params["gamma1"], params["beta1"])
    h1 = jnp.maximum(x1 @ params["w1"] + params["b1"], 0.0)
    ffn_out = h1 @ params["w2"] + params["b2"]
    return _layernorm(ffn_out + x1, params["gamma2"], params["beta2"])


if __name__ == "__main__":
    # Small, lane-aligned shapes (D, ffn_hidden multiples of 128; S mult. of 8)
    B, S = 2, 16
    d_model, num_heads, ffn_hidden = 128, 4, 256

    key = jax.random.PRNGKey(0)
    ks = jax.random.split(key, 9)

    params = {
        "wqkv": 0.1 * jax.random.normal(ks[0], (d_model, 3 * d_model), jnp.float32),
        "bqkv": 0.1 * jax.random.normal(ks[1], (1, 3 * d_model), jnp.float32),
        "wo":   0.1 * jax.random.normal(ks[2], (d_model, d_model), jnp.float32),
        "bo":   0.1 * jax.random.normal(ks[3], (1, d_model), jnp.float32),
        "gamma1": jnp.ones((1, d_model), jnp.float32),
        "beta1":  jnp.zeros((1, d_model), jnp.float32),
        "w1":   0.1 * jax.random.normal(ks[4], (d_model, ffn_hidden), jnp.float32),
        "b1":   0.1 * jax.random.normal(ks[5], (1, ffn_hidden), jnp.float32),
        "w2":   0.1 * jax.random.normal(ks[6], (ffn_hidden, d_model), jnp.float32),
        "b2":   0.1 * jax.random.normal(ks[7], (1, d_model), jnp.float32),
        "gamma2": jnp.ones((1, d_model), jnp.float32),
        "beta2":  jnp.zeros((1, d_model), jnp.float32),
    }

    x = jax.random.normal(ks[8], (B, S, d_model), jnp.float32)
    ref = encoder_layer_ref(x, params, num_heads)

    # one-time parameter preparation (repack + scale fold + dtype cast)
    prep_f32 = prepare_encoder_params(params, num_heads, compute_dtype=jnp.float32)
    prep_bf16 = prepare_encoder_params(params, num_heads, compute_dtype=jnp.bfloat16)

    # 1) f32 compute path (q_block=8 -> 2 query tiles, exercises the cached
    #    K/V scratch): strict semantic check (only approx-reciprocal noise).
    out_f32 = jax.block_until_ready(encoder_layer(x, prep_f32, q_block=8))
    np.testing.assert_allclose(np.asarray(out_f32), np.asarray(ref),
                               rtol=1e-2, atol=1e-2)

    # 2) default bf16-MXU path: bf16 matmul operands with f32 accumulation
    #    vs. a pure-f32 reference -> expect ~1e-2-level deviations.
    out_bf16 = jax.block_until_ready(encoder_layer(x, prep_bf16, q_block=8))
    err = np.abs(np.asarray(out_bf16) - np.asarray(ref))
    assert float(err.mean()) < 5e-2, f"bf16 path mean err too large: {err.mean()}"
    np.testing.assert_allclose(np.asarray(out_bf16), np.asarray(ref),
                               rtol=1e-1, atol=2e-1)

    # 3) B=1 path: exercises the kv_splits=2 (dual-TensorCore) 3-axis grid.
    out_b1 = jax.block_until_ready(encoder_layer(x[:1], prep_f32, q_block=8))
    np.testing.assert_allclose(np.asarray(out_b1), np.asarray(ref[:1]),
                               rtol=1e-2, atol=1e-2)

    print("KERNEL_OK")
</pallas_src>

<mosaic_0001>
module attributes {stable_mosaic.version = 11 : i64} {
  func.func @encoder_layer_kernel(%arg0: i32, %arg1: i32, %arg2: i32, %arg3: memref<1x8x128xf32, #tpu.memory_space<vmem>>, %arg4: memref<1x16x128xf32, #tpu.memory_space<vmem>>, %arg5: memref<128x128xf32, #tpu.memory_space<vmem>>, %arg6: memref<1x128xf32, #tpu.memory_space<vmem>>, %arg7: memref<128x256xf32, #tpu.memory_space<vmem>>, %arg8: memref<1x256xf32, #tpu.memory_space<vmem>>, %arg9: memref<128x128xf32, #tpu.memory_space<vmem>>, %arg10: memref<1x128xf32, #tpu.memory_space<vmem>>, %arg11: memref<1x128xf32, #tpu.memory_space<vmem>>, %arg12: memref<1x128xf32, #tpu.memory_space<vmem>>, %arg13: memref<128x256xf32, #tpu.memory_space<vmem>>, %arg14: memref<1x256xf32, #tpu.memory_space<vmem>>, %arg15: memref<256x128xf32, #tpu.memory_space<vmem>>, %arg16: memref<1x128xf32, #tpu.memory_space<vmem>>, %arg17: memref<1x128xf32, #tpu.memory_space<vmem>>, %arg18: memref<1x128xf32, #tpu.memory_space<vmem>>, %arg19: memref<1x8x128xf32, #tpu.memory_space<vmem>>, %arg20: memref<16x256xf32, #tpu.memory_space<vmem>>, %arg21: memref<8x128xf32, #tpu.memory_space<vmem>>) attributes {dimension_semantics = [#tpu.dimension_semantics<parallel>, #tpu.dimension_semantics<parallel>, #tpu.dimension_semantics<arbitrary>], iteration_bounds = array<i64: 2, 1, 2>, scalar_prefetch = 0 : i64, scratch_operands = 2 : i64, tpu.core_type = #tpu.core_type<tc>, window_params = [{transform_indices = @transform_0, window_bounds = array<i64: 1, 8, 128>}, {pipeline_mode = #tpu.pipeline_mode<synchronous>, transform_indices = @transform_1, window_bounds = array<i64: 1, 16, 128>}, {pipeline_mode = #tpu.pipeline_mode<synchronous>, transform_indices = @transform_2, window_bounds = array<i64: 128, 128>}, {pipeline_mode = #tpu.pipeline_mode<synchronous>, transform_indices = @transform_3, window_bounds = array<i64: 1, 128>}, {pipeline_mode = #tpu.pipeline_mode<synchronous>, transform_indices = @transform_4, window_bounds = array<i64: 128, 256>}, {pipeline_mode = #tpu.pipeline_mode<synchronous>, transform_indices = @transform_5, window_bounds = array<i64: 1, 256>}, {pipeline_mode = #tpu.pipeline_mode<synchronous>, transform_indices = @transform_6, window_bounds = array<i64: 128, 128>}, {pipeline_mode = #tpu.pipeline_mode<synchronous>, transform_indices = @transform_7, window_bounds = array<i64: 1, 128>}, {pipeline_mode = #tpu.pipeline_mode<synchronous>, transform_indices = @transform_8, window_bounds = array<i64: 1, 128>}, {pipeline_mode = #tpu.pipeline_mode<synchronous>, transform_indices = @transform_9, window_bounds = array<i64: 1, 128>}, {pipeline_mode = #tpu.pipeline_mode<synchronous>, transform_indices = @transform_10, window_bounds = array<i64: 128, 256>}, {pipeline_mode = #tpu.pipeline_mode<synchronous>, transform_indices = @transform_11, window_bounds = array<i64: 1, 256>}, {pipeline_mode = #tpu.pipeline_mode<synchronous>, transform_indices = @transform_12, window_bounds = array<i64: 256, 128>}, {pipeline_mode = #tpu.pipeline_mode<synchronous>, transform_indices = @transform_13, window_bounds = array<i64: 1, 128>}, {pipeline_mode = #tpu.pipeline_mode<synchronous>, transform_indices = @transform_14, window_bounds = array<i64: 1, 128>}, {pipeline_mode = #tpu.pipeline_mode<synchronous>, transform_indices = @transform_15, window_bounds = array<i64: 1, 128>}, {transform_indices = @transform_16, window_bounds = array<i64: 1, 8, 128>}]} {
    %c0_i32 = arith.constant 0 : i32
    %0 = arith.cmpi eq, %arg2, %c0_i32 : i32
    %1 = arith.extui %0 : i1 to i32
    %c0_i32_0 = arith.constant 0 : i32
    %2 = arith.cmpi ne, %1, %c0_i32_0 : i32
    scf.if %2 {
      %c0_79 = arith.constant 0 : index
      %c0_80 = arith.constant 0 : index
      %c0_81 = arith.constant 0 : index
      %145 = vector.load %arg4[%c0_79, %c0_80, %c0_81] : memref<1x16x128xf32, #tpu.memory_space<vmem>>, vector<1x16x128xf32>
      %146 = vector.shape_cast %145 : vector<1x16x128xf32> to vector<16x128xf32>
      %c0_82 = arith.constant 0 : index
      %c0_83 = arith.constant 0 : index
      %147 = vector.load %arg7[%c0_82, %c0_83] : memref<128x256xf32, #tpu.memory_space<vmem>>, vector<128x256xf32>
      %cst_84 = arith.constant dense<0.000000e+00> : vector<16x256xf32>
      %148 = tpu.matmul %146, %147, %cst_84 {dimension_numbers = #tpu.dot_dimension_numbers<[1], [0], [0], [1], [0, 0, 1, 1], [], []>} : vector<16x128xf32>, vector<128x256xf32>, vector<16x256xf32> -> vector<16x256xf32>
      %c0_85 = arith.constant 0 : index
      %c0_86 = arith.constant 0 : index
      %149 = vector.load %arg8[%c0_85, %c0_86] : memref<1x256xf32, #tpu.memory_space<vmem>>, vector<1x256xf32>
      %150 = vector.broadcast %149 : vector<1x256xf32> to vector<16x256xf32>
      %151 = arith.addf %148, %150 : vector<16x256xf32>
      %c0_87 = arith.constant 0 : index
      %c0_88 = arith.constant 0 : index
      %152 = vector.load %arg20[%c0_87, %c0_88] : memref<16x256xf32, #tpu.memory_space<vmem>>, vector<16x256xf32>
      tpu.vector_store %arg20[%c0_87, %c0_88], %151 {strides = array<i32>} : memref<16x256xf32, #tpu.memory_space<vmem>>, vector<16x256xf32>,
    } else {
    }
    %c0 = arith.constant 0 : index
    %c0_1 = arith.constant 0 : index
    %c0_2 = arith.constant 0 : index
    %3 = vector.load %arg3[%c0, %c0_1, %c0_2] : memref<1x8x128xf32, #tpu.memory_space<vmem>>, vector<1x8x128xf32>
    %4 = vector.shape_cast %3 : vector<1x8x128xf32> to vector<8x128xf32>
    %c0_3 = arith.constant 0 : index
    %c0_4 = arith.constant 0 : index
    %5 = vector.load %arg5[%c0_3, %c0_4] : memref<128x128xf32, #tpu.memory_space<vmem>>, vector<128x128xf32>
    %cst = arith.constant dense<0.000000e+00> : vector<8x128xf32>
    %6 = tpu.matmul %4, %5, %cst {dimension_numbers = #tpu.dot_dimension_numbers<[1], [0], [0], [1], [0, 0, 1, 1], [], []>} : vector<8x128xf32>, vector<128x128xf32>, vector<8x128xf32> -> vector<8x128xf32>
    %c0_5 = arith.constant 0 : index
    %c0_6 = arith.constant 0 : index
    %7 = vector.load %arg6[%c0_5, %c0_6] : memref<1x128xf32, #tpu.memory_space<vmem>>, vector<1x128xf32>
    %8 = vector.broadcast %7 : vector<1x128xf32> to vector<8x128xf32>
    %9 = arith.addf %6, %8 : vector<8x128xf32>
    %10 = vector.extract_strided_slice %9 {offsets = [0, 0], sizes = [8, 32], strides = [1, 1]} : vector<8x128xf32> to vector<8x32xf32>
    %c0_7 = arith.constant 0 : index
    %c0_8 = arith.constant 0 : index
    %11 = vector.load %arg20[%c0_7, %c0_8] : memref<16x256xf32, #tpu.memory_space<vmem>>, vector<16x32xf32>
    %c0_9 = arith.constant 0 : index
    %c128 = arith.constant 128 : index
    %12 = vector.load %arg20[%c0_9, %c128] : memref<16x256xf32, #tpu.memory_space<vmem>>, vector<16x32xf32>
    %cst_10 = arith.constant dense<0.000000e+00> : vector<8x16xf32>
    %13 = tpu.matmul %10, %11, %cst_10 {dimension_numbers = #tpu.dot_dimension_numbers<[1], [1], [0], [0], [0, 0, 1, 0], [], []>} : vector<8x32xf32>, vector<16x32xf32>, vector<8x16xf32> -> vector<8x16xf32>
    %cst_11 = arith.constant dense<0xFF800000> : vector<8xf32>
    %14 = vector.multi_reduction <maximumf>, %13, %cst_11 [1] : vector<8x16xf32> to vector<8xf32>
    %15 = vector.shape_cast %14 : vector<8xf32> to vector<8x1xf32>
    %16 = vector.broadcast %15 : vector<8x1xf32> to vector<8x16xf32>
    %17 = arith.subf %13, %16 : vector<8x16xf32>
    %18 = math.exp %17 : vector<8x16xf32>
    %cst_12 = arith.constant dense<0.000000e+00> : vector<8xf32>
    %19 = vector.multi_reduction <add>, %18, %cst_12 [1] : vector<8x16xf32> to vector<8xf32>
    %20 = vector.shape_cast %19 : vector<8xf32> to vector<8x1xf32>
    %21 = tpu.reciprocal %20 {approx = true} : vector<8x1xf32> -> vector<8x1xf32>
    %22 = vector.broadcast %21 : vector<8x1xf32> to vector<8x16xf32>
    %23 = arith.mulf %18, %22 : vector<8x16xf32>
    %cst_13 = arith.constant dense<0.000000e+00> : vector<8x32xf32>
    %24 = tpu.matmul %23, %12, %cst_13 {dimension_numbers = #tpu.dot_dimension_numbers<[1], [0], [0], [1], [0, 0, 1, 1], [], []>} : vector<8x16xf32>, vector<16x32xf32>, vector<8x32xf32> -> vector<8x32xf32>
    %c0_14 = arith.constant 0 : index
    %c0_15 = arith.constant 0 : index
    %25 = vector.load %arg21[%c0_14, %c0_15] : memref<8x128xf32, #tpu.memory_space<vmem>>, vector<8x32xf32>
    tpu.vector_store %arg21[%c0_14, %c0_15], %24 {strides = array<i32>} : memref<8x128xf32, #tpu.memory_space<vmem>>, vector<8x32xf32>,
    %26 = vector.extract_strided_slice %9 {offsets = [0, 32], sizes = [8, 32], strides = [1, 1]} : vector<8x128xf32> to vector<8x32xf32>
    %c0_16 = arith.constant 0 : index
    %c32 = arith.constant 32 : index
    %27 = vector.load %arg20[%c0_16, %c32] : memref<16x256xf32, #tpu.memory_space<vmem>>, vector<16x32xf32>
    %c0_17 = arith.constant 0 : index
    %c160 = arith.constant 160 : index
    %28 = vector.load %arg20[%c0_17, %c160] : memref<16x256xf32, #tpu.memory_space<vmem>>, vector<16x32xf32>
    %cst_18 = arith.constant dense<0.000000e+00> : vector<8x16xf32>
    %29 = tpu.matmul %26, %27, %cst_18 {dimension_numbers = #tpu.dot_dimension_numbers<[1], [1], [0], [0], [0, 0, 1, 0], [], []>} : vector<8x32xf32>, vector<16x32xf32>, vector<8x16xf32> -> vector<8x16xf32>
    %cst_19 = arith.constant dense<0xFF800000> : vector<8xf32>
    %30 = vector.multi_reduction <maximumf>, %29, %cst_19 [1] : vector<8x16xf32> to vector<8xf32>
    %31 = vector.shape_cast %30 : vector<8xf32> to vector<8x1xf32>
    %32 = vector.broadcast %31 : vector<8x1xf32> to vector<8x16xf32>
    %33 = arith.subf %29, %32 : vector<8x16xf32>
    %34 = math.exp %33 : vector<8x16xf32>
    %cst_20 = arith.constant dense<0.000000e+00> : vector<8xf32>
    %35 = vector.multi_reduction <add>, %34, %cst_20 [1] : vector<8x16xf32> to vector<8xf32>
    %36 = vector.shape_cast %35 : vector<8xf32> to vector<8x1xf32>
    %37 = tpu.reciprocal %36 {approx = true} : vector<8x1xf32> -> vector<8x1xf32>
    %38 = vector.broadcast %37 : vector<8x1xf32> to vector<8x16xf32>
    %39 = arith.mulf %34, %38 : vector<8x16xf32>
    %cst_21 = arith.constant dense<0.000000e+00> : vector<8x32xf32>
    %40 = tpu.matmul %39, %28, %cst_21 {dimension_numbers = #tpu.dot_dimension_numbers<[1], [0], [0], [1], [0, 0, 1, 1], [], []>} : vector<8x16xf32>, vector<16x32xf32>, vector<8x32xf32> -> vector<8x32xf32>
    %c0_22 = arith.constant 0 : index
    %c32_23 = arith.constant 32 : index
    %41 = vector.load %arg21[%c0_22, %c32_23] : memref<8x128xf32, #tpu.memory_space<vmem>>, vector<8x32xf32>
    tpu.vector_store %arg21[%c0_22, %c32_23], %40 {strides = array<i32>} : memref<8x128xf32, #tpu.memory_space<vmem>>, vector<8x32xf32>,
    %42 = vector.extract_strided_slice %9 {offsets = [0, 64], sizes = [8, 32], strides = [1, 1]} : vector<8x128xf32> to vector<8x32xf32>
    %c0_24 = arith.constant 0 : index
    %c64 = arith.constant 64 : index
    %43 = vector.load %arg20[%c0_24, %c64] : memref<16x256xf32, #tpu.memory_space<vmem>>, vector<16x32xf32>
    %c0_25 = arith.constant 0 : index
    %c192 = arith.constant 192 : index
    %44 = vector.load %arg20[%c0_25, %c192] : memref<16x256xf32, #tpu.memory_space<vmem>>, vector<16x32xf32>
    %cst_26 = arith.constant dense<0.000000e+00> : vector<8x16xf32>
    %45 = tpu.matmul %42, %43, %cst_26 {dimension_numbers = #tpu.dot_dimension_numbers<[1], [1], [0], [0], [0, 0, 1, 0], [], []>} : vector<8x32xf32>, vector<16x32xf32>, vector<8x16xf32> -> vector<8x16xf32>
    %cst_27 = arith.constant dense<0xFF800000> : vector<8xf32>
    %46 = vector.multi_reduction <maximumf>, %45, %cst_27 [1] : vector<8x16xf32> to vector<8xf32>
    %47 = vector.shape_cast %46 : vector<8xf32> to vector<8x1xf32>
    %48 = vector.broadcast %47 : vector<8x1xf32> to vector<8x16xf32>
    %49 = arith.subf %45, %48 : vector<8x16xf32>
    %50 = math.exp %49 : vector<8x16xf32>
    %cst_28 = arith.constant dense<0.000000e+00> : vector<8xf32>
    %51 = vector.multi_reduction <add>, %50, %cst_28 [1] : vector<8x16xf32> to vector<8xf32>
    %52 = vector.shape_cast %51 : vector<8xf32> to vector<8x1xf32>
    %53 = tpu.reciprocal %52 {approx = true} : vector<8x1xf32> -> vector<8x1xf32>
    %54 = vector.broadcast %53 : vector<8x1xf32> to vector<8x16xf32>
    %55 = arith.mulf %50, %54 : vector<8x16xf32>
    %cst_29 = arith.constant dense<0.000000e+00> : vector<8x32xf32>
    %56 = tpu.matmul %55, %44, %cst_29 {dimension_numbers = #tpu.dot_dimension_numbers<[1], [0], [0], [1], [0, 0, 1, 1], [], []>} : vector<8x16xf32>, vector<16x32xf32>, vector<8x32xf32> -> vector<8x32xf32>
    %c0_30 = arith.constant 0 : index
    %c64_31 = arith.constant 64 : index
    %57 = vector.load %arg21[%c0_30, %c64_31] : memref<8x128xf32, #tpu.memory_space<vmem>>, vector<8x32xf32>
    tpu.vector_store %arg21[%c0_30, %c64_31], %56 {strides = array<i32>} : memref<8x128xf32, #tpu.memory_space<vmem>>, vector<8x32xf32>,
    %58 = vector.extract_strided_slice %9 {offsets = [0, 96], sizes = [8, 32], strides = [1, 1]} : vector<8x128xf32> to vector<8x32xf32>
    %c0_32 = arith.constant 0 : index
    %c96 = arith.constant 96 : index
    %59 = vector.load %arg20[%c0_32, %c96] : memref<16x256xf32, #tpu.memory_space<vmem>>, vector<16x32xf32>
    %c0_33 = arith.constant 0 : index
    %c224 = arith.constant 224 : index
    %60 = vector.load %arg20[%c0_33, %c224] : memref<16x256xf32, #tpu.memory_space<vmem>>, vector<16x32xf32>
    %cst_34 = arith.constant dense<0.000000e+00> : vector<8x16xf32>
    %61 = tpu.matmul %58, %59, %cst_34 {dimension_numbers = #tpu.dot_dimension_numbers<[1], [1], [0], [0], [0, 0, 1, 0], [], []>} : vector<8x32xf32>, vector<16x32xf32>, vector<8x16xf32> -> vector<8x16xf32>
    %cst_35 = arith.constant dense<0xFF800000> : vector<8xf32>
    %62 = vector.multi_reduction <maximumf>, %61, %cst_35 [1] : vector<8x16xf32> to vector<8xf32>
    %63 = vector.shape_cast %62 : vector<8xf32> to vector<8x1xf32>
    %64 = vector.broadcast %63 : vector<8x1xf32> to vector<8x16xf32>
    %65 = arith.subf %61, %64 : vector<8x16xf32>
    %66 = math.exp %65 : vector<8x16xf32>
    %cst_36 = arith.constant dense<0.000000e+00> : vector<8xf32>
    %67 = vector.multi_reduction <add>, %66, %cst_36 [1] : vector<8x16xf32> to vector<8xf32>
    %68 = vector.shape_cast %67 : vector<8xf32> to vector<8x1xf32>
    %69 = tpu.reciprocal %68 {approx = true} : vector<8x1xf32> -> vector<8x1xf32>
    %70 = vector.broadcast %69 : vector<8x1xf32> to vector<8x16xf32>
    %71 = arith.mulf %66, %70 : vector<8x16xf32>
    %cst_37 = arith.constant dense<0.000000e+00> : vector<8x32xf32>
    %72 = tpu.matmul %71, %60, %cst_37 {dimension_numbers = #tpu.dot_dimension_numbers<[1], [0], [0], [1], [0, 0, 1, 1], [], []>} : vector<8x16xf32>, vector<16x32xf32>, vector<8x32xf32> -> vector<8x32xf32>
    %c0_38 = arith.constant 0 : index
    %c96_39 = arith.constant 96 : index
    %73 = vector.load %arg21[%c0_38, %c96_39] : memref<8x128xf32, #tpu.memory_space<vmem>>, vector<8x32xf32>
    tpu.vector_store %arg21[%c0_38, %c96_39], %72 {strides = array<i32>} : memref<8x128xf32, #tpu.memory_space<vmem>>, vector<8x32xf32>,
    %c0_40 = arith.constant 0 : index
    %c0_41 = arith.constant 0 : index
    %74 = vector.load %arg21[%c0_40, %c0_41] : memref<8x128xf32, #tpu.memory_space<vmem>>, vector<8x128xf32>
    %c0_42 = arith.constant 0 : index
    %c0_43 = arith.constant 0 : index
    %75 = vector.load %arg9[%c0_42, %c0_43] : memref<128x128xf32, #tpu.memory_space<vmem>>, vector<128x128xf32>
    %cst_44 = arith.constant dense<0.000000e+00> : vector<8x128xf32>
    %76 = tpu.matmul %74, %75, %cst_44 {dimension_numbers = #tpu.dot_dimension_numbers<[1], [0], [0], [1], [0, 0, 1, 1], [], []>} : vector<8x128xf32>, vector<128x128xf32>, vector<8x128xf32> -> vector<8x128xf32>
    %c0_45 = arith.constant 0 : index
    %c0_46 = arith.constant 0 : index
    %77 = vector.load %arg10[%c0_45, %c0_46] : memref<1x128xf32, #tpu.memory_space<vmem>>, vector<1x128xf32>
    %78 = vector.broadcast %77 : vector<1x128xf32> to vector<8x128xf32>
    %79 = arith.addf %76, %78 : vector<8x128xf32>
    %80 = arith.addf %79, %4 : vector<8x128xf32>
    %c0_47 = arith.constant 0 : index
    %c0_48 = arith.constant 0 : index
    %81 = vector.load %arg11[%c0_47, %c0_48] : memref<1x128xf32, #tpu.memory_space<vmem>>, vector<1x128xf32>
    %c0_49 = arith.constant 0 : index
    %c0_50 = arith.constant 0 : index
    %82 = vector.load %arg12[%c0_49, %c0_50] : memref<1x128xf32, #tpu.memory_space<vmem>>, vector<1x128xf32>
    %cst_51 = arith.constant dense<0.000000e+00> : vector<8xf32>
    %83 = vector.multi_reduction <add>, %80, %cst_51 [1] : vector<8x128xf32> to vector<8xf32>
    %84 = vector.shape_cast %83 : vector<8xf32> to vector<8x1xf32>
    %cst_52 = arith.constant 1.280000e+02 : f32
    %85 = vector.broadcast %cst_52 : f32 to vector<8x1xf32>
    %86 = arith.divf %84, %85 : vector<8x1xf32>
    %87 = vector.broadcast %86 : vector<8x1xf32> to vector<8x128xf32>
    %88 = arith.subf %80, %87 : vector<8x128xf32>
    %89 = arith.mulf %88, %88 : vector<8x128xf32>
    %cst_53 = arith.constant dense<0.000000e+00> : vector<8xf32>
    %90 = vector.multi_reduction <add>, %89, %cst_53 [1] : vector<8x128xf32> to vector<8xf32>
    %91 = vector.shape_cast %90 : vector<8xf32> to vector<8x1xf32>
    %cst_54 = arith.constant 1.280000e+02 : f32
    %92 = vector.broadcast %cst_54 : f32 to vector<8x1xf32>
    %93 = arith.divf %91, %92 : vector<8x1xf32>
    %cst_55 = arith.constant 9.99999974E-6 : f32
    %94 = vector.broadcast %cst_55 : f32 to vector<8x1xf32>
    %95 = arith.addf %93, %94 : vector<8x1xf32>
    %96 = math.rsqrt %95 : vector<8x1xf32>
    %97 = vector.broadcast %86 : vector<8x1xf32> to vector<8x128xf32>
    %98 = arith.subf %80, %97 : vector<8x128xf32>
    %99 = vector.broadcast %96 : vector<8x1xf32> to vector<8x128xf32>
    %100 = arith.mulf %98, %99 : vector<8x128xf32>
    %101 = vector.broadcast %81 : vector<1x128xf32> to vector<8x128xf32>
    %102 = arith.mulf %101, %100 : vector<8x128xf32>
    %103 = vector.broadcast %82 : vector<1x128xf32> to vector<8x128xf32>
    %104 = arith.addf %102, %103 : vector<8x128xf32>
    %c0_56 = arith.constant 0 : index
    %c0_57 = arith.constant 0 : index
    %105 = vector.load %arg13[%c0_56, %c0_57] : memref<128x256xf32, #tpu.memory_space<vmem>>, vector<128x256xf32>
    %cst_58 = arith.constant dense<0.000000e+00> : vector<8x256xf32>
    %106 = tpu.matmul %104, %105, %cst_58 {dimension_numbers = #tpu.dot_dimension_numbers<[1], [0], [0], [1], [0, 0, 1, 1], [], []>} : vector<8x128xf32>, vector<128x256xf32>, vector<8x256xf32> -> vector<8x256xf32>
    %c0_59 = arith.constant 0 : index
    %c0_60 = arith.constant 0 : index
    %107 = vector.load %arg14[%c0_59, %c0_60] : memref<1x256xf32, #tpu.memory_space<vmem>>, vector<1x256xf32>
    %108 = vector.broadcast %107 : vector<1x256xf32> to vector<8x256xf32>
    %109 = arith.addf %106, %108 : vector<8x256xf32>
    %cst_61 = arith.constant 0.000000e+00 : f32
    %110 = vector.broadcast %cst_61 : f32 to vector<8x256xf32>
    %111 = arith.maximumf %109, %110 : vector<8x256xf32>
    %c0_62 = arith.constant 0 : index
    %c0_63 = arith.constant 0 : index
    %112 = vector.load %arg15[%c0_62, %c0_63] : memref<256x128xf32, #tpu.memory_space<vmem>>, vector<256x128xf32>
    %cst_64 = arith.constant dense<0.000000e+00> : vector<8x128xf32>
    %113 = tpu.matmul %111, %112, %cst_64 {dimension_numbers = #tpu.dot_dimension_numbers<[1], [0], [0], [1], [0, 0, 1, 1], [], []>} : vector<8x256xf32>, vector<256x128xf32>, vector<8x128xf32> -> vector<8x128xf32>
    %c0_65 = arith.constant 0 : index
    %c0_66 = arith.constant 0 : index
    %114 = vector.load %arg16[%c0_65, %c0_66] : memref<1x128xf32, #tpu.memory_space<vmem>>, vector<1x128xf32>
    %115 = vector.broadcast %114 : vector<1x128xf32> to vector<8x128xf32>
    %116 = arith.addf %113, %115 : vector<8x128xf32>
    %117 = arith.addf %116, %104 : vector<8x128xf32>
    %c0_67 = arith.constant 0 : index
    %c0_68 = arith.constant 0 : index
    %118 = vector.load %arg17[%c0_67, %c0_68] : memref<1x128xf32, #tpu.memory_space<vmem>>, vector<1x128xf32>
    %c0_69 = arith.constant 0 : index
    %c0_70 = arith.constant 0 : index
    %119 = vector.load %arg18[%c0_69, %c0_70] : memref<1x128xf32, #tpu.memory_space<vmem>>, vector<1x128xf32>
    %cst_71 = arith.constant dense<0.000000e+00> : vector<8xf32>
    %120 = vector.multi_reduction <add>, %117, %cst_71 [1] : vector<8x128xf32> to vector<8xf32>
    %121 = vector.shape_cast %120 : vector<8xf32> to vector<8x1xf32>
    %cst_72 = arith.constant 1.280000e+02 : f32
    %122 = vector.broadcast %cst_72 : f32 to vector<8x1xf32>
    %123 = arith.divf %121, %122 : vector<8x1xf32>
    %124 = vector.broadcast %123 : vector<8x1xf32> to vector<8x128xf32>
    %125 = arith.subf %117, %124 : vector<8x128xf32>
    %126 = arith.mulf %125, %125 : vector<8x128xf32>
    %cst_73 = arith.constant dense<0.000000e+00> : vector<8xf32>
    %127 = vector.multi_reduction <add>, %126, %cst_73 [1] : vector<8x128xf32> to vector<8xf32>
    %128 = vector.shape_cast %127 : vector<8xf32> to vector<8x1xf32>
    %cst_74 = arith.constant 1.280000e+02 : f32
    %129 = vector.broadcast %cst_74 : f32 to vector<8x1xf32>
    %130 = arith.divf %128, %129 : vector<8x1xf32>
    %cst_75 = arith.constant 9.99999974E-6 : f32
    %131 = vector.broadcast %cst_75 : f32 to vector<8x1xf32>
    %132 = arith.addf %130, %131 : vector<8x1xf32>
    %133 = math.rsqrt %132 : vector<8x1xf32>
    %134 = vector.broadcast %123 : vector<8x1xf32> to vector<8x128xf32>
    %135 = arith.subf %117, %134 : vector<8x128xf32>
    %136 = vector.broadcast %133 : vector<8x1xf32> to vector<8x128xf32>
    %137 = arith.mulf %135, %136 : vector<8x128xf32>
    %138 = vector.broadcast %118 : vector<1x128xf32> to vector<8x128xf32>
    %139 = arith.mulf %138, %137 : vector<8x128xf32>
    %140 = vector.broadcast %119 : vector<1x128xf32> to vector<8x128xf32>
    %141 = arith.addf %139, %140 : vector<8x128xf32>
    %c0_76 = arith.constant 0 : index
    %c0_77 = arith.constant 0 : index
    %c0_78 = arith.constant 0 : index
    %142 = vector.load %arg19[%c0_76, %c0_77, %c0_78] : memref<1x8x128xf32, #tpu.memory_space<vmem>>, vector<1x8x128xf32>
    %143 = vector.shape_cast %142 : vector<1x8x128xf32> to vector<8x128xf32>
    %144 = vector.shape_cast %141 : vector<8x128xf32> to vector<1x8x128xf32>
    tpu.vector_store %arg19[%c0_76, %c0_77, %c0_78], %144 {strides = array<i32>} : memref<1x8x128xf32, #tpu.memory_space<vmem>>, vector<1x8x128xf32>,
    return
  }
  func.func @transform_0(%arg0: i32, %arg1: i32, %arg2: i32) -> (i32, i32, i32) {
    %c2_i32 = arith.constant 2 : i32
    %0 = arith.muli %arg1, %c2_i32 : i32
    %1 = arith.addi %0, %arg2 : i32
    %c0_i32 = arith.constant 0 : i32
    %c0_i32_0 = arith.constant 0 : i32
    return %arg0, %1, %c0_i32 : i32, i32, i32
  }
  func.func @transform_1(%arg0: i32, %arg1: i32, %arg2: i32) -> (i32, i32, i32) {
    %c0_i32 = arith.constant 0 : i32
    %c0_i32_0 = arith.constant 0 : i32
    %c0_i32_1 = arith.constant 0 : i32
    return %arg0, %c0_i32, %c0_i32_0 : i32, i32, i32
  }
  func.func @transform_2(%arg0: i32, %arg1: i32, %arg2: i32) -> (i32, i32) {
    %c0_i32 = arith.constant 0 : i32
    %c0_i32_0 = arith.constant 0 : i32
    %c0_i32_1 = arith.constant 0 : i32
    return %c0_i32, %c0_i32_0 : i32, i32
  }
  func.func @transform_3(%arg0: i32, %arg1: i32, %arg2: i32) -> (i32, i32) {
    %c0_i32 = arith.constant 0 : i32
    %c0_i32_0 = arith.constant 0 : i32
    %c0_i32_1 = arith.constant 0 : i32
    return %c0_i32, %c0_i32_0 : i32, i32
  }
  func.func @transform_4(%arg0: i32, %arg1: i32, %arg2: i32) -> (i32, i32) {
    %c0_i32 = arith.constant 0 : i32
    %c0_i32_0 = arith.constant 0 : i32
    %c0_i32_1 = arith.constant 0 : i32
    return %c0_i32, %c0_i32_0 : i32, i32
  }
  func.func @transform_5(%arg0: i32, %arg1: i32, %arg2: i32) -> (i32, i32) {
    %c0_i32 = arith.constant 0 : i32
    %c0_i32_0 = arith.constant 0 : i32
    %c0_i32_1 = arith.constant 0 : i32
    return %c0_i32, %c0_i32_0 : i32, i32
  }
  func.func @transform_6(%arg0: i32, %arg1: i32, %arg2: i32) -> (i32, i32) {
    %c0_i32 = arith.constant 0 : i32
    %c0_i32_0 = arith.constant 0 : i32
    %c0_i32_1 = arith.constant 0 : i32
    return %c0_i32, %c0_i32_0 : i32, i32
  }
  func.func @transform_7(%arg0: i32, %arg1: i32, %arg2: i32) -> (i32, i32) {
    %c0_i32 = arith.constant 0 : i32
    %c0_i32_0 = arith.constant 0 : i32
    %c0_i32_1 = arith.constant 0 : i32
    return %c0_i32, %c0_i32_0 : i32, i32
  }
  func.func @transform_8(%arg0: i32, %arg1: i32, %arg2: i32) -> (i32, i32) {
    %c0_i32 = arith.constant 0 : i32
    %c0_i32_0 = arith.constant 0 : i32
    %c0_i32_1 = arith.constant 0 : i32
    return %c0_i32, %c0_i32_0 : i32, i32
  }
  func.func @transform_9(%arg0: i32, %arg1: i32, %arg2: i32) -> (i32, i32) {
    %c0_i32 = arith.constant 0 : i32
    %c0_i32_0 = arith.constant 0 : i32
    %c0_i32_1 = arith.constant 0 : i32
    return %c0_i32, %c0_i32_0 : i32, i32
  }
  func.func @transform_10(%arg0: i32, %arg1: i32, %arg2: i32) -> (i32, i32) {
    %c0_i32 = arith.constant 0 : i32
    %c0_i32_0 = arith.constant 0 : i32
    %c0_i32_1 = arith.constant 0 : i32
    return %c0_i32, %c0_i32_0 : i32, i32
  }
  func.func @transform_11(%arg0: i32, %arg1: i32, %arg2: i32) -> (i32, i32) {
    %c0_i32 = arith.constant 0 : i32
    %c0_i32_0 = arith.constant 0 : i32
    %c0_i32_1 = arith.constant 0 : i32
    return %c0_i32, %c0_i32_0 : i32, i32
  }
  func.func @transform_12(%arg0: i32, %arg1: i32, %arg2: i32) -> (i32, i32) {
    %c0_i32 = arith.constant 0 : i32
    %c0_i32_0 = arith.constant 0 : i32
    %c0_i32_1 = arith.constant 0 : i32
    return %c0_i32, %c0_i32_0 : i32, i32
  }
  func.func @transform_13(%arg0: i32, %arg1: i32, %arg2: i32) -> (i32, i32) {
    %c0_i32 = arith.constant 0 : i32
    %c0_i32_0 = arith.constant 0 : i32
    %c0_i32_1 = arith.constant 0 : i32
    return %c0_i32, %c0_i32_0 : i32, i32
  }
  func.func @transform_14(%arg0: i32, %arg1: i32, %arg2: i32) -> (i32, i32) {
    %c0_i32 = arith.constant 0 : i32
    %c0_i32_0 = arith.constant 0 : i32
    %c0_i32_1 = arith.constant 0 : i32
    return %c0_i32, %c0_i32_0 : i32, i32
  }
  func.func @transform_15(%arg0: i32, %arg1: i32, %arg2: i32) -> (i32, i32) {
    %c0_i32 = arith.constant 0 : i32
    %c0_i32_0 = arith.constant 0 : i32
    %c0_i32_1 = arith.constant 0 : i32
    return %c0_i32, %c0_i32_0 : i32, i32
  }
  func.func @transform_16(%arg0: i32, %arg1: i32, %arg2: i32) -> (i32, i32, i32) {
    %c2_i32 = arith.constant 2 : i32
    %0 = arith.muli %arg1, %c2_i32 : i32
    %1 = arith.addi %0, %arg2 : i32
    %c0_i32 = arith.constant 0 : i32
    %c0_i32_0 = arith.constant 0 : i32
    return %arg0, %1, %c0_i32 : i32, i32, i32
  }
}

module attributes {stable_mosaic.version = 11 : i64} {
  func.func @encoder_layer_kernel(%arg0: i32, %arg1: i32, %arg2: i32, %arg3: memref<1x8x128xf32, #tpu.memory_space<vmem>>, %arg4: memref<1x16x128xf32, #tpu.memory_space<vmem>>, %arg5: memref<128x128xf32, #tpu.memory_space<vmem>>, %arg6: memref<1x128xf32, #tpu.memory_space<vmem>>, %arg7: memref<128x256xf32, #tpu.memory_space<vmem>>, %arg8: memref<1x256xf32, #tpu.memory_space<vmem>>, %arg9: memref<128x128xf32, #tpu.memory_space<vmem>>, %arg10: memref<1x128xf32, #tpu.memory_space<vmem>>, %arg11: memref<1x128xf32, #tpu.memory_space<vmem>>, %arg12: memref<1x128xf32, #tpu.memory_space<vmem>>, %arg13: memref<128x256xf32, #tpu.memory_space<vmem>>, %arg14: memref<1x256xf32, #tpu.memory_space<vmem>>, %arg15: memref<256x128xf32, #tpu.memory_space<vmem>>, %arg16: memref<1x128xf32, #tpu.memory_space<vmem>>, %arg17: memref<1x128xf32, #tpu.memory_space<vmem>>, %arg18: memref<1x128xf32, #tpu.memory_space<vmem>>, %arg19: memref<1x8x128xf32, #tpu.memory_space<vmem>>, %arg20: memref<16x256xf32, #tpu.memory_space<vmem>>, %arg21: memref<8x128xf32, #tpu.memory_space<vmem>>) attributes {dimension_semantics = [#tpu.dimension_semantics<parallel>, #tpu.dimension_semantics<parallel>, #tpu.dimension_semantics<arbitrary>], iteration_bounds = array<i64: 2, 1, 2>, scalar_prefetch = 0 : i64, scratch_operands = 2 : i64, tpu.core_type = #tpu.core_type<tc>, window_params = [{transform_indices = @transform_0, window_bounds = array<i64: 1, 8, 128>}, {transform_indices = @transform_1, window_bounds = array<i64: 1, 16, 128>}, {pipeline_mode = #tpu.pipeline_mode<synchronous>, transform_indices = @transform_2, window_bounds = array<i64: 128, 128>}, {pipeline_mode = #tpu.pipeline_mode<synchronous>, transform_indices = @transform_3, window_bounds = array<i64: 1, 128>}, {pipeline_mode = #tpu.pipeline_mode<synchronous>, transform_indices = @transform_4, window_bounds = array<i64: 128, 256>}, {pipeline_mode = #tpu.pipeline_mode<synchronous>, transform_indices = @transform_5, window_bounds = array<i64: 1, 256>}, {pipeline_mode = #tpu.pipeline_mode<synchronous>, transform_indices = @transform_6, window_bounds = array<i64: 128, 128>}, {pipeline_mode = #tpu.pipeline_mode<synchronous>, transform_indices = @transform_7, window_bounds = array<i64: 1, 128>}, {pipeline_mode = #tpu.pipeline_mode<synchronous>, transform_indices = @transform_8, window_bounds = array<i64: 1, 128>}, {pipeline_mode = #tpu.pipeline_mode<synchronous>, transform_indices = @transform_9, window_bounds = array<i64: 1, 128>}, {pipeline_mode = #tpu.pipeline_mode<synchronous>, transform_indices = @transform_10, window_bounds = array<i64: 128, 256>}, {pipeline_mode = #tpu.pipeline_mode<synchronous>, transform_indices = @transform_11, window_bounds = array<i64: 1, 256>}, {pipeline_mode = #tpu.pipeline_mode<synchronous>, transform_indices = @transform_12, window_bounds = array<i64: 256, 128>}, {pipeline_mode = #tpu.pipeline_mode<synchronous>, transform_indices = @transform_13, window_bounds = array<i64: 1, 128>}, {pipeline_mode = #tpu.pipeline_mode<synchronous>, transform_indices = @transform_14, window_bounds = array<i64: 1, 128>}, {pipeline_mode = #tpu.pipeline_mode<synchronous>, transform_indices = @transform_15, window_bounds = array<i64: 1, 128>}, {transform_indices = @transform_16, window_bounds = array<i64: 1, 8, 128>}]} {
    %c0_i32 = arith.constant 0 : i32
    %0 = arith.cmpi eq, %arg2, %c0_i32 : i32
    %1 = arith.extui %0 : i1 to i32
    %c0_i32_0 = arith.constant 0 : i32
    %2 = arith.cmpi ne, %1, %c0_i32_0 : i32
    scf.if %2 {
      %c0_79 = arith.constant 0 : index
      %c0_80 = arith.constant 0 : index
      %c0_81 = arith.constant 0 : index
      %145 = vector.load %arg4[%c0_79, %c0_80, %c0_81] : memref<1x16x128xf32, #tpu.memory_space<vmem>>, vector<1x16x128xf32>
      %146 = vector.shape_cast %145 : vector<1x16x128xf32> to vector<16x128xf32>
      %c0_82 = arith.constant 0 : index
      %c0_83 = arith.constant 0 : index
      %147 = vector.load %arg7[%c0_82, %c0_83] : memref<128x256xf32, #tpu.memory_space<vmem>>, vector<128x256xf32>
      %cst_84 = arith.constant dense<0.000000e+00> : vector<16x256xf32>
      %148 = tpu.matmul %146, %147, %cst_84 {dimension_numbers = #tpu.dot_dimension_numbers<[1], [0], [0], [1], [0, 0, 1, 1], [], []>} : vector<16x128xf32>, vector<128x256xf32>, vector<16x256xf32> -> vector<16x256xf32>
      %c0_85 = arith.constant 0 : index
      %c0_86 = arith.constant 0 : index
      %149 = vector.load %arg8[%c0_85, %c0_86] : memref<1x256xf32, #tpu.memory_space<vmem>>, vector<1x256xf32>
      %150 = vector.broadcast %149 : vector<1x256xf32> to vector<16x256xf32>
      %151 = arith.addf %148, %150 : vector<16x256xf32>
      %c0_87 = arith.constant 0 : index
      %c0_88 = arith.constant 0 : index
      %152 = vector.load %arg20[%c0_87, %c0_88] : memref<16x256xf32, #tpu.memory_space<vmem>>, vector<16x256xf32>
      tpu.vector_store %arg20[%c0_87, %c0_88], %151 {strides = array<i32>} : memref<16x256xf32, #tpu.memory_space<vmem>>, vector<16x256xf32>,
    } else {
    }
    %c0 = arith.constant 0 : index
    %c0_1 = arith.constant 0 : index
    %c0_2 = arith.constant 0 : index
    %3 = vector.load %arg3[%c0, %c0_1, %c0_2] : memref<1x8x128xf32, #tpu.memory_space<vmem>>, vector<1x8x128xf32>
    %4 = vector.shape_cast %3 : vector<1x8x128xf32> to vector<8x128xf32>
    %c0_3 = arith.constant 0 : index
    %c0_4 = arith.constant 0 : index
    %5 = vector.load %arg5[%c0_3, %c0_4] : memref<128x128xf32, #tpu.memory_space<vmem>>, vector<128x128xf32>
    %cst = arith.constant dense<0.000000e+00> : vector<8x128xf32>
    %6 = tpu.matmul %4, %5, %cst {dimension_numbers = #tpu.dot_dimension_numbers<[1], [0], [0], [1], [0, 0, 1, 1], [], []>} : vector<8x128xf32>, vector<128x128xf32>, vector<8x128xf32> -> vector<8x128xf32>
    %c0_5 = arith.constant 0 : index
    %c0_6 = arith.constant 0 : index
    %7 = vector.load %arg6[%c0_5, %c0_6] : memref<1x128xf32, #tpu.memory_space<vmem>>, vector<1x128xf32>
    %8 = vector.broadcast %7 : vector<1x128xf32> to vector<8x128xf32>
    %9 = arith.addf %6, %8 : vector<8x128xf32>
    %10 = vector.extract_strided_slice %9 {offsets = [0, 0], sizes = [8, 32], strides = [1, 1]} : vector<8x128xf32> to vector<8x32xf32>
    %c0_7 = arith.constant 0 : index
    %c0_8 = arith.constant 0 : index
    %11 = vector.load %arg20[%c0_7, %c0_8] : memref<16x256xf32, #tpu.memory_space<vmem>>, vector<16x32xf32>
    %c0_9 = arith.constant 0 : index
    %c128 = arith.constant 128 : index
    %12 = vector.load %arg20[%c0_9, %c128] : memref<16x256xf32, #tpu.memory_space<vmem>>, vector<16x32xf32>
    %cst_10 = arith.constant dense<0.000000e+00> : vector<8x16xf32>
    %13 = tpu.matmul %10, %11, %cst_10 {dimension_numbers = #tpu.dot_dimension_numbers<[1], [1], [0], [0], [0, 0, 1, 0], [], []>} : vector<8x32xf32>, vector<16x32xf32>, vector<8x16xf32> -> vector<8x16xf32>
    %cst_11 = arith.constant dense<0xFF800000> : vector<8xf32>
    %14 = vector.multi_reduction <maximumf>, %13, %cst_11 [1] : vector<8x16xf32> to vector<8xf32>
    %15 = vector.shape_cast %14 : vector<8xf32> to vector<8x1xf32>
    %16 = vector.broadcast %15 : vector<8x1xf32> to vector<8x16xf32>
    %17 = arith.subf %13, %16 : vector<8x16xf32>
    %18 = math.exp %17 : vector<8x16xf32>
    %cst_12 = arith.constant dense<0.000000e+00> : vector<8xf32>
    %19 = vector.multi_reduction <add>, %18, %cst_12 [1] : vector<8x16xf32> to vector<8xf32>
    %20 = vector.shape_cast %19 : vector<8xf32> to vector<8x1xf32>
    %21 = tpu.reciprocal %20 {approx = true} : vector<8x1xf32> -> vector<8x1xf32>
    %22 = vector.broadcast %21 : vector<8x1xf32> to vector<8x16xf32>
    %23 = arith.mulf %18, %22 : vector<8x16xf32>
    %cst_13 = arith.constant dense<0.000000e+00> : vector<8x32xf32>
    %24 = tpu.matmul %23, %12, %cst_13 {dimension_numbers = #tpu.dot_dimension_numbers<[1], [0], [0], [1], [0, 0, 1, 1], [], []>} : vector<8x16xf32>, vector<16x32xf32>, vector<8x32xf32> -> vector<8x32xf32>
    %c0_14 = arith.constant 0 : index
    %c0_15 = arith.constant 0 : index
    %25 = vector.load %arg21[%c0_14, %c0_15] : memref<8x128xf32, #tpu.memory_space<vmem>>, vector<8x32xf32>
    tpu.vector_store %arg21[%c0_14, %c0_15], %24 {strides = array<i32>} : memref<8x128xf32, #tpu.memory_space<vmem>>, vector<8x32xf32>,
    %26 = vector.extract_strided_slice %9 {offsets = [0, 32], sizes = [8, 32], strides = [1, 1]} : vector<8x128xf32> to vector<8x32xf32>
    %c0_16 = arith.constant 0 : index
    %c32 = arith.constant 32 : index
    %27 = vector.load %arg20[%c0_16, %c32] : memref<16x256xf32, #tpu.memory_space<vmem>>, vector<16x32xf32>
    %c0_17 = arith.constant 0 : index
    %c160 = arith.constant 160 : index
    %28 = vector.load %arg20[%c0_17, %c160] : memref<16x256xf32, #tpu.memory_space<vmem>>, vector<16x32xf32>
    %cst_18 = arith.constant dense<0.000000e+00> : vector<8x16xf32>
    %29 = tpu.matmul %26, %27, %cst_18 {dimension_numbers = #tpu.dot_dimension_numbers<[1], [1], [0], [0], [0, 0, 1, 0], [], []>} : vector<8x32xf32>, vector<16x32xf32>, vector<8x16xf32> -> vector<8x16xf32>
    %cst_19 = arith.constant dense<0xFF800000> : vector<8xf32>
    %30 = vector.multi_reduction <maximumf>, %29, %cst_19 [1] : vector<8x16xf32> to vector<8xf32>
    %31 = vector.shape_cast %30 : vector<8xf32> to vector<8x1xf32>
    %32 = vector.broadcast %31 : vector<8x1xf32> to vector<8x16xf32>
    %33 = arith.subf %29, %32 : vector<8x16xf32>
    %34 = math.exp %33 : vector<8x16xf32>
    %cst_20 = arith.constant dense<0.000000e+00> : vector<8xf32>
    %35 = vector.multi_reduction <add>, %34, %cst_20 [1] : vector<8x16xf32> to vector<8xf32>
    %36 = vector.shape_cast %35 : vector<8xf32> to vector<8x1xf32>
    %37 = tpu.reciprocal %36 {approx = true} : vector<8x1xf32> -> vector<8x1xf32>
    %38 = vector.broadcast %37 : vector<8x1xf32> to vector<8x16xf32>
    %39 = arith.mulf %34, %38 : vector<8x16xf32>
    %cst_21 = arith.constant dense<0.000000e+00> : vector<8x32xf32>
    %40 = tpu.matmul %39, %28, %cst_21 {dimension_numbers = #tpu.dot_dimension_numbers<[1], [0], [0], [1], [0, 0, 1, 1], [], []>} : vector<8x16xf32>, vector<16x32xf32>, vector<8x32xf32> -> vector<8x32xf32>
    %c0_22 = arith.constant 0 : index
    %c32_23 = arith.constant 32 : index
    %41 = vector.load %arg21[%c0_22, %c32_23] : memref<8x128xf32, #tpu.memory_space<vmem>>, vector<8x32xf32>
    tpu.vector_store %arg21[%c0_22, %c32_23], %40 {strides = array<i32>} : memref<8x128xf32, #tpu.memory_space<vmem>>, vector<8x32xf32>,
    %42 = vector.extract_strided_slice %9 {offsets = [0, 64], sizes = [8, 32], strides = [1, 1]} : vector<8x128xf32> to vector<8x32xf32>
    %c0_24 = arith.constant 0 : index
    %c64 = arith.constant 64 : index
    %43 = vector.load %arg20[%c0_24, %c64] : memref<16x256xf32, #tpu.memory_space<vmem>>, vector<16x32xf32>
    %c0_25 = arith.constant 0 : index
    %c192 = arith.constant 192 : index
    %44 = vector.load %arg20[%c0_25, %c192] : memref<16x256xf32, #tpu.memory_space<vmem>>, vector<16x32xf32>
    %cst_26 = arith.constant dense<0.000000e+00> : vector<8x16xf32>
    %45 = tpu.matmul %42, %43, %cst_26 {dimension_numbers = #tpu.dot_dimension_numbers<[1], [1], [0], [0], [0, 0, 1, 0], [], []>} : vector<8x32xf32>, vector<16x32xf32>, vector<8x16xf32> -> vector<8x16xf32>
    %cst_27 = arith.constant dense<0xFF800000> : vector<8xf32>
    %46 = vector.multi_reduction <maximumf>, %45, %cst_27 [1] : vector<8x16xf32> to vector<8xf32>
    %47 = vector.shape_cast %46 : vector<8xf32> to vector<8x1xf32>
    %48 = vector.broadcast %47 : vector<8x1xf32> to vector<8x16xf32>
    %49 = arith.subf %45, %48 : vector<8x16xf32>
    %50 = math.exp %49 : vector<8x16xf32>
    %cst_28 = arith.constant dense<0.000000e+00> : vector<8xf32>
    %51 = vector.multi_reduction <add>, %50, %cst_28 [1] : vector<8x16xf32> to vector<8xf32>
    %52 = vector.shape_cast %51 : vector<8xf32> to vector<8x1xf32>
    %53 = tpu.reciprocal %52 {approx = true} : vector<8x1xf32> -> vector<8x1xf32>
    %54 = vector.broadcast %53 : vector<8x1xf32> to vector<8x16xf32>
    %55 = arith.mulf %50, %54 : vector<8x16xf32>
    %cst_29 = arith.constant dense<0.000000e+00> : vector<8x32xf32>
    %56 = tpu.matmul %55, %44, %cst_29 {dimension_numbers = #tpu.dot_dimension_numbers<[1], [0], [0], [1], [0, 0, 1, 1], [], []>} : vector<8x16xf32>, vector<16x32xf32>, vector<8x32xf32> -> vector<8x32xf32>
    %c0_30 = arith.constant 0 : index
    %c64_31 = arith.constant 64 : index
    %57 = vector.load %arg21[%c0_30, %c64_31] : memref<8x128xf32, #tpu.memory_space<vmem>>, vector<8x32xf32>
    tpu.vector_store %arg21[%c0_30, %c64_31], %56 {strides = array<i32>} : memref<8x128xf32, #tpu.memory_space<vmem>>, vector<8x32xf32>,
    %58 = vector.extract_strided_slice %9 {offsets = [0, 96], sizes = [8, 32], strides = [1, 1]} : vector<8x128xf32> to vector<8x32xf32>
    %c0_32 = arith.constant 0 : index
    %c96 = arith.constant 96 : index
    %59 = vector.load %arg20[%c0_32, %c96] : memref<16x256xf32, #tpu.memory_space<vmem>>, vector<16x32xf32>
    %c0_33 = arith.constant 0 : index
    %c224 = arith.constant 224 : index
    %60 = vector.load %arg20[%c0_33, %c224] : memref<16x256xf32, #tpu.memory_space<vmem>>, vector<16x32xf32>
    %cst_34 = arith.constant dense<0.000000e+00> : vector<8x16xf32>
    %61 = tpu.matmul %58, %59, %cst_34 {dimension_numbers = #tpu.dot_dimension_numbers<[1], [1], [0], [0], [0, 0, 1, 0], [], []>} : vector<8x32xf32>, vector<16x32xf32>, vector<8x16xf32> -> vector<8x16xf32>
    %cst_35 = arith.constant dense<0xFF800000> : vector<8xf32>
    %62 = vector.multi_reduction <maximumf>, %61, %cst_35 [1] : vector<8x16xf32> to vector<8xf32>
    %63 = vector.shape_cast %62 : vector<8xf32> to vector<8x1xf32>
    %64 = vector.broadcast %63 : vector<8x1xf32> to vector<8x16xf32>
    %65 = arith.subf %61, %64 : vector<8x16xf32>
    %66 = math.exp %65 : vector<8x16xf32>
    %cst_36 = arith.constant dense<0.000000e+00> : vector<8xf32>
    %67 = vector.multi_reduction <add>, %66, %cst_36 [1] : vector<8x16xf32> to vector<8xf32>
    %68 = vector.shape_cast %67 : vector<8xf32> to vector<8x1xf32>
    %69 = tpu.reciprocal %68 {approx = true} : vector<8x1xf32> -> vector<8x1xf32>
    %70 = vector.broadcast %69 : vector<8x1xf32> to vector<8x16xf32>
    %71 = arith.mulf %66, %70 : vector<8x16xf32>
    %cst_37 = arith.constant dense<0.000000e+00> : vector<8x32xf32>
    %72 = tpu.matmul %71, %60, %cst_37 {dimension_numbers = #tpu.dot_dimension_numbers<[1], [0], [0], [1], [0, 0, 1, 1], [], []>} : vector<8x16xf32>, vector<16x32xf32>, vector<8x32xf32> -> vector<8x32xf32>
    %c0_38 = arith.constant 0 : index
    %c96_39 = arith.constant 96 : index
    %73 = vector.load %arg21[%c0_38, %c96_39] : memref<8x128xf32, #tpu.memory_space<vmem>>, vector<8x32xf32>
    tpu.vector_store %arg21[%c0_38, %c96_39], %72 {strides = array<i32>} : memref<8x128xf32, #tpu.memory_space<vmem>>, vector<8x32xf32>,
    %c0_40 = arith.constant 0 : index
    %c0_41 = arith.constant 0 : index
    %74 = vector.load %arg21[%c0_40, %c0_41] : memref<8x128xf32, #tpu.memory_space<vmem>>, vector<8x128xf32>
    %c0_42 = arith.constant 0 : index
    %c0_43 = arith.constant 0 : index
    %75 = vector.load %arg9[%c0_42, %c0_43] : memref<128x128xf32, #tpu.memory_space<vmem>>, vector<128x128xf32>
    %cst_44 = arith.constant dense<0.000000e+00> : vector<8x128xf32>
    %76 = tpu.matmul %74, %75, %cst_44 {dimension_numbers = #tpu.dot_dimension_numbers<[1], [0], [0], [1], [0, 0, 1, 1], [], []>} : vector<8x128xf32>, vector<128x128xf32>, vector<8x128xf32> -> vector<8x128xf32>
    %c0_45 = arith.constant 0 : index
    %c0_46 = arith.constant 0 : index
    %77 = vector.load %arg10[%c0_45, %c0_46] : memref<1x128xf32, #tpu.memory_space<vmem>>, vector<1x128xf32>
    %78 = vector.broadcast %77 : vector<1x128xf32> to vector<8x128xf32>
    %79 = arith.addf %76, %78 : vector<8x128xf32>
    %80 = arith.addf %79, %4 : vector<8x128xf32>
    %c0_47 = arith.constant 0 : index
    %c0_48 = arith.constant 0 : index
    %81 = vector.load %arg11[%c0_47, %c0_48] : memref<1x128xf32, #tpu.memory_space<vmem>>, vector<1x128xf32>
    %c0_49 = arith.constant 0 : index
    %c0_50 = arith.constant 0 : index
    %82 = vector.load %arg12[%c0_49, %c0_50] : memref<1x128xf32, #tpu.memory_space<vmem>>, vector<1x128xf32>
    %cst_51 = arith.constant dense<0.000000e+00> : vector<8xf32>
    %83 = vector.multi_reduction <add>, %80, %cst_51 [1] : vector<8x128xf32> to vector<8xf32>
    %84 = vector.shape_cast %83 : vector<8xf32> to vector<8x1xf32>
    %cst_52 = arith.constant 1.280000e+02 : f32
    %85 = vector.broadcast %cst_52 : f32 to vector<8x1xf32>
    %86 = arith.divf %84, %85 : vector<8x1xf32>
    %87 = vector.broadcast %86 : vector<8x1xf32> to vector<8x128xf32>
    %88 = arith.subf %80, %87 : vector<8x128xf32>
    %89 = arith.mulf %88, %88 : vector<8x128xf32>
    %cst_53 = arith.constant dense<0.000000e+00> : vector<8xf32>
    %90 = vector.multi_reduction <add>, %89, %cst_53 [1] : vector<8x128xf32> to vector<8xf32>
    %91 = vector.shape_cast %90 : vector<8xf32> to vector<8x1xf32>
    %cst_54 = arith.constant 1.280000e+02 : f32
    %92 = vector.broadcast %cst_54 : f32 to vector<8x1xf32>
    %93 = arith.divf %91, %92 : vector<8x1xf32>
    %cst_55 = arith.constant 9.99999974E-6 : f32
    %94 = vector.broadcast %cst_55 : f32 to vector<8x1xf32>
    %95 = arith.addf %93, %94 : vector<8x1xf32>
    %96 = math.rsqrt %95 : vector<8x1xf32>
    %97 = vector.broadcast %86 : vector<8x1xf32> to vector<8x128xf32>
    %98 = arith.subf %80, %97 : vector<8x128xf32>
    %99 = vector.broadcast %96 : vector<8x1xf32> to vector<8x128xf32>
    %100 = arith.mulf %98, %99 : vector<8x128xf32>
    %101 = vector.broadcast %81 : vector<1x128xf32> to vector<8x128xf32>
    %102 = arith.mulf %101, %100 : vector<8x128xf32>
    %103 = vector.broadcast %82 : vector<1x128xf32> to vector<8x128xf32>
    %104 = arith.addf %102, %103 : vector<8x128xf32>
    %c0_56 = arith.constant 0 : index
    %c0_57 = arith.constant 0 : index
    %105 = vector.load %arg13[%c0_56, %c0_57] : memref<128x256xf32, #tpu.memory_space<vmem>>, vector<128x256xf32>
    %cst_58 = arith.constant dense<0.000000e+00> : vector<8x256xf32>
    %106 = tpu.matmul %104, %105, %cst_58 {dimension_numbers = #tpu.dot_dimension_numbers<[1], [0], [0], [1], [0, 0, 1, 1], [], []>} : vector<8x128xf32>, vector<128x256xf32>, vector<8x256xf32> -> vector<8x256xf32>
    %c0_59 = arith.constant 0 : index
    %c0_60 = arith.constant 0 : index
    %107 = vector.load %arg14[%c0_59, %c0_60] : memref<1x256xf32, #tpu.memory_space<vmem>>, vector<1x256xf32>
    %108 = vector.broadcast %107 : vector<1x256xf32> to vector<8x256xf32>
    %109 = arith.addf %106, %108 : vector<8x256xf32>
    %cst_61 = arith.constant 0.000000e+00 : f32
    %110 = vector.broadcast %cst_61 : f32 to vector<8x256xf32>
    %111 = arith.maximumf %109, %110 : vector<8x256xf32>
    %c0_62 = arith.constant 0 : index
    %c0_63 = arith.constant 0 : index
    %112 = vector.load %arg15[%c0_62, %c0_63] : memref<256x128xf32, #tpu.memory_space<vmem>>, vector<256x128xf32>
    %cst_64 = arith.constant dense<0.000000e+00> : vector<8x128xf32>
    %113 = tpu.matmul %111, %112, %cst_64 {dimension_numbers = #tpu.dot_dimension_numbers<[1], [0], [0], [1], [0, 0, 1, 1], [], []>} : vector<8x256xf32>, vector<256x128xf32>, vector<8x128xf32> -> vector<8x128xf32>
    %c0_65 = arith.constant 0 : index
    %c0_66 = arith.constant 0 : index
    %114 = vector.load %arg16[%c0_65, %c0_66] : memref<1x128xf32, #tpu.memory_space<vmem>>, vector<1x128xf32>
    %115 = vector.broadcast %114 : vector<1x128xf32> to vector<8x128xf32>
    %116 = arith.addf %113, %115 : vector<8x128xf32>
    %117 = arith.addf %116, %104 : vector<8x128xf32>
    %c0_67 = arith.constant 0 : index
    %c0_68 = arith.constant 0 : index
    %118 = vector.load %arg17[%c0_67, %c0_68] : memref<1x128xf32, #tpu.memory_space<vmem>>, vector<1x128xf32>
    %c0_69 = arith.constant 0 : index
    %c0_70 = arith.constant 0 : index
    %119 = vector.load %arg18[%c0_69, %c0_70] : memref<1x128xf32, #tpu.memory_space<vmem>>, vector<1x128xf32>
    %cst_71 = arith.constant dense<0.000000e+00> : vector<8xf32>
    %120 = vector.multi_reduction <add>, %117, %cst_71 [1] : vector<8x128xf32> to vector<8xf32>
    %121 = vector.shape_cast %120 : vector<8xf32> to vector<8x1xf32>
    %cst_72 = arith.constant 1.280000e+02 : f32
    %122 = vector.broadcast %cst_72 : f32 to vector<8x1xf32>
    %123 = arith.divf %121, %122 : vector<8x1xf32>
    %124 = vector.broadcast %123 : vector<8x1xf32> to vector<8x128xf32>
    %125 = arith.subf %117, %124 : vector<8x128xf32>
    %126 = arith.mulf %125, %125 : vector<8x128xf32>
    %cst_73 = arith.constant dense<0.000000e+00> : vector<8xf32>
    %127 = vector.multi_reduction <add>, %126, %cst_73 [1] : vector<8x128xf32> to vector<8xf32>
    %128 = vector.shape_cast %127 : vector<8xf32> to vector<8x1xf32>
    %cst_74 = arith.constant 1.280000e+02 : f32
    %129 = vector.broadcast %cst_74 : f32 to vector<8x1xf32>
    %130 = arith.divf %128, %129 : vector<8x1xf32>
    %cst_75 = arith.constant 9.99999974E-6 : f32
    %131 = vector.broadcast %cst_75 : f32 to vector<8x1xf32>
    %132 = arith.addf %130, %131 : vector<8x1xf32>
    %133 = math.rsqrt %132 : vector<8x1xf32>
    %134 = vector.broadcast %123 : vector<8x1xf32> to vector<8x128xf32>
    %135 = arith.subf %117, %134 : vector<8x128xf32>
    %136 = vector.broadcast %133 : vector<8x1xf32> to vector<8x128xf32>
    %137 = arith.mulf %135, %136 : vector<8x128xf32>
    %138 = vector.broadcast %118 : vector<1x128xf32> to vector<8x128xf32>
    %139 = arith.mulf %138, %137 : vector<8x128xf32>
    %140 = vector.broadcast %119 : vector<1x128xf32> to vector<8x128xf32>
    %141 = arith.addf %139, %140 : vector<8x128xf32>
    %c0_76 = arith.constant 0 : index
    %c0_77 = arith.constant 0 : index
    %c0_78 = arith.constant 0 : index
    %142 = vector.load %arg19[%c0_76, %c0_77, %c0_78] : memref<1x8x128xf32, #tpu.memory_space<vmem>>, vector<1x8x128xf32>
    %143 = vector.shape_cast %142 : vector<1x8x128xf32> to vector<8x128xf32>
    %144 = vector.shape_cast %141 : vector<8x128xf32> to vector<1x8x128xf32>
    tpu.vector_store %arg19[%c0_76, %c0_77, %c0_78], %144 {strides = array<i32>} : memref<1x8x128xf32, #tpu.memory_space<vmem>>, vector<1x8x128xf32>,
    return
  }
  func.func @transform_0(%arg0: i32, %arg1: i32, %arg2: i32) -> (i32, i32, i32) {
    %c2_i32 = arith.constant 2 : i32
    %0 = arith.muli %arg1, %c2_i32 : i32
    %1 = arith.addi %0, %arg2 : i32
    %c0_i32 = arith.constant 0 : i32
    %c0_i32_0 = arith.constant 0 : i32
    return %arg0, %1, %c0_i32 : i32, i32, i32
  }
  func.func @transform_1(%arg0: i32, %arg1: i32, %arg2: i32) -> (i32, i32, i32) {
    %c0_i32 = arith.constant 0 : i32
    %c0_i32_0 = arith.constant 0 : i32
    %c0_i32_1 = arith.constant 0 : i32
    return %arg0, %c0_i32, %c0_i32_0 : i32, i32, i32
  }
  func.func @transform_2(%arg0: i32, %arg1: i32, %arg2: i32) -> (i32, i32) {
    %c0_i32 = arith.constant 0 : i32
    %c0_i32_0 = arith.constant 0 : i32
    %c0_i32_1 = arith.constant 0 : i32
    return %c0_i32, %c0_i32_0 : i32, i32
  }
  func.func @transform_3(%arg0: i32, %arg1: i32, %arg2: i32) -> (i32, i32) {
    %c0_i32 = arith.constant 0 : i32
    %c0_i32_0 = arith.constant 0 : i32
    %c0_i32_1 = arith.constant 0 : i32
    return %c0_i32, %c0_i32_0 : i32, i32
  }
  func.func @transform_4(%arg0: i32, %arg1: i32, %arg2: i32) -> (i32, i32) {
    %c0_i32 = arith.constant 0 : i32
    %c0_i32_0 = arith.constant 0 : i32
    %c0_i32_1 = arith.constant 0 : i32
    return %c0_i32, %c0_i32_0 : i32, i32
  }
  func.func @transform_5(%arg0: i32, %arg1: i32, %arg2: i32) -> (i32, i32) {
    %c0_i32 = arith.constant 0 : i32
    %c0_i32_0 = arith.constant 0 : i32
    %c0_i32_1 = arith.constant 0 : i32
    return %c0_i32, %c0_i32_0 : i32, i32
  }
  func.func @transform_6(%arg0: i32, %arg1: i32, %arg2: i32) -> (i32, i32) {
    %c0_i32 = arith.constant 0 : i32
    %c0_i32_0 = arith.constant 0 : i32
    %c0_i32_1 = arith.constant 0 : i32
    return %c0_i32, %c0_i32_0 : i32, i32
  }
  func.func @transform_7(%arg0: i32, %arg1: i32, %arg2: i32) -> (i32, i32) {
    %c0_i32 = arith.constant 0 : i32
    %c0_i32_0 = arith.constant 0 : i32
    %c0_i32_1 = arith.constant 0 : i32
    return %c0_i32, %c0_i32_0 : i32, i32
  }
  func.func @transform_8(%arg0: i32, %arg1: i32, %arg2: i32) -> (i32, i32) {
    %c0_i32 = arith.constant 0 : i32
    %c0_i32_0 = arith.constant 0 : i32
    %c0_i32_1 = arith.constant 0 : i32
    return %c0_i32, %c0_i32_0 : i32, i32
  }
  func.func @transform_9(%arg0: i32, %arg1: i32, %arg2: i32) -> (i32, i32) {
    %c0_i32 = arith.constant 0 : i32
    %c0_i32_0 = arith.constant 0 : i32
    %c0_i32_1 = arith.constant 0 : i32
    return %c0_i32, %c0_i32_0 : i32, i32
  }
  func.func @transform_10(%arg0: i32, %arg1: i32, %arg2: i32) -> (i32, i32) {
    %c0_i32 = arith.constant 0 : i32
    %c0_i32_0 = arith.constant 0 : i32
    %c0_i32_1 = arith.constant 0 : i32
    return %c0_i32, %c0_i32_0 : i32, i32
  }
  func.func @transform_11(%arg0: i32, %arg1: i32, %arg2: i32) -> (i32, i32) {
    %c0_i32 = arith.constant 0 : i32
    %c0_i32_0 = arith.constant 0 : i32
    %c0_i32_1 = arith.constant 0 : i32
    return %c0_i32, %c0_i32_0 : i32, i32
  }
  func.func @transform_12(%arg0: i32, %arg1: i32, %arg2: i32) -> (i32, i32) {
    %c0_i32 = arith.constant 0 : i32
    %c0_i32_0 = arith.constant 0 : i32
    %c0_i32_1 = arith.constant 0 : i32
    return %c0_i32, %c0_i32_0 : i32, i32
  }
  func.func @transform_13(%arg0: i32, %arg1: i32, %arg2: i32) -> (i32, i32) {
    %c0_i32 = arith.constant 0 : i32
    %c0_i32_0 = arith.constant 0 : i32
    %c0_i32_1 = arith.constant 0 : i32
    return %c0_i32, %c0_i32_0 : i32, i32
  }
  func.func @transform_14(%arg0: i32, %arg1: i32, %arg2: i32) -> (i32, i32) {
    %c0_i32 = arith.constant 0 : i32
    %c0_i32_0 = arith.constant 0 : i32
    %c0_i32_1 = arith.constant 0 : i32
    return %c0_i32, %c0_i32_0 : i32, i32
  }
  func.func @transform_15(%arg0: i32, %arg1: i32, %arg2: i32) -> (i32, i32) {
    %c0_i32 = arith.constant 0 : i32
    %c0_i32_0 = arith.constant 0 : i32
    %c0_i32_1 = arith.constant 0 : i32
    return %c0_i32, %c0_i32_0 : i32, i32
  }
  func.func @transform_16(%arg0: i32, %arg1: i32, %arg2: i32) -> (i32, i32, i32) {
    %c2_i32 = arith.constant 2 : i32
    %0 = arith.muli %arg1, %c2_i32 : i32
    %1 = arith.addi %0, %arg2 : i32
    %c0_i32 = arith.constant 0 : i32
    %c0_i32_0 = arith.constant 0 : i32
    return %arg0, %1, %c0_i32 : i32, i32, i32
  }
}

</mosaic_0001>

<llo_original>
// kernel: tpu_custom_call.1
$region0: #{tpu_custom_call.1}
  #allocation0 [shape = 'u32[]', space=smem, size = 0x4, offset = 0x4, fixed_abs, tag = 'smem constant byte address 0x4 - core index']
  #allocation1 [shape = 'u32[144,128]{1,0:T(1,128)}', space=vmem, size = 0x12000, scoped, tag = 'internal scratch']
  #allocation2 [shape = 'f32[16,256]{1,0:T(8,128)}', space=vmem, size = 0x4000, scoped, tag = 'scratch operand']
  #allocation3 [shape = 'f32[8,128]{1,0:T(8,128)}', space=vmem, size = 0x1000, scoped, tag = 'scratch operand']
  %s0 = inlined_call_operand.hbm [shape: f32[2,16,128], index: 0, kind: input, shape index: {}]
  %s1 = inlined_call_operand.hbm [shape: f32[2,16,128], index: 1, kind: input, shape index: {}]
  %s2 = inlined_call_operand.hbm [shape: f32[128,128], index: 2, kind: input, shape index: {}]
  %s3 = inlined_call_operand.vmem [shape: f32[1,128], index: 3, kind: input, shape index: {}]
  %s4 = inlined_call_operand.hbm [shape: f32[128,256], index: 4, kind: input, shape index: {}]
  %s5 = inlined_call_operand.vmem [shape: f32[1,256], index: 5, kind: input, shape index: {}]
  %s6 = inlined_call_operand.hbm [shape: f32[128,128], index: 6, kind: input, shape index: {}]
  %s7 = inlined_call_operand.vmem [shape: f32[1,128], index: 7, kind: input, shape index: {}]
  %s8 = inlined_call_operand.vmem [shape: f32[1,128], index: 8, kind: input, shape index: {}]
  %s9 = inlined_call_operand.vmem [shape: f32[1,128], index: 9, kind: input, shape index: {}]
  %s10 = inlined_call_operand.hbm [shape: f32[128,256], index: 10, kind: input, shape index: {}]
  %s11 = inlined_call_operand.vmem [shape: f32[1,256], index: 11, kind: input, shape index: {}]
  %s12 = inlined_call_operand.hbm [shape: f32[256,128], index: 12, kind: input, shape index: {}]
  %s13 = inlined_call_operand.vmem [shape: f32[1,128], index: 13, kind: input, shape index: {}]
  %s14 = inlined_call_operand.vmem [shape: f32[1,128], index: 14, kind: input, shape index: {}]
  %s15 = inlined_call_operand.vmem [shape: f32[1,128], index: 15, kind: input, shape index: {}]
  %s16 = inlined_call_operand.hbm [shape: f32[2,16,128], index: 16, kind: output, shape index: {}]
  %s17 = sld [smem:[#allocation0]]
  $region129: #{tpu_custom_call.1} parent=0
    _
  %s19 = ssub.s32 1, %s17
  %s20 = scalar_select 0, %s19, %s17
  $region1: #{tpu_custom_call.1} parent=0
    #allocation4 [shape = 'u8[8192]{0}', space=vmem, size = 0x2000, scoped, tag = 'input window, operand 0']
    #allocation5 [shape = 's32[2]{0}', space=sflag, size = 0x8, scoped, tag = 'scoped memory for tpu_custom_call.1']
    #allocation6 [shape = 's32[2]{0}', space=sflag, size = 0x8, scoped, tag = 'scoped memory for tpu_custom_call.1']
    #allocation7 [shape = 'u8[8192]{0}', space=vmem, size = 0x2000, scoped, tag = 'input window, operand 1, single buffered']
    #allocation8 [shape = 's32[1]{0}', space=sflag, size = 0x4, scoped, tag = 'scoped memory for tpu_custom_call.1']
    #allocation9 [shape = 'u8[65536]{0}', space=vmem, size = 0x10000, scoped, tag = 'input window, operand 2, single buffered']
    #allocation10 [shape = 'u8[131072]{0}', space=vmem, size = 0x20000, scoped, tag = 'input window, operand 4, single buffered']
    #allocation11 [shape = 's32[1]{0}', space=sflag, size = 0x4, scoped, tag = 'scoped memory for tpu_custom_call.1']
    #allocation12 [shape = 'u8[65536]{0}', space=vmem, size = 0x10000, scoped, tag = 'input window, operand 6, single buffered']
    #allocation13 [shape = 'u8[131072]{0}', space=vmem, size = 0x20000, scoped, tag = 'input window, operand 10, single buffered']
    #allocation14 [shape = 's32[1]{0}', space=sflag, size = 0x4, scoped, tag = 'scoped memory for tpu_custom_call.1']
    #allocation15 [shape = 'u8[131072]{0}', space=vmem, size = 0x20000, scoped, tag = 'input window, operand 12, single buffered']
    #allocation16 [shape = 'u8[8192]{0}', space=vmem, size = 0x2000, scoped, tag = 'output window, operand 0']
    %21 = vsyncpa [#allocation5], 0
    %s22 = scalar_lea.sflag [#allocation5], 1
    %23 = vsyncpa %s22, 0
    %24 = vsyncpa [#allocation8], 0
    %25 = vsyncpa [#allocation11], 0
    %26 = vsyncpa [#allocation14], 0
    %27 = vsyncpa [#allocation6], 0
    %s28 = scalar_lea.sflag [#allocation6], 1
    %29 = vsyncpa %s28, 0
    loop: start=0, step=1, limit=6
    $region2: #{tpu_custom_call.1} parent=1 // loop_pre_header
      _
    $region3: #{tpu_custom_call.1} parent=1 // loop_header
      %s31 = sphi 0, %s35
      %p32 = scmp.ge.s32.totalorder %s31, 6
      %s38 = sphi 0, %s57
      %s39 = sphi 0, %s53
      %s40 = sphi 0, %s49
      %s41 = sphi 0, %s38
      %s42 = sphi 0, %s39
      %s43 = sphi 0, %s40
      %s44 = sphi 0, %s41
      %s45 = sphi 0, %s42
      %s46 = sphi 0, %s43
      %s66 = sphi 0, %s68
      %s69 = sphi 0, %s66
      %s70 = sphi 0, %s69
      %s86 = sphi 0, %s70
      %s92 = sphi 0, %s94
      %s95 = sphi 0, %s92
      %s96 = sphi 0, %s95
      %s112 = sphi 0, %s96
      %s116 = sphi 0, %s116
      %s118 = sphi 0, %s116
      %s119 = sphi 0, %s118
      %s133 = sphi 0, %s119
      %s137 = sphi 0, %s137
      %s139 = sphi 0, %s137
      %s140 = sphi 0, %s139
      %s154 = sphi 0, %s140
      %s158 = sphi 0, %s158
      %s160 = sphi 0, %s158
      %s161 = sphi 0, %s160
      %s175 = sphi 0, %s161
      %s179 = sphi 0, %s179
      %s181 = sphi 0, %s179
      %s182 = sphi 0, %s181
      %s196 = sphi 0, %s182
      %s200 = sphi 0, %s200
      %s202 = sphi 0, %s200
      %s203 = sphi 0, %s202
      %s217 = sphi 0, %s203
      %s221 = sphi 0, %s221
      %s223 = sphi 0, %s221
      %s224 = sphi 0, %s223
      %s238 = sphi 0, %s224
      %s242 = sphi 0, %s242
      %s244 = sphi 0, %s242
      %s245 = sphi 0, %s244
      %s259 = sphi 0, %s245
      %s263 = sphi 0, %s263
      %s265 = sphi 0, %s263
      %s266 = sphi 0, %s265
      %s280 = sphi 0, %s266
      %s284 = sphi 0, %s284
      %s286 = sphi 0, %s284
      %s287 = sphi 0, %s286
      %s301 = sphi 0, %s287
      %s305 = sphi 0, %s305
      %s307 = sphi 0, %s305
      %s308 = sphi 0, %s307
      %s322 = sphi 0, %s308
      %s326 = sphi 0, %s326
      %s328 = sphi 0, %s326
      %s329 = sphi 0, %s328
      %s343 = sphi 0, %s329
      %s347 = sphi 0, %s347
      %s349 = sphi 0, %s347
      %s350 = sphi 0, %s349
      %s364 = sphi 0, %s350
      %s368 = sphi 0, %s368
      %s370 = sphi 0, %s368
      %s371 = sphi 0, %s370
      %s385 = sphi 0, %s371
      %s389 = sphi 0, %s389
      %s391 = sphi 0, %s389
      %s392 = sphi 0, %s391
      %s406 = sphi 0, %s392
      %s418 = sphi 0, %s420
      %s421 = sphi 0, %s418
      %s422 = sphi 0, %s421
      %s438 = sphi 0, %s422
    $region4: #{tpu_custom_call.1} parent=1 // loop_header_branch
      %34 = sbr.rel (%p32) target = $region8
    $region5: #{tpu_custom_call.1} parent=1 // loop_body
      %s36 = ssub.s32 %s31, 1
      %s37 = ssub.s32 %s31, 2
      %s47 = sadd.s32 1, %s40
      %p48 = scmp.ge.s32.totalorder %s47, 2
      %s49 = scalar_select %p48, 0, %s47
      %s50 = sadd.s32 1, %s39
      %s51 = scalar_select %p48, %s50, %s39
      %p52 = scmp.ge.s32.totalorder %s51, 1
      %s53 = scalar_select %p52, 0, %s51
      %s54 = sadd.s32 1, %s38
      %s55 = scalar_select %p52, %s54, %s38
      %p56 = scmp.ge.s32.totalorder %s55, 2
      %s57 = scalar_select %p56, 0, %s55
      %s58 = smul.u32 %s39, 2
      %s59 = sadd.s32 %s58, %s40
      %s60 = smul.u32 %s53, 2
      %s61 = sadd.s32 %s60, %s49
      %s62 = ssub.s32 %s38, %s57
      %s63 = ssub.s32 %s59, %s61
      %s64 = sor.u32 %s62, %s63
      %p65 = scmp.eq.s32.totalorder %s64, 0
      %s67 = sadd.s32 %s66, 1
      %s68 = scalar_select %p65, %s66, %s67
      %p71 = pneg %p65
      %p72 = scmp.eq.s32.totalorder %s31, 3
      %p73 = por %p71, %p72
      %p74 = scmp.ne.s32.totalorder %s66, %s69
      %p75 = scmp.eq.s32.totalorder %s31, 0
      %p76 = por %p74, %p75
      %p77 = scmp.ne.s32.totalorder %s66, %s69
      %p78 = scmp.eq.s32.totalorder %s36, 3
      %p79 = por %p77, %p78
      %p80 = scmp.ne.s32.totalorder %s69, %s70
      %p81 = scmp.eq.s32.totalorder %s36, 0
      %p82 = por %p80, %p81
      %p83 = scmp.ne.s32.totalorder %s69, %s70
      %p84 = scmp.eq.s32.totalorder %s37, 3
      %p85 = por %p83, %p84
      %p87 = scmp.ne.s32.totalorder %s70, %s86
      %p88 = scmp.eq.s32.totalorder %s37, 0
      %p89 = por %p87, %p88
      %s90 = ssub.s32 %s38, %s57
      %p91 = scmp.eq.s32.totalorder %s90, 0
      %s93 = sadd.s32 %s92, 1
      %s94 = scalar_select %p91, %s92, %s93
      %p97 = pneg %p91
      %p98 = scmp.eq.s32.totalorder %s31, 3
      %p99 = por %p97, %p98
      %p100 = scmp.ne.s32.totalorder %s92, %s95
      %p101 = scmp.eq.s32.totalorder %s31, 0
      %p102 = por %p100, %p101
      %p103 = scmp.ne.s32.totalorder %s92, %s95
      %p104 = scmp.eq.s32.totalorder %s36, 3
      %p105 = por %p103, %p104
      %p106 = scmp.ne.s32.totalorder %s95, %s96
      %p107 = scmp.eq.s32.totalorder %s36, 0
      %p108 = por %p106, %p107
      %p109 = scmp.ne.s32.totalorder %s95, %s96
      %p110 = scmp.eq.s32.totalorder %s37, 3
      %p111 = por %p109, %p110
      %p113 = scmp.ne.s32.totalorder %s96, %s112
      %p114 = scmp.eq.s32.totalorder %s37, 0
      %p115 = por %p113, %p114
      %s117 = sadd.s32 %s116, 1
      %p120 = scmp.eq.s32.totalorder %s31, 3
      %p121 = scmp.ne.s32.totalorder %s116, %s118
      %p122 = scmp.eq.s32.totalorder %s31, 0
      %p123 = por %p121, %p122
      %p124 = scmp.ne.s32.totalorder %s116, %s118
      %p125 = scmp.eq.s32.totalorder %s36, 3
      %p126 = por %p124, %p125
      %p127 = scmp.ne.s32.totalorder %s118, %s119
      %p128 = scmp.eq.s32.totalorder %s36, 0
      %p129 = por %p127, %p128
      %p130 = scmp.ne.s32.totalorder %s118, %s119
      %p131 = scmp.eq.s32.totalorder %s37, 3
      %p132 = por %p130, %p131
      %p134 = scmp.ne.s32.totalorder %s119, %s133
      %p135 = scmp.eq.s32.totalorder %s37, 0
      %p136 = por %p134, %p135
      %s138 = sadd.s32 %s137, 1
      %p141 = scmp.eq.s32.totalorder %s31, 3
      %p142 = scmp.ne.s32.totalorder %s137, %s139
      %p143 = scmp.eq.s32.totalorder %s31, 0
      %p144 = por %p142, %p143
      %p145 = scmp.ne.s32.totalorder %s137, %s139
      %p146 = scmp.eq.s32.totalorder %s36, 3
      %p147 = por %p145, %p146
      %p148 = scmp.ne.s32.totalorder %s139, %s140
      %p149 = scmp.eq.s32.totalorder %s36, 0
      %p150 = por %p148, %p149
      %p151 = scmp.ne.s32.totalorder %s139, %s140
      %p152 = scmp.eq.s32.totalorder %s37, 3
      %p153 = por %p151, %p152
      %p155 = scmp.ne.s32.totalorder %s140, %s154
      %p156 = scmp.eq.s32.totalorder %s37, 0
      %p157 = por %p155, %p156
      %s159 = sadd.s32 %s158, 1
      %p162 = scmp.eq.s32.totalorder %s31, 3
      %p163 = scmp.ne.s32.totalorder %s158, %s160
      %p164 = scmp.eq.s32.totalorder %s31, 0
      %p165 = por %p163, %p164
      %p166 = scmp.ne.s32.totalorder %s158, %s160
      %p167 = scmp.eq.s32.totalorder %s36, 3
      %p168 = por %p166, %p167
      %p169 = scmp.ne.s32.totalorder %s160, %s161
      %p170 = scmp.eq.s32.totalorder %s36, 0
      %p171 = por %p169, %p170
      %p172 = scmp.ne.s32.totalorder %s160, %s161
      %p173 = scmp.eq.s32.totalorder %s37, 3
      %p174 = por %p172, %p173
      %p176 = scmp.ne.s32.totalorder %s161, %s175
      %p177 = scmp.eq.s32.totalorder %s37, 0
      %p178 = por %p176, %p177
      %s180 = sadd.s32 %s179, 1
      %p183 = scmp.eq.s32.totalorder %s31, 3
      %p184 = scmp.ne.s32.totalorder %s179, %s181
      %p185 = scmp.eq.s32.totalorder %s31, 0
      %p186 = por %p184, %p185
      %p187 = scmp.ne.s32.totalorder %s179, %s181
      %p188 = scmp.eq.s32.totalorder %s36, 3
      %p189 = por %p187, %p188
      %p190 = scmp.ne.s32.totalorder %s181, %s182
      %p191 = scmp.eq.s32.totalorder %s36, 0
      %p192 = por %p190, %p191
      %p193 = scmp.ne.s32.totalorder %s181, %s182
      %p194 = scmp.eq.s32.totalorder %s37, 3
      %p195 = por %p193, %p194
      %p197 = scmp.ne.s32.totalorder %s182, %s196
      %p198 = scmp.eq.s32.totalorder %s37, 0
      %p199 = por %p197, %p198
      %s201 = sadd.s32 %s200, 1
      %p204 = scmp.eq.s32.totalorder %s31, 3
      %p205 = scmp.ne.s32.totalorder %s200, %s202
      %p206 = scmp.eq.s32.totalorder %s31, 0
      %p207 = por %p205, %p206
      %p208 = scmp.ne.s32.totalorder %s200, %s202
      %p209 = scmp.eq.s32.totalorder %s36, 3
      %p210 = por %p208, %p209
      %p211 = scmp.ne.s32.totalorder %s202, %s203
      %p212 = scmp.eq.s32.totalorder %s36, 0
      %p213 = por %p211, %p212
      %p214 = scmp.ne.s32.totalorder %s202, %s203
      %p215 = scmp.eq.s32.totalorder %s37, 3
      %p216 = por %p214, %p215
      %p218 = scmp.ne.s32.totalorder %s203, %s217
      %p219 = scmp.eq.s32.totalorder %s37, 0
      %p220 = por %p218, %p219
      %s222 = sadd.s32 %s221, 1
      %p225 = scmp.eq.s32.totalorder %s31, 3
      %p226 = scmp.ne.s32.totalorder %s221, %s223
      %p227 = scmp.eq.s32.totalorder %s31, 0
      %p228 = por %p226, %p227
      %p229 = scmp.ne.s32.totalorder %s221, %s223
      %p230 = scmp.eq.s32.totalorder %s36, 3
      %p231 = por %p229, %p230
      %p232 = scmp.ne.s32.totalorder %s223, %s224
      %p233 = scmp.eq.s32.totalorder %s36, 0
      %p234 = por %p232, %p233
      %p235 = scmp.ne.s32.totalorder %s223, %s224
      %p236 = scmp.eq.s32.totalorder %s37, 3
      %p237 = por %p235, %p236
      %p239 = scmp.ne.s32.totalorder %s224, %s238
      %p240 = scmp.eq.s32.totalorder %s37, 0
      %p241 = por %p239, %p240
      %s243 = sadd.s32 %s242, 1
      %p246 = scmp.eq.s32.totalorder %s31, 3
      %p247 = scmp.ne.s32.totalorder %s242, %s244
      %p248 = scmp.eq.s32.totalorder %s31, 0
      %p249 = por %p247, %p248
      %p250 = scmp.ne.s32.totalorder %s242, %s244
      %p251 = scmp.eq.s32.totalorder %s36, 3
      %p252 = por %p250, %p251
      %p253 = scmp.ne.s32.totalorder %s244, %s245
      %p254 = scmp.eq.s32.totalorder %s36, 0
      %p255 = por %p253, %p254
      %p256 = scmp.ne.s32.totalorder %s244, %s245
      %p257 = scmp.eq.s32.totalorder %s37, 3
      %p258 = por %p256, %p257
      %p260 = scmp.ne.s32.totalorder %s245, %s259
      %p261 = scmp.eq.s32.totalorder %s37, 0
      %p262 = por %p260, %p261
      %s264 = sadd.s32 %s263, 1
      %p267 = scmp.eq.s32.totalorder %s31, 3
      %p268 = scmp.ne.s32.totalorder %s263, %s265
      %p269 = scmp.eq.s32.totalorder %s31, 0
      %p270 = por %p268, %p269
      %p271 = scmp.ne.s32.totalorder %s263, %s265
      %p272 = scmp.eq.s32.totalorder %s36, 3
      %p273 = por %p271, %p272
      %p274 = scmp.ne.s32.totalorder %s265, %s266
      %p275 = scmp.eq.s32.totalorder %s36, 0
      %p276 = por %p274, %p275
      %p277 = scmp.ne.s32.totalorder %s265, %s266
      %p278 = scmp.eq.s32.totalorder %s37, 3
      %p279 = por %p277, %p278
      %p281 = scmp.ne.s32.totalorder %s266, %s280
      %p282 = scmp.eq.s32.totalorder %s37, 0
      %p283 = por %p281, %p282
      %s285 = sadd.s32 %s284, 1
      %p288 = scmp.eq.s32.totalorder %s31, 3
      %p289 = scmp.ne.s32.totalorder %s284, %s286
      %p290 = scmp.eq.s32.totalorder %s31, 0
      %p291 = por %p289, %p290
      %p292 = scmp.ne.s32.totalorder %s284, %s286
      %p293 = scmp.eq.s32.totalorder %s36, 3
      %p294 = por %p292, %p293
      %p295 = scmp.ne.s32.totalorder %s286, %s287
      %p296 = scmp.eq.s32.totalorder %s36, 0
      %p297 = por %p295, %p296
      %p298 = scmp.ne.s32.totalorder %s286, %s287
      %p299 = scmp.eq.s32.totalorder %s37, 3
      %p300 = por %p298, %p299
      %p302 = scmp.ne.s32.totalorder %s287, %s301
      %p303 = scmp.eq.s32.totalorder %s37, 0
      %p304 = por %p302, %p303
      %s306 = sadd.s32 %s305, 1
      %p309 = scmp.eq.s32.totalorder %s31, 3
      %p310 = scmp.ne.s32.totalorder %s305, %s307
      %p311 = scmp.eq.s32.totalorder %s31, 0
      %p312 = por %p310, %p311
      %p313 = scmp.ne.s32.totalorder %s305, %s307
      %p314 = scmp.eq.s32.totalorder %s36, 3
      %p315 = por %p313, %p314
      %p316 = scmp.ne.s32.totalorder %s307, %s308
      %p317 = scmp.eq.s32.totalorder %s36, 0
      %p318 = por %p316, %p317
      %p319 = scmp.ne.s32.totalorder %s307, %s308
      %p320 = scmp.eq.s32.totalorder %s37, 3
      %p321 = por %p319, %p320
      %p323 = scmp.ne.s32.totalorder %s308, %s322
      %p324 = scmp.eq.s32.totalorder %s37, 0
      %p325 = por %p323, %p324
      %s327 = sadd.s32 %s326, 1
      %p330 = scmp.eq.s32.totalorder %s31, 3
      %p331 = scmp.ne.s32.totalorder %s326, %s328
      %p332 = scmp.eq.s32.totalorder %s31, 0
      %p333 = por %p331, %p332
      %p334 = scmp.ne.s32.totalorder %s326, %s328
      %p335 = scmp.eq.s32.totalorder %s36, 3
      %p336 = por %p334, %p335
      %p337 = scmp.ne.s32.totalorder %s328, %s329
      %p338 = scmp.eq.s32.totalorder %s36, 0
      %p339 = por %p337, %p338
      %p340 = scmp.ne.s32.totalorder %s328, %s329
      %p341 = scmp.eq.s32.totalorder %s37, 3
      %p342 = por %p340, %p341
      %p344 = scmp.ne.s32.totalorder %s329, %s343
      %p345 = scmp.eq.s32.totalorder %s37, 0
      %p346 = por %p344, %p345
      %s348 = sadd.s32 %s347, 1
      %p351 = scmp.eq.s32.totalorder %s31, 3
      %p352 = scmp.ne.s32.totalorder %s347, %s349
      %p353 = scmp.eq.s32.totalorder %s31, 0
      %p354 = por %p352, %p353
      %p355 = scmp.ne.s32.totalorder %s347, %s349
      %p356 = scmp.eq.s32.totalorder %s36, 3
      %p357 = por %p355, %p356
      %p358 = scmp.ne.s32.totalorder %s349, %s350
      %p359 = scmp.eq.s32.totalorder %s36, 0
      %p360 = por %p358, %p359
      %p361 = scmp.ne.s32.totalorder %s349, %s350
      %p362 = scmp.eq.s32.totalorder %s37, 3
      %p363 = por %p361, %p362
      %p365 = scmp.ne.s32.totalorder %s350, %s364
      %p366 = scmp.eq.s32.totalorder %s37, 0
      %p367 = por %p365, %p366
      %s369 = sadd.s32 %s368, 1
      %p372 = scmp.eq.s32.totalorder %s31, 3
      %p373 = scmp.ne.s32.totalorder %s368, %s370
      %p374 = scmp.eq.s32.totalorder %s31, 0
      %p375 = por %p373, %p374
      %p376 = scmp.ne.s32.totalorder %s368, %s370
      %p377 = scmp.eq.s32.totalorder %s36, 3
      %p378 = por %p376, %p377
      %p379 = scmp.ne.s32.totalorder %s370, %s371
      %p380 = scmp.eq.s32.totalorder %s36, 0
      %p381 = por %p379, %p380
      %p382 = scmp.ne.s32.totalorder %s370, %s371
      %p383 = scmp.eq.s32.totalorder %s37, 3
      %p384 = por %p382, %p383
      %p386 = scmp.ne.s32.totalorder %s371, %s385
      %p387 = scmp.eq.s32.totalorder %s37, 0
      %p388 = por %p386, %p387
      %s390 = sadd.s32 %s389, 1
      %p393 = scmp.eq.s32.totalorder %s31, 3
      %p394 = scmp.ne.s32.totalorder %s389, %s391
      %p395 = scmp.eq.s32.totalorder %s31, 0
      %p396 = por %p394, %p395
      %p397 = scmp.ne.s32.totalorder %s389, %s391
      %p398 = scmp.eq.s32.totalorder %s36, 3
      %p399 = por %p397, %p398
      %p400 = scmp.ne.s32.totalorder %s391, %s392
      %p401 = scmp.eq.s32.totalorder %s36, 0
      %p402 = por %p400, %p401
      %p403 = scmp.ne.s32.totalorder %s391, %s392
      %p404 = scmp.eq.s32.totalorder %s37, 3
      %p405 = por %p403, %p404
      %p407 = scmp.ne.s32.totalorder %s392, %s406
      %p408 = scmp.eq.s32.totalorder %s37, 0
      %p409 = por %p407, %p408
      %s410 = smul.u32 %s39, 2
      %s411 = sadd.s32 %s410, %s40
      %s412 = smul.u32 %s53, 2
      %s413 = sadd.s32 %s412, %s49
      %s414 = ssub.s32 %s38, %s57
      %s415 = ssub.s32 %s411, %s413
      %s416 = sor.u32 %s414, %s415
      %p417 = scmp.eq.s32.totalorder %s416, 0
      %s419 = sadd.s32 %s418, 1
      %s420 = scalar_select %p417, %s418, %s419
      %p423 = pneg %p417
      %p424 = scmp.eq.s32.totalorder %s31, 3
      %p425 = por %p423, %p424
      %p426 = scmp.ne.s32.totalorder %s418, %s421
      %p427 = scmp.eq.s32.totalorder %s31, 0
      %p428 = por %p426, %p427
      %p429 = scmp.ne.s32.totalorder %s418, %s421
      %p430 = scmp.eq.s32.totalorder %s36, 3
      %p431 = por %p429, %p430
      %p432 = scmp.ne.s32.totalorder %s421, %s422
      %p433 = scmp.eq.s32.totalorder %s36, 0
      %p434 = por %p432, %p433
      %p435 = scmp.ne.s32.totalorder %s421, %s422
      %p436 = scmp.eq.s32.totalorder %s37, 3
      %p437 = por %p435, %p436
      %p439 = scmp.ne.s32.totalorder %s422, %s438
      %p440 = scmp.eq.s32.totalorder %s37, 0
      %p441 = por %p439, %p440
      %p442 = scmp.le.s32.totalorder 1, %s31
      %p443 = scmp.lt.s32.totalorder %s31, 5
      %p444 = pnand %p442, %p443
      %p445 = pneg %p444
      // Predicated region
      $region9: #{tpu_custom_call.1} parent=5 // pred_check
        _
      $region10: #{tpu_custom_call.1} parent=5 // pred_check_branch
        %447 = sbr.rel (%p444) target = $region12
      $region11: #{tpu_custom_call.1} parent=5 // pred_region
        %s448 = ssub.s32 %s31, 1
        // Predicated region
        $region13: #{tpu_custom_call.1} parent=11 // pred_check
          %p449 = pneg %p108
        $region14: #{tpu_custom_call.1} parent=11 // pred_check_branch
          %451 = sbr.rel (%p449) target = $region16
        $region15: #{tpu_custom_call.1} parent=11 // pred_region
          %s453 = ssub.s32 256, 256
          %454 = vsyncadd [#allocation8], %s453
          %s455 = smul.addr %s41, 2
          %s456 = smul.addr %s455, 128
          %s457 = scalar_lea.hbm %s1, %s456
          %s458 = sshll.u32 [#allocation7], 4
          %s459 = int_to_ptr.vmem [resolvable:$true] %s458
          %464 = dma.hbm_to_vmem [thread:$0]  %s457, 256, %s459, [#allocation8], 128, 128, 8
        $region16: #{tpu_custom_call.1} parent=11 // pred_fallthru
          _
        // Predicated region
        $region17: #{tpu_custom_call.1} parent=11 // pred_check
          %p465 = pneg %p129
        $region18: #{tpu_custom_call.1} parent=11 // pred_check_branch
          %467 = sbr.rel (%p465) target = $region20
        $region19: #{tpu_custom_call.1} parent=11 // pred_region
          %s469 = ssub.s32 2048, 2048
          %470 = vsyncadd [#allocation8], %s469
          %s471 = sshll.u32 [#allocation9], 4
          %s472 = int_to_ptr.vmem [resolvable:$true] %s471
          %477 = dma.hbm_to_vmem [thread:$0]  %s2, 2048, %s472, [#allocation8], 128, 128, 8
        $region20: #{tpu_custom_call.1} parent=11 // pred_fallthru
          _
        // Predicated region
        $region21: #{tpu_custom_call.1} parent=11 // pred_check
          %p478 = pneg %p150
        $region22: #{tpu_custom_call.1} parent=11 // pred_check_branch
          %480 = sbr.rel (%p478) target = $region24
        $region23: #{tpu_custom_call.1} parent=11 // pred_region
          _
        $region24: #{tpu_custom_call.1} parent=11 // pred_fallthru
          _
        // Predicated region
        $region25: #{tpu_custom_call.1} parent=11 // pred_check
          %p481 = pneg %p171
        $region26: #{tpu_custom_call.1} parent=11 // pred_check_branch
          %483 = sbr.rel (%p481) target = $region28
        $region27: #{tpu_custom_call.1} parent=11 // pred_region
          %s485 = ssub.s32 4096, 4096
          %486 = vsyncadd [#allocation11], %s485
          %s487 = sshll.u32 [#allocation10], 4
          %s488 = int_to_ptr.vmem [resolvable:$true] %s487
          %493 = dma.hbm_to_vmem [thread:$0]  %s4, 4096, %s488, [#allocation11], 256, 256, 16
        $region28: #{tpu_custom_call.1} parent=11 // pred_fallthru
          _
        // Predicated region
        $region29: #{tpu_custom_call.1} parent=11 // pred_check
          %p494 = pneg %p192
        $region30: #{tpu_custom_call.1} parent=11 // pred_check_branch
          %496 = sbr.rel (%p494) target = $region32
        $region31: #{tpu_custom_call.1} parent=11 // pred_region
          _
        $region32: #{tpu_custom_call.1} parent=11 // pred_fallthru
          _
        // Predicated region
        $region33: #{tpu_custom_call.1} parent=11 // pred_check
          %p497 = pneg %p213
        $region34: #{tpu_custom_call.1} parent=11 // pred_check_branch
          %499 = sbr.rel (%p497) target = $region36
        $region35: #{tpu_custom_call.1} parent=11 // pred_region
          %s501 = ssub.s32 2048, 2048
          %502 = vsyncadd [#allocation11], %s501
          %s503 = sshll.u32 [#allocation12], 4
          %s504 = int_to_ptr.vmem [resolvable:$true] %s503
          %509 = dma.hbm_to_vmem [thread:$0]  %s6, 2048, %s504, [#allocation11], 128, 128, 8
        $region36: #{tpu_custom_call.1} parent=11 // pred_fallthru
          _
        // Predicated region
        $region37: #{tpu_custom_call.1} parent=11 // pred_check
          %p510 = pneg %p234
        $region38: #{tpu_custom_call.1} parent=11 // pred_check_branch
          %512 = sbr.rel (%p510) target = $region40
        $region39: #{tpu_custom_call.1} parent=11 // pred_region
          _
        $region40: #{tpu_custom_call.1} parent=11 // pred_fallthru
          _
        // Predicated region
        $region41: #{tpu_custom_call.1} parent=11 // pred_check
          %p513 = pneg %p255
        $region42: #{tpu_custom_call.1} parent=11 // pred_check_branch
          %515 = sbr.rel (%p513) target = $region44
        $region43: #{tpu_custom_call.1} parent=11 // pred_region
          _
        $region44: #{tpu_custom_call.1} parent=11 // pred_fallthru
          _
        // Predicated region
        $region45: #{tpu_custom_call.1} parent=11 // pred_check
          %p516 = pneg %p276
        $region46: #{tpu_custom_call.1} parent=11 // pred_check_branch
          %518 = sbr.rel (%p516) target = $region48
        $region47: #{tpu_custom_call.1} parent=11 // pred_region
          _
        $region48: #{tpu_custom_call.1} parent=11 // pred_fallthru
          _
        // Predicated region
        $region49: #{tpu_custom_call.1} parent=11 // pred_check
          %p519 = pneg %p297
        $region50: #{tpu_custom_call.1} parent=11 // pred_check_branch
          %521 = sbr.rel (%p519) target = $region52
        $region51: #{tpu_custom_call.1} parent=11 // pred_region
          %s523 = ssub.s32 4096, 4096
          %524 = vsyncadd [#allocation14], %s523
          %s525 = sshll.u32 [#allocation13], 4
          %s526 = int_to_ptr.vmem [resolvable:$true] %s525
          %531 = dma.hbm_to_vmem [thread:$0]  %s10, 4096, %s526, [#allocation14], 256, 256, 16
        $region52: #{tpu_custom_call.1} parent=11 // pred_fallthru
          _
        // Predicated region
        $region53: #{tpu_custom_call.1} parent=11 // pred_check
          %p532 = pneg %p318
        $region54: #{tpu_custom_call.1} parent=11 // pred_check_branch
          %534 = sbr.rel (%p532) target = $region56
        $region55: #{tpu_custom_call.1} parent=11 // pred_region
          _
        $region56: #{tpu_custom_call.1} parent=11 // pred_fallthru
          _
        // Predicated region
        $region57: #{tpu_custom_call.1} parent=11 // pred_check
          %p535 = pneg %p339
        $region58: #{tpu_custom_call.1} parent=11 // pred_check_branch
          %537 = sbr.rel (%p535) target = $region60
        $region59: #{tpu_custom_call.1} parent=11 // pred_region
          %s539 = ssub.s32 4096, 4096
          %540 = vsyncadd [#allocation14], %s539
          %s541 = sshll.u32 [#allocation15], 4
          %s542 = int_to_ptr.vmem [resolvable:$true] %s541
          %547 = dma.hbm_to_vmem [thread:$0]  %s12, 4096, %s542, [#allocation14], 128, 128, 8
        $region60: #{tpu_custom_call.1} parent=11 // pred_fallthru
          _
        // Predicated region
        $region61: #{tpu_custom_call.1} parent=11 // pred_check
          %p548 = pneg %p360
        $region62: #{tpu_custom_call.1} parent=11 // pred_check_branch
          %550 = sbr.rel (%p548) target = $region64
        $region63: #{tpu_custom_call.1} parent=11 // pred_region
          _
        $region64: #{tpu_custom_call.1} parent=11 // pred_fallthru
          _
        // Predicated region
        $region65: #{tpu_custom_call.1} parent=11 // pred_check
          %p551 = pneg %p381
        $region66: #{tpu_custom_call.1} parent=11 // pred_check_branch
          %553 = sbr.rel (%p551) target = $region68
        $region67: #{tpu_custom_call.1} parent=11 // pred_region
          _
        $region68: #{tpu_custom_call.1} parent=11 // pred_fallthru
          _
        // Predicated region
        $region69: #{tpu_custom_call.1} parent=11 // pred_check
          %p554 = pneg %p402
        $region70: #{tpu_custom_call.1} parent=11 // pred_check_branch
          %556 = sbr.rel (%p554) target = $region72
        $region71: #{tpu_custom_call.1} parent=11 // pred_region
          _
        $region72: #{tpu_custom_call.1} parent=11 // pred_fallthru
          _
      $region12: #{tpu_custom_call.1} parent=5 // pred_fallthru
        _
      %p557 = scmp.lt.s32.totalorder %s31, 4
      // Predicated region
      $region73: #{tpu_custom_call.1} parent=5 // pred_check
        %p558 = pneg %p557
      $region74: #{tpu_custom_call.1} parent=5 // pred_check_branch
        %560 = sbr.rel (%p558) target = $region76
      $region75: #{tpu_custom_call.1} parent=5 // pred_region
        // Predicated region
        $region77: #{tpu_custom_call.1} parent=75 // pred_check
          %p561 = pneg %p76
        $region78: #{tpu_custom_call.1} parent=75 // pred_check_branch
          %563 = sbr.rel (%p561) target = $region80
        $region79: #{tpu_custom_call.1} parent=75 // pred_region
          %s564 = sand.u32 %s66, 1
          %s565 = scalar_lea.sflag [#allocation5], %s564
          %s566 = sand.u32 %s66, 1
          %s567 = smul.addr %s566, 8
          %s568 = scalar_lea.vmem [#allocation4], %s567
          %s569 = smul.u32 %s39, 2
          %s570 = sadd.s32 %s569, %s40
          %s572 = ssub.s32 128, 128
          %573 = vsyncadd %s565, %s572
          %s574 = smul.addr %s38, 2
          %s575 = sadd.s32 %s570, %s574
          %s576 = smul.addr %s575, 128
          %s577 = scalar_lea.hbm %s0, %s576
          %s579 = sshll.u32 %s568, 4
          %s580 = int_to_ptr.vmem [resolvable:$true] %s579
          %582 = dma.hbm_to_vmem [thread:$0]  %s577, 128, %s580, %s565
        $region80: #{tpu_custom_call.1} parent=75 // pred_fallthru
          _
      $region76: #{tpu_custom_call.1} parent=5 // pred_fallthru
        _
      %p583 = scmp.le.s32.totalorder 1, %s31
      %p584 = scmp.lt.s32.totalorder %s31, 5
      %p585 = pnand %p583, %p584
      %p586 = pneg %p585
      // Predicated region
      $region81: #{tpu_custom_call.1} parent=5 // pred_check
        _
      $region82: #{tpu_custom_call.1} parent=5 // pred_check_branch
        %588 = sbr.rel (%p585) target = $region84
      $region83: #{tpu_custom_call.1} parent=5 // pred_region
        %s589 = ssub.s32 %s31, 1
        %s590 = sand.u32 %s69, 1
        %s591 = scalar_lea.sflag [#allocation5], %s590
        %s592 = sand.u32 %s69, 1
        %s593 = smul.addr %s592, 8
        %s594 = scalar_lea.vmem [#allocation4], %s593
        // Predicated region
        $region85: #{tpu_custom_call.1} parent=83 // pred_check
          %p595 = pneg %p82
        $region86: #{tpu_custom_call.1} parent=83 // pred_check_branch
          %597 = sbr.rel (%p595) target = $region88
        $region87: #{tpu_custom_call.1} parent=83 // pred_region
          %598 = dma.done %s591, 128
        $region88: #{tpu_custom_call.1} parent=83 // pred_fallthru
          _
        // Predicated region
        $region89: #{tpu_custom_call.1} parent=83 // pred_check
          %p599 = pneg %p108
        $region90: #{tpu_custom_call.1} parent=83 // pred_check_branch
          %601 = sbr.rel (%p599) target = $region92
        $region91: #{tpu_custom_call.1} parent=83 // pred_region
          %602 = dma.done [#allocation8], 256
        $region92: #{tpu_custom_call.1} parent=83 // pred_fallthru
          _
        // Predicated region
        $region93: #{tpu_custom_call.1} parent=83 // pred_check
          %p603 = pneg %p129
        $region94: #{tpu_custom_call.1} parent=83 // pred_check_branch
          %605 = sbr.rel (%p603) target = $region96
        $region95: #{tpu_custom_call.1} parent=83 // pred_region
          %606 = dma.done [#allocation8], 2048
        $region96: #{tpu_custom_call.1} parent=83 // pred_fallthru
          _
        // Predicated region
        $region97: #{tpu_custom_call.1} parent=83 // pred_check
          %p607 = pneg %p171
        $region98: #{tpu_custom_call.1} parent=83 // pred_check_branch
          %609 = sbr.rel (%p607) target = $region100
        $region99: #{tpu_custom_call.1} parent=83 // pred_region
          %610 = dma.done [#allocation11], 4096
        $region100: #{tpu_custom_call.1} parent=83 // pred_fallthru
          _
        // Predicated region
        $region101: #{tpu_custom_call.1} parent=83 // pred_check
          %p611 = pneg %p213
        $region102: #{tpu_custom_call.1} parent=83 // pred_check_branch
          %613 = sbr.rel (%p611) target = $region104
        $region103: #{tpu_custom_call.1} parent=83 // pred_region
          %614 = dma.done [#allocation11], 2048
        $region104: #{tpu_custom_call.1} parent=83 // pred_fallthru
          _
        // Predicated region
        $region105: #{tpu_custom_call.1} parent=83 // pred_check
          %p615 = pneg %p297
        $region106: #{tpu_custom_call.1} parent=83 // pred_check_branch
          %617 = sbr.rel (%p615) target = $region108
        $region107: #{tpu_custom_call.1} parent=83 // pred_region
          %618 = dma.done [#allocation14], 4096
        $region108: #{tpu_custom_call.1} parent=83 // pred_fallthru
          _
        // Predicated region
        $region109: #{tpu_custom_call.1} parent=83 // pred_check
          %p619 = pneg %p339
        $region110: #{tpu_custom_call.1} parent=83 // pred_check_branch
          %621 = sbr.rel (%p619) target = $region112
        $region111: #{tpu_custom_call.1} parent=83 // pred_region
          %622 = dma.done [#allocation14], 4096
        $region112: #{tpu_custom_call.1} parent=83 // pred_fallthru
          _
        %s623 = sand.u32 %s69, 1
        %s624 = scalar_lea.sflag [#allocation5], %s623
        %s625 = sand.u32 %s69, 1
        %s626 = smul.addr %s625, 8
        %s627 = scalar_lea.vmem [#allocation4], %s626
        %p628 = pneg %p82
        %p629 = pneg %p79
        %p630 = pneg %p108
        %p631 = pneg %p105
        %p632 = pneg %p129
        %p633 = pneg %p126
        %p634 = pneg %p150
        %p635 = pneg %p147
        %p636 = pneg %p171
        %p637 = pneg %p168
        %p638 = pneg %p192
        %p639 = pneg %p189
        %p640 = pneg %p213
        %p641 = pneg %p210
        %p642 = pneg %p234
        %p643 = pneg %p231
        %p644 = pneg %p255
        %p645 = pneg %p252
        %p646 = pneg %p276
        %p647 = pneg %p273
        %p648 = pneg %p297
        %p649 = pneg %p294
        %p650 = pneg %p318
        %p651 = pneg %p315
        %p652 = pneg %p339
        %p653 = pneg %p336
        %p654 = pneg %p360
        %p655 = pneg %p357
        %p656 = pneg %p381
        %p657 = pneg %p378
        %p658 = pneg %p402
        %p659 = pneg %p399
        %p660 = pneg %p434
        %p661 = pneg %p431
        %s662 = sand.u32 %s421, 1
        %s663 = scalar_lea.sflag [#allocation6], %s662
        %s664 = sand.u32 %s421, 1
        %s665 = smul.addr %s664, 8
        %s666 = scalar_lea.vmem [#allocation16], %s665
        %s667 = smul.u32 %s42, 2
        %s668 = sadd.s32 %s667, %s43
        %s669 = smul.u32 %s42, 2
        %s670 = sadd.s32 %s669, %s43
        %p671 = scmp.eq.s32.totalorder %s43, 0
        // Predicated region
        $region113: #{tpu_custom_call.1} parent=83 // pred_check
          %p672 = pneg %p671
        $region114: #{tpu_custom_call.1} parent=83 // pred_check_branch
          %674 = sbr.rel (%p672) target = $region116
        $region115: #{tpu_custom_call.1} parent=83 // pred_region
          %v675 = vld [vmem:[#allocation7] sm:$0xff]
          %v676 = vld [vmem:[#allocation7 + $0x8] sm:$0xff]
          %v677 = vld [vmem:[#allocation10] sm:$0xff]
          %v678 = vld [vmem:[#allocation10 + $0x8] sm:$0xff]
          %v679 = vld [vmem:[#allocation10 + $0x10] sm:$0xff]
          %v680 = vld [vmem:[#allocation10 + $0x18] sm:$0xff]
          %v681 = vld [vmem:[#allocation10 + $0x20] sm:$0xff]
          %v682 = vld [vmem:[#allocation10 + $0x28] sm:$0xff]
          %v683 = vld [vmem:[#allocation10 + $0x30] sm:$0xff]
          %v684 = vld [vmem:[#allocation10 + $0x38] sm:$0xff]
          %v685 = vld [vmem:[#allocation10 + $0x40] sm:$0xff]
          %v686 = vld [vmem:[#allocation10 + $0x48] sm:$0xff]
          %v687 = vld [vmem:[#allocation10 + $0x50] sm:$0xff]
          %v688 = vld [vmem:[#allocation10 + $0x58] sm:$0xff]
          %v689 = vld [vmem:[#allocation10 + $0x60] sm:$0xff]
          %v690 = vld [vmem:[#allocation10 + $0x68] sm:$0xff]
          %v691 = vld [vmem:[#allocation10 + $0x70] sm:$0xff]
          %v692 = vld [vmem:[#allocation10 + $0x78] sm:$0xff]
          %v693 = vld [vmem:[#allocation10 + $0x80] sm:$0xff]
          %v694 = vld [vmem:[#allocation10 + $0x88] sm:$0xff]
          %v695 = vld [vmem:[#allocation10 + $0x90] sm:$0xff]
          %v696 = vld [vmem:[#allocation10 + $0x98] sm:$0xff]
          %v697 = vld [vmem:[#allocation10 + $0xa0] sm:$0xff]
          %v698 = vld [vmem:[#allocation10 + $0xa8] sm:$0xff]
          %v699 = vld [vmem:[#allocation10 + $0xb0] sm:$0xff]
          %v700 = vld [vmem:[#allocation10 + $0xb8] sm:$0xff]
          %v701 = vld [vmem:[#allocation10 + $0xc0] sm:$0xff]
          %v702 = vld [vmem:[#allocation10 + $0xc8] sm:$0xff]
          %v703 = vld [vmem:[#allocation10 + $0xd0] sm:$0xff]
          %v704 = vld [vmem:[#allocation10 + $0xd8] sm:$0xff]
          %v705 = vld [vmem:[#allocation10 + $0xe0] sm:$0xff]
          %v706 = vld [vmem:[#allocation10 + $0xe8] sm:$0xff]
          %v707 = vld [vmem:[#allocation10 + $0xf0] sm:$0xff]
          %v708 = vld [vmem:[#allocation10 + $0xf8] sm:$0xff]
          %v709 = vld [vmem:[%s5] sm:$0x3]
          %v711 = vlaneseq
          %v712 = vshrl.u32 %v711, 7
          %v713 = vsub.s32 0, %v712
          %v714 = vrot.slane %v709, %v713
          %v715 = vlaneseq
          %v716 = vshrl.u32 %v715, 7
          %v717 = vsub.s32 1, %v716
          %v718 = vrot.slane %v709, %v717
          %721 = vmatprep.subr.mxu0 %v678
          %722 = vmatpush1.msra.mxu0 %v677
          %723 = vmatprep.subr.mxu0 %v680
          %724 = vmatpush1.msra.mxu0 %v679
          %725 = vmatprep.subr.mxu0 %v682
          %726 = vmatpush1.msra.mxu0 %v681
          %727 = vmatprep.subr.mxu0 %v684
          %728 = vmatpush1.msra.mxu0 %v683
          %729 = vmatprep.subr.mxu0 %v686
          %730 = vmatpush1.msra.mxu0 %v685
          %731 = vmatprep.subr.mxu0 %v688
          %732 = vmatpush1.msra.mxu0 %v687
          %733 = vmatprep.subr.mxu0 %v690
          %734 = vmatpush1.msra.mxu0 %v689
          %735 = vmatprep.subr.mxu0 %v692
          %736 = vmatpush1.msra.mxu0 %v691
          %737 = vmatprep.subr.mxu0 %v694
          %738 = vmatpush1.msra.mxu0 %v693
          %739 = vmatprep.subr.mxu0 %v696
          %740 = vmatpush1.msra.mxu0 %v695
          %741 = vmatprep.subr.mxu0 %v698
          %742 = vmatpush1.msra.mxu0 %v697
          %743 = vmatprep.subr.mxu0 %v700
          %744 = vmatpush1.msra.mxu0 %v699
          %745 = vmatprep.subr.mxu0 %v702
          %746 = vmatpush1.msra.mxu0 %v701
          %747 = vmatprep.subr.mxu0 %v704
          %748 = vmatpush1.msra.mxu0 %v703
          %749 = vmatprep.subr.mxu0 %v706
          %750 = vmatpush1.msra.mxu0 %v705
          %751 = vmatprep.subr.mxu0 %v708
          %752 = vmatpush1.msra.mxu0 %v707
          %753 = vmatprep.subr.mxu0 0.0
          %754 = vmatpush1.msra.mxu0 0.0
          %755 = vmatprep.subr.mxu0 0.0
          %756 = vmatpush1.msra.mxu0 0.0
          %757 = vmatprep.subr.mxu0 0.0
          %758 = vmatpush1.msra.mxu0 0.0
          %759 = vmatprep.subr.mxu0 0.0
          %760 = vmatpush1.msra.mxu0 0.0
          %761 = vmatprep.subr.mxu0 0.0
          %762 = vmatpush1.msra.mxu0 0.0
          %763 = vmatprep.subr.mxu0 0.0
          %764 = vmatpush1.msra.mxu0 0.0
          %765 = vmatprep.subr.mxu0 0.0
          %766 = vmatpush1.msra.mxu0 0.0
          %767 = vmatprep.subr.mxu0 0.0
          %768 = vmatpush1.msra.mxu0 0.0
          %769 = vmatprep.subr.mxu0 0.0
          %770 = vmatpush1.msra.mxu0 0.0
          %771 = vmatprep.subr.mxu0 0.0
          %772 = vmatpush1.msra.mxu0 0.0
          %773 = vmatprep.subr.mxu0 0.0
          %774 = vmatpush1.msra.mxu0 0.0
          %775 = vmatprep.subr.mxu0 0.0
          %776 = vmatpush1.msra.mxu0 0.0
          %777 = vmatprep.subr.mxu0 0.0
          %778 = vmatpush1.msra.mxu0 0.0
          %779 = vmatprep.subr.mxu0 0.0
          %780 = vmatpush1.msra.mxu0 0.0
          %781 = vmatprep.subr.mxu0 0.0
          %782 = vmatpush1.msra.mxu0 0.0
          %783 = vmatprep.subr.mxu0 0.0
          %784 = vmatpush1.msra.mxu0 0.0
          %785 = vmatprep.mubr.f32.mxu0 0.0
          %786 = vmatmul.mubr.f32.gmra.mrb[0].mxu0 %v675
          %v787 = vpop.f32.mrb[0].mxu0
          %v788 = vadd.f32 %v714, %v787
          %v789 = vpop.f32.mrb[0].mxu0
          %v790 = vadd.f32 %v718, %v789
          %791 = vmatprep.mubr.f32.mxu0 0.0
          %792 = vmatmul.mubr.f32.gmra.mrb[0].mxu0 %v676
          %v793 = vpop.f32.mrb[0].mxu0
          %v794 = vadd.f32 %v714, %v793
          %v795 = vpop.f32.mrb[0].mxu0
          %v796 = vadd.f32 %v718, %v795
          %797 = vdwg.mxu0
          %798 = vst [vmem:[#allocation2] sm:$0xff] %v788
          %799 = vst [vmem:[#allocation2 + $0x8] sm:$0xff] %v790
          %800 = vst [vmem:[#allocation2 + $0x10] sm:$0xff] %v794
          %801 = vst [vmem:[#allocation2 + $0x18] sm:$0xff] %v796
        $region116: #{tpu_custom_call.1} parent=83 // pred_fallthru
          _
        %v802 = vld [vmem:[%s594] sm:$0xff]
        %v803 = vld [vmem:[#allocation9] sm:$0xff]
        %v804 = vld [vmem:[#allocation9 + $0x8] sm:$0xff]
        %v805 = vld [vmem:[#allocation9 + $0x10] sm:$0xff]
        %v806 = vld [vmem:[#allocation9 + $0x18] sm:$0xff]
        %v807 = vld [vmem:[#allocation9 + $0x20] sm:$0xff]
        %v808 = vld [vmem:[#allocation9 + $0x28] sm:$0xff]
        %v809 = vld [vmem:[#allocation9 + $0x30] sm:$0xff]
        %v810 = vld [vmem:[#allocation9 + $0x38] sm:$0xff]
        %v811 = vld [vmem:[#allocation9 + $0x40] sm:$0xff]
        %v812 = vld [vmem:[#allocation9 + $0x48] sm:$0xff]
        %v813 = vld [vmem:[#allocation9 + $0x50] sm:$0xff]
        %v814 = vld [vmem:[#allocation9 + $0x58] sm:$0xff]
        %v815 = vld [vmem:[#allocation9 + $0x60] sm:$0xff]
        %v816 = vld [vmem:[#allocation9 + $0x68] sm:$0xff]
        %v817 = vld [vmem:[#allocation9 + $0x70] sm:$0xff]
        %v818 = vld [vmem:[#allocation9 + $0x78] sm:$0xff]
        %v819 = vld [vmem:[%s3] sm:$0x1]
        %v821 = vlaneseq
        %v822 = vshrl.u32 %v821, 7
        %v823 = vsub.s32 0, %v822
        %v824 = vrot.slane %v819, %v823
        %826 = vmatprep.subr.mxu0 0.0
        %827 = vmatpush1.msra.mxu0 %v803
        %828 = vmatprep.subr.mxu0 0.0
        %829 = vmatpush1.msra.mxu0 %v804
        %830 = vmatprep.subr.mxu0 0.0
        %831 = vmatpush1.msra.mxu0 %v805
        %832 = vmatprep.subr.mxu0 0.0
        %833 = vmatpush1.msra.mxu0 %v806
        %834 = vmatprep.subr.mxu0 0.0
        %835 = vmatpush1.msra.mxu0 %v807
        %836 = vmatprep.subr.mxu0 0.0
        %837 = vmatpush1.msra.mxu0 %v808
        %838 = vmatprep.subr.mxu0 0.0
        %839 = vmatpush1.msra.mxu0 %v809
        %840 = vmatprep.subr.mxu0 0.0
        %841 = vmatpush1.msra.mxu0 %v810
        %842 = vmatprep.subr.mxu0 0.0
        %843 = vmatpush1.msra.mxu0 %v811
        %844 = vmatprep.subr.mxu0 0.0
        %845 = vmatpush1.msra.mxu0 %v812
        %846 = vmatprep.subr.mxu0 0.0
        %847 = vmatpush1.msra.mxu0 %v813
        %848 = vmatprep.subr.mxu0 0.0
        %849 = vmatpush1.msra.mxu0 %v814
        %850 = vmatprep.subr.mxu0 0.0
        %851 = vmatpush1.msra.mxu0 %v815
        %852 = vmatprep.subr.mxu0 0.0
        %853 = vmatpush1.msra.mxu0 %v816
        %854 = vmatprep.subr.mxu0 0.0
        %855 = vmatpush1.msra.mxu0 %v817
        %856 = vmatprep.subr.mxu0 0.0
        %857 = vmatpush1.msra.mxu0 %v818
        %858 = vmatprep.subr.mxu0 0.0
        %859 = vmatpush1.msra.mxu0 0.0
        %860 = vmatprep.subr.mxu0 0.0
        %861 = vmatpush1.msra.mxu0 0.0
        %862 = vmatprep.subr.mxu0 0.0
        %863 = vmatpush1.msra.mxu0 0.0
        %864 = vmatprep.subr.mxu0 0.0
        %865 = vmatpush1.msra.mxu0 0.0
        %866 = vmatprep.subr.mxu0 0.0
        %867 = vmatpush1.msra.mxu0 0.0
        %868 = vmatprep.subr.mxu0 0.0
        %869 = vmatpush1.msra.mxu0 0.0
        %870 = vmatprep.subr.mxu0 0.0
        %871 = vmatpush1.msra.mxu0 0.0
        %872 = vmatprep.subr.mxu0 0.0
        %873 = vmatpush1.msra.mxu0 0.0
        %874 = vmatprep.subr.mxu0 0.0
        %875 = vmatpush1.msra.mxu0 0.0
        %876 = vmatprep.subr.mxu0 0.0
        %877 = vmatpush1.msra.mxu0 0.0
        %878 = vmatprep.subr.mxu0 0.0
        %879 = vmatpush1.msra.mxu0 0.0
        %880 = vmatprep.subr.mxu0 0.0
        %881 = vmatpush1.msra.mxu0 0.0
        %882 = vmatprep.subr.mxu0 0.0
        %883 = vmatpush1.msra.mxu0 0.0
        %884 = vmatprep.subr.mxu0 0.0
        %885 = vmatpush1.msra.mxu0 0.0
        %886 = vmatprep.subr.mxu0 0.0
        %887 = vmatpush1.msra.mxu0 0.0
        %888 = vmatprep.subr.mxu0 0.0
        %889 = vmatpush1.msra.mxu0 0.0
        %890 = vmatprep.mubr.f32.mxu0 0.0
        %891 = vmatmul.mubr.f32.gmra.mrb[0].mxu0 %v802
        %v892 = vpop.f32.mrb[0].mxu0
        %v893 = vadd.f32 %v824, %v892
        %v894 = vpop.f32.mrb[0].mxu0
        %895 = vdwg.mxu0
        %v896 = vld [vmem:[#allocation2] sm:$0xff]
        %v897 = vld [vmem:[#allocation2 + $0x10] sm:$0xff]
        %v898 = vld [vmem:[#allocation2 + $0x8] sm:$0xff]
        %v899 = vld [vmem:[#allocation2 + $0x18] sm:$0xff]
        %vm900 = vcmask 261120
        %v902 = vsel %vm900, %v893, 0
        %v905 = vsel %vm900, %v896, 0
        %v908 = vsel %vm900, %v897, 0
        %910 = vmatprep.subr.mxu0 0.0
        %911 = vmatpush1.xpose.msra.mxu0 %v905
        %912 = vmatprep.subr.mxu0 0.0
        %913 = vmatpush1.xpose.msra.mxu0 %v908
        %914 = vmatprep.subr.mxu0 0.0
        %915 = vmatpush1.xpose.msra.mxu0 0.0
        %916 = vmatprep.subr.mxu0 0.0
        %917 = vmatpush1.xpose.msra.mxu0 0.0
        %918 = vmatprep.subr.mxu0 0.0
        %919 = vmatpush1.xpose.msra.mxu0 0.0
        %920 = vmatprep.subr.mxu0 0.0
        %921 = vmatpush1.xpose.msra.mxu0 0.0
        %922 = vmatprep.subr.mxu0 0.0
        %923 = vmatpush1.xpose.msra.mxu0 0.0
        %924 = vmatprep.subr.mxu0 0.0
        %925 = vmatpush1.xpose.msra.mxu0 0.0
        %926 = vmatprep.subr.mxu0 0.0
        %927 = vmatpush1.xpose.msra.mxu0 0.0
        %928 = vmatprep.subr.mxu0 0.0
        %929 = vmatpush1.xpose.msra.mxu0 0.0
        %930 = vmatprep.subr.mxu0 0.0
        %931 = vmatpush1.xpose.msra.mxu0 0.0
        %932 = vmatprep.subr.mxu0 0.0
        %933 = vmatpush1.xpose.msra.mxu0 0.0
        %934 = vmatprep.subr.mxu0 0.0
        %935 = vmatpush1.xpose.msra.mxu0 0.0
        %936 = vmatprep.subr.mxu0 0.0
        %937 = vmatpush1.xpose.msra.mxu0 0.0
        %938 = vmatprep.subr.mxu0 0.0
        %939 = vmatpush1.xpose.msra.mxu0 0.0
        %940 = vmatprep.subr.mxu0 0.0
        %941 = vmatpush1.xpose.msra.mxu0 0.0
        %942 = vmatprep.subr.mxu0 0.0
        %943 = vmatpush1.xpose.msra.mxu0 0.0
        %944 = vmatprep.subr.mxu0 0.0
        %945 = vmatpush1.xpose.msra.mxu0 0.0
        %946 = vmatprep.subr.mxu0 0.0
        %947 = vmatpush1.xpose.msra.mxu0 0.0
        %948 = vmatprep.subr.mxu0 0.0
        %949 = vmatpush1.xpose.msra.mxu0 0.0
        %950 = vmatprep.subr.mxu0 0.0
        %951 = vmatpush1.xpose.msra.mxu0 0.0
        %952 = vmatprep.subr.mxu0 0.0
        %953 = vmatpush1.xpose.msra.mxu0 0.0
        %954 = vmatprep.subr.mxu0 0.0
        %955 = vmatpush1.xpose.msra.mxu0 0.0
        %956 = vmatprep.subr.mxu0 0.0
        %957 = vmatpush1.xpose.msra.mxu0 0.0
        %958 = vmatprep.subr.mxu0 0.0
        %959 = vmatpush1.xpose.msra.mxu0 0.0
        %960 = vmatprep.subr.mxu0 0.0
        %961 = vmatpush1.xpose.msra.mxu0 0.0
        %962 = vmatprep.subr.mxu0 0.0
        %963 = vmatpush1.xpose.msra.mxu0 0.0
        %964 = vmatprep.subr.mxu0 0.0
        %965 = vmatpush1.xpose.msra.mxu0 0.0
        %966 = vmatprep.subr.mxu0 0.0
        %967 = vmatpush1.xpose.msra.mxu0 0.0
        %968 = vmatprep.subr.mxu0 0.0
        %969 = vmatpush1.xpose.msra.mxu0 0.0
        %970 = vmatprep.subr.mxu0 0.0
        %971 = vmatpush1.xpose.msra.mxu0 0.0
        %972 = vmatprep.subr.mxu0 0.0
        %973 = vmatpush1.xpose.msra.mxu0 0.0
        %974 = vmatprep.mubr.f32.mxu0 0.0
        %975 = vmatmul.mubr.f32.gmra.mrb[0].mxu0 %v902
        %v976 = vpop.f32.mrb[0].mxu0
        %v977 = vadd.f32 0.0, %v976
        %v978 = vpop.f32.mrb[0].mxu0
        %979 = vdwg.mxu0
        %vm980 = vcmask 130048
        %v981 = vsel %vm980, %v977, -inf
        %982 = vmax.xlane.f32.xlu0 %v981
        %v983 = vpop.xlane.xlu0 %982
        %v984 = vsub.f32 %v977, %v983
        %v985 = vmul.f32 %v984, 1.442695
        %v986 = vpow.pop %v985
        %v987 = vsel %vm980, %v986, 0.0
        %988 = vadd.xlane.f32.xlu0 %v987
        %v989 = vpop.xlane.xlu0 %988
        %v990 = vrcp.pop %v989
        %v991 = vmul.f32 %v986, %v990
        %v993 = vsel %vm980, %v991, 0
        %995 = vmatprep.subr.mxu0 0.0
        %996 = vmatpush1.msra.mxu0 %v898
        %997 = vmatprep.subr.mxu0 0.0
        %998 = vmatpush1.msra.mxu0 %v899
        %999 = vmatprep.subr.mxu0 0.0
        %1000 = vmatpush1.msra.mxu0 0.0
        %1001 = vmatprep.subr.mxu0 0.0
        %1002 = vmatpush1.msra.mxu0 0.0
        %1003 = vmatprep.subr.mxu0 0.0
        %1004 = vmatpush1.msra.mxu0 0.0
        %1005 = vmatprep.subr.mxu0 0.0
        %1006 = vmatpush1.msra.mxu0 0.0
        %1007 = vmatprep.subr.mxu0 0.0
        %1008 = vmatpush1.msra.mxu0 0.0
        %1009 = vmatprep.subr.mxu0 0.0
        %1010 = vmatpush1.msra.mxu0 0.0
        %1011 = vmatprep.subr.mxu0 0.0
        %1012 = vmatpush1.msra.mxu0 0.0
        %1013 = vmatprep.subr.mxu0 0.0
        %1014 = vmatpush1.msra.mxu0 0.0
        %1015 = vmatprep.subr.mxu0 0.0
        %1016 = vmatpush1.msra.mxu0 0.0
        %1017 = vmatprep.subr.mxu0 0.0
        %1018 = vmatpush1.msra.mxu0 0.0
        %1019 = vmatprep.subr.mxu0 0.0
        %1020 = vmatpush1.msra.mxu0 0.0
        %1021 = vmatprep.subr.mxu0 0.0
        %1022 = vmatpush1.msra.mxu0 0.0
        %1023 = vmatprep.subr.mxu0 0.0
        %1024 = vmatpush1.msra.mxu0 0.0
        %1025 = vmatprep.subr.mxu0 0.0
        %1026 = vmatpush1.msra.mxu0 0.0
        %1027 = vmatprep.subr.mxu0 0.0
        %1028 = vmatpush1.msra.mxu0 0.0
        %1029 = vmatprep.subr.mxu0 0.0
        %1030 = vmatpush1.msra.mxu0 0.0
        %1031 = vmatprep.subr.mxu0 0.0
        %1032 = vmatpush1.msra.mxu0 0.0
        %1033 = vmatprep.subr.mxu0 0.0
        %1034 = vmatpush1.msra.mxu0 0.0
        %1035 = vmatprep.subr.mxu0 0.0
        %1036 = vmatpush1.msra.mxu0 0.0
        %1037 = vmatprep.subr.mxu0 0.0
        %1038 = vmatpush1.msra.mxu0 0.0
        %1039 = vmatprep.subr.mxu0 0.0
        %1040 = vmatpush1.msra.mxu0 0.0
        %1041 = vmatprep.subr.mxu0 0.0
        %1042 = vmatpush1.msra.mxu0 0.0
        %1043 = vmatprep.subr.mxu0 0.0
        %1044 = vmatpush1.msra.mxu0 0.0
        %1045 = vmatprep.subr.mxu0 0.0
        %1046 = vmatpush1.msra.mxu0 0.0
        %1047 = vmatprep.subr.mxu0 0.0
        %1048 = vmatpush1.msra.mxu0 0.0
        %1049 = vmatprep.subr.mxu0 0.0
        %1050 = vmatpush1.msra.mxu0 0.0
        %1051 = vmatprep.subr.mxu0 0.0
        %1052 = vmatpush1.msra.mxu0 0.0
        %1053 = vmatprep.subr.mxu0 0.0
        %1054 = vmatpush1.msra.mxu0 0.0
        %1055 = vmatprep.subr.mxu0 0.0
        %1056 = vmatpush1.msra.mxu0 0.0
        %1057 = vmatprep.subr.mxu0 0.0
        %1058 = vmatpush1.msra.mxu0 0.0
        %1059 = vmatprep.mubr.f32.mxu0 0.0
        %1060 = vmatmul.mubr.f32.gmra.mrb[0].mxu0 %v993
        %v1061 = vpop.f32.mrb[0].mxu0
        %v1062 = vadd.f32 0.0, %v1061
        %v1063 = vpop.f32.mrb[0].mxu0
        %1064 = vdwg.mxu0
        %1065 = vst.msk [vmem:[#allocation3] sm:$0xff] %vm900, %v1062
        %v1066 = vld [vmem:[#allocation2] sm:$0xff]
        %v1067 = vld [vmem:[#allocation2 + $0x10] sm:$0xff]
        %v1068 = vld [vmem:[#allocation2 + $0x8] sm:$0xff]
        %v1069 = vld [vmem:[#allocation2 + $0x18] sm:$0xff]
        %1070 = vrot.lane.b32.xlu0 %v893, 96
        %v1071 = vpop.permute.xlu0 %1070
        %1074 = vrot.lane.b32.xlu0 %v1066, 96
        %v1075 = vpop.permute.xlu0 %1074
        %1076 = vrot.lane.b32.xlu0 %v1067, 96
        %v1077 = vpop.permute.xlu0 %1076
        %v1078 = vsel %vm900, %v1071, 0
        %v1080 = vsel %vm900, %v1075, 0
        %v1082 = vsel %vm900, %v1077, 0
        %1084 = vmatprep.subr.mxu0 0.0
        %1085 = vmatpush1.xpose.msra.mxu0 %v1080
        %1086 = vmatprep.subr.mxu0 0.0
        %1087 = vmatpush1.xpose.msra.mxu0 %v1082
        %1088 = vmatprep.subr.mxu0 0.0
        %1089 = vmatpush1.xpose.msra.mxu0 0.0
        %1090 = vmatprep.subr.mxu0 0.0
        %1091 = vmatpush1.xpose.msra.mxu0 0.0
        %1092 = vmatprep.subr.mxu0 0.0
        %1093 = vmatpush1.xpose.msra.mxu0 0.0
        %1094 = vmatprep.subr.mxu0 0.0
        %1095 = vmatpush1.xpose.msra.mxu0 0.0
        %1096 = vmatprep.subr.mxu0 0.0
        %1097 = vmatpush1.xpose.msra.mxu0 0.0
        %1098 = vmatprep.subr.mxu0 0.0
        %1099 = vmatpush1.xpose.msra.mxu0 0.0
        %1100 = vmatprep.subr.mxu0 0.0
        %1101 = vmatpush1.xpose.msra.mxu0 0.0
        %1102 = vmatprep.subr.mxu0 0.0
        %1103 = vmatpush1.xpose.msra.mxu0 0.0
        %1104 = vmatprep.subr.mxu0 0.0
        %1105 = vmatpush1.xpose.msra.mxu0 0.0
        %1106 = vmatprep.subr.mxu0 0.0
        %1107 = vmatpush1.xpose.msra.mxu0 0.0
        %1108 = vmatprep.subr.mxu0 0.0
        %1109 = vmatpush1.xpose.msra.mxu0 0.0
        %1110 = vmatprep.subr.mxu0 0.0
        %1111 = vmatpush1.xpose.msra.mxu0 0.0
        %1112 = vmatprep.subr.mxu0 0.0
        %1113 = vmatpush1.xpose.msra.mxu0 0.0
        %1114 = vmatprep.subr.mxu0 0.0
        %1115 = vmatpush1.xpose.msra.mxu0 0.0
        %1116 = vmatprep.subr.mxu0 0.0
        %1117 = vmatpush1.xpose.msra.mxu0 0.0
        %1118 = vmatprep.subr.mxu0 0.0
        %1119 = vmatpush1.xpose.msra.mxu0 0.0
        %1120 = vmatprep.subr.mxu0 0.0
        %1121 = vmatpush1.xpose.msra.mxu0 0.0
        %1122 = vmatprep.subr.mxu0 0.0
        %1123 = vmatpush1.xpose.msra.mxu0 0.0
        %1124 = vmatprep.subr.mxu0 0.0
        %1125 = vmatpush1.xpose.msra.mxu0 0.0
        %1126 = vmatprep.subr.mxu0 0.0
        %1127 = vmatpush1.xpose.msra.mxu0 0.0
        %1128 = vmatprep.subr.mxu0 0.0
        %1129 = vmatpush1.xpose.msra.mxu0 0.0
        %1130 = vmatprep.subr.mxu0 0.0
        %1131 = vmatpush1.xpose.msra.mxu0 0.0
        %1132 = vmatprep.subr.mxu0 0.0
        %1133 = vmatpush1.xpose.msra.mxu0 0.0
        %1134 = vmatprep.subr.mxu0 0.0
        %1135 = vmatpush1.xpose.msra.mxu0 0.0
        %1136 = vmatprep.subr.mxu0 0.0
        %1137 = vmatpush1.xpose.msra.mxu0 0.0
        %1138 = vmatprep.subr.mxu0 0.0
        %1139 = vmatpush1.xpose.msra.mxu0 0.0
        %1140 = vmatprep.subr.mxu0 0.0
        %1141 = vmatpush1.xpose.msra.mxu0 0.0
        %1142 = vmatprep.subr.mxu0 0.0
        %1143 = vmatpush1.xpose.msra.mxu0 0.0
        %1144 = vmatprep.subr.mxu0 0.0
        %1145 = vmatpush1.xpose.msra.mxu0 0.0
        %1146 = vmatprep.subr.mxu0 0.0
        %1147 = vmatpush1.xpose.msra.mxu0 0.0
        %1148 = vmatprep.mubr.f32.mxu0 0.0
        %1149 = vmatmul.mubr.f32.gmra.mrb[0].mxu0 %v1078
        %v1150 = vpop.f32.mrb[0].mxu0
        %v1151 = vadd.f32 0.0, %v1150
        %v1152 = vpop.f32.mrb[0].mxu0
        %1153 = vdwg.mxu0
        %v1154 = vsel %vm980, %v1151, -inf
        %1155 = vmax.xlane.f32.xlu0 %v1154
        %v1156 = vpop.xlane.xlu0 %1155
        %v1157 = vsub.f32 %v1151, %v1156
        %v1158 = vmul.f32 %v1157, 1.442695
        %v1159 = vpow.pop %v1158
        %v1160 = vsel %vm980, %v1159, 0.0
        %1161 = vadd.xlane.f32.xlu0 %v1160
        %v1162 = vpop.xlane.xlu0 %1161
        %v1163 = vrcp.pop %v1162
        %v1164 = vmul.f32 %v1159, %v1163
        %1167 = vrot.lane.b32.xlu0 %v1068, 96
        %v1168 = vpop.permute.xlu0 %1167
        %1169 = vrot.lane.b32.xlu0 %v1069, 96
        %v1170 = vpop.permute.xlu0 %1169
        %v1174 = vsel %vm980, %v1164, 0
        %1176 = vmatprep.subr.mxu0 0.0
        %1177 = vmatpush1.msra.mxu0 %v1168
        %1178 = vmatprep.subr.mxu0 0.0
        %1179 = vmatpush1.msra.mxu0 %v1170
        %1180 = vmatprep.subr.mxu0 0.0
        %1181 = vmatpush1.msra.mxu0 0.0
        %1182 = vmatprep.subr.mxu0 0.0
        %1183 = vmatpush1.msra.mxu0 0.0
        %1184 = vmatprep.subr.mxu0 0.0
        %1185 = vmatpush1.msra.mxu0 0.0
        %1186 = vmatprep.subr.mxu0 0.0
        %1187 = vmatpush1.msra.mxu0 0.0
        %1188 = vmatprep.subr.mxu0 0.0
        %1189 = vmatpush1.msra.mxu0 0.0
        %1190 = vmatprep.subr.mxu0 0.0
        %1191 = vmatpush1.msra.mxu0 0.0
        %1192 = vmatprep.subr.mxu0 0.0
        %1193 = vmatpush1.msra.mxu0 0.0
        %1194 = vmatprep.subr.mxu0 0.0
        %1195 = vmatpush1.msra.mxu0 0.0
        %1196 = vmatprep.subr.mxu0 0.0
        %1197 = vmatpush1.msra.mxu0 0.0
        %1198 = vmatprep.subr.mxu0 0.0
        %1199 = vmatpush1.msra.mxu0 0.0
        %1200 = vmatprep.subr.mxu0 0.0
        %1201 = vmatpush1.msra.mxu0 0.0
        %1202 = vmatprep.subr.mxu0 0.0
        %1203 = vmatpush1.msra.mxu0 0.0
        %1204 = vmatprep.subr.mxu0 0.0
        %1205 = vmatpush1.msra.mxu0 0.0
        %1206 = vmatprep.subr.mxu0 0.0
        %1207 = vmatpush1.msra.mxu0 0.0
        %1208 = vmatprep.subr.mxu0 0.0
        %1209 = vmatpush1.msra.mxu0 0.0
        %1210 = vmatprep.subr.mxu0 0.0
        %1211 = vmatpush1.msra.mxu0 0.0
        %1212 = vmatprep.subr.mxu0 0.0
        %1213 = vmatpush1.msra.mxu0 0.0
        %1214 = vmatprep.subr.mxu0 0.0
        %1215 = vmatpush1.msra.mxu0 0.0
        %1216 = vmatprep.subr.mxu0 0.0
        %1217 = vmatpush1.msra.mxu0 0.0
        %1218 = vmatprep.subr.mxu0 0.0
        %1219 = vmatpush1.msra.mxu0 0.0
        %1220 = vmatprep.subr.mxu0 0.0
        %1221 = vmatpush1.msra.mxu0 0.0
        %1222 = vmatprep.subr.mxu0 0.0
        %1223 = vmatpush1.msra.mxu0 0.0
        %1224 = vmatprep.subr.mxu0 0.0
        %1225 = vmatpush1.msra.mxu0 0.0
        %1226 = vmatprep.subr.mxu0 0.0
        %1227 = vmatpush1.msra.mxu0 0.0
        %1228 = vmatprep.subr.mxu0 0.0
        %1229 = vmatpush1.msra.mxu0 0.0
        %1230 = vmatprep.subr.mxu0 0.0
        %1231 = vmatpush1.msra.mxu0 0.0
        %1232 = vmatprep.subr.mxu0 0.0
        %1233 = vmatpush1.msra.mxu0 0.0
        %1234 = vmatprep.subr.mxu0 0.0
        %1235 = vmatpush1.msra.mxu0 0.0
        %1236 = vmatprep.subr.mxu0 0.0
        %1237 = vmatpush1.msra.mxu0 0.0
        %1238 = vmatprep.subr.mxu0 0.0
        %1239 = vmatpush1.msra.mxu0 0.0
        %1240 = vmatprep.mubr.f32.mxu0 0.0
        %1241 = vmatmul.mubr.f32.gmra.mrb[0].mxu0 %v1174
        %v1242 = vpop.f32.mrb[0].mxu0
        %v1243 = vadd.f32 0.0, %v1242
        %v1244 = vpop.f32.mrb[0].mxu0
        %1245 = vdwg.mxu0
        %1247 = vrot.lane.b32.xlu0 %v1243, 32
        %v1248 = vpop.permute.xlu0 %1247
        %vm1250 = vcmask 523520
        %1251 = vst.msk [vmem:[#allocation3] sm:$0xff] %vm1250, %v1248
        %v1252 = vld [vmem:[#allocation2] sm:$0xff]
        %v1253 = vld [vmem:[#allocation2 + $0x10] sm:$0xff]
        %v1254 = vld [vmem:[#allocation2 + $0x8] sm:$0xff]
        %v1255 = vld [vmem:[#allocation2 + $0x18] sm:$0xff]
        %1256 = vrot.lane.b32.xlu0 %v893, 64
        %v1257 = vpop.permute.xlu0 %1256
        %1260 = vrot.lane.b32.xlu0 %v1252, 64
        %v1261 = vpop.permute.xlu0 %1260
        %1262 = vrot.lane.b32.xlu0 %v1253, 64
        %v1263 = vpop.permute.xlu0 %1262
        %v1264 = vsel %vm900, %v1257, 0
        %v1266 = vsel %vm900, %v1261, 0
        %v1268 = vsel %vm900, %v1263, 0
        %1270 = vmatprep.subr.mxu0 0.0
        %1271 = vmatpush1.xpose.msra.mxu0 %v1266
        %1272 = vmatprep.subr.mxu0 0.0
        %1273 = vmatpush1.xpose.msra.mxu0 %v1268
        %1274 = vmatprep.subr.mxu0 0.0
        %1275 = vmatpush1.xpose.msra.mxu0 0.0
        %1276 = vmatprep.subr.mxu0 0.0
        %1277 = vmatpush1.xpose.msra.mxu0 0.0
        %1278 = vmatprep.subr.mxu0 0.0
        %1279 = vmatpush1.xpose.msra.mxu0 0.0
        %1280 = vmatprep.subr.mxu0 0.0
        %1281 = vmatpush1.xpose.msra.mxu0 0.0
        %1282 = vmatprep.subr.mxu0 0.0
        %1283 = vmatpush1.xpose.msra.mxu0 0.0
        %1284 = vmatprep.subr.mxu0 0.0
        %1285 = vmatpush1.xpose.msra.mxu0 0.0
        %1286 = vmatprep.subr.mxu0 0.0
        %1287 = vmatpush1.xpose.msra.mxu0 0.0
        %1288 = vmatprep.subr.mxu0 0.0
        %1289 = vmatpush1.xpose.msra.mxu0 0.0
        %1290 = vmatprep.subr.mxu0 0.0
        %1291 = vmatpush1.xpose.msra.mxu0 0.0
        %1292 = vmatprep.subr.mxu0 0.0
        %1293 = vmatpush1.xpose.msra.mxu0 0.0
        %1294 = vmatprep.subr.mxu0 0.0
        %1295 = vmatpush1.xpose.msra.mxu0 0.0
        %1296 = vmatprep.subr.mxu0 0.0
        %1297 = vmatpush1.xpose.msra.mxu0 0.0
        %1298 = vmatprep.subr.mxu0 0.0
        %1299 = vmatpush1.xpose.msra.mxu0 0.0
        %1300 = vmatprep.subr.mxu0 0.0
        %1301 = vmatpush1.xpose.msra.mxu0 0.0
        %1302 = vmatprep.subr.mxu0 0.0
        %1303 = vmatpush1.xpose.msra.mxu0 0.0
        %1304 = vmatprep.subr.mxu0 0.0
        %1305 = vmatpush1.xpose.msra.mxu0 0.0
        %1306 = vmatprep.subr.mxu0 0.0
        %1307 = vmatpush1.xpose.msra.mxu0 0.0
        %1308 = vmatprep.subr.mxu0 0.0
        %1309 = vmatpush1.xpose.msra.mxu0 0.0
        %1310 = vmatprep.subr.mxu0 0.0
        %1311 = vmatpush1.xpose.msra.mxu0 0.0
        %1312 = vmatprep.subr.mxu0 0.0
        %1313 = vmatpush1.xpose.msra.mxu0 0.0
        %1314 = vmatprep.subr.mxu0 0.0
        %1315 = vmatpush1.xpose.msra.mxu0 0.0
        %1316 = vmatprep.subr.mxu0 0.0
        %1317 = vmatpush1.xpose.msra.mxu0 0.0
        %1318 = vmatprep.subr.mxu0 0.0
        %1319 = vmatpush1.xpose.msra.mxu0 0.0
        %1320 = vmatprep.subr.mxu0 0.0
        %1321 = vmatpush1.xpose.msra.mxu0 0.0
        %1322 = vmatprep.subr.mxu0 0.0
        %1323 = vmatpush1.xpose.msra.mxu0 0.0
        %1324 = vmatprep.subr.mxu0 0.0
        %1325 = vmatpush1.xpose.msra.mxu0 0.0
        %1326 = vmatprep.subr.mxu0 0.0
        %1327 = vmatpush1.xpose.msra.mxu0 0.0
        %1328 = vmatprep.subr.mxu0 0.0
        %1329 = vmatpush1.xpose.msra.mxu0 0.0
        %1330 = vmatprep.subr.mxu0 0.0
        %1331 = vmatpush1.xpose.msra.mxu0 0.0
        %1332 = vmatprep.subr.mxu0 0.0
        %1333 = vmatpush1.xpose.msra.mxu0 0.0
        %1334 = vmatprep.mubr.f32.mxu0 0.0
        %1335 = vmatmul.mubr.f32.gmra.mrb[0].mxu0 %v1264
        %v1336 = vpop.f32.mrb[0].mxu0
        %v1337 = vadd.f32 0.0, %v1336
        %v1338 = vpop.f32.mrb[0].mxu0
        %1339 = vdwg.mxu0
        %v1340 = vsel %vm980, %v1337, -inf
        %1341 = vmax.xlane.f32.xlu0 %v1340
        %v1342 = vpop.xlane.xlu0 %1341
        %v1343 = vsub.f32 %v1337, %v1342
        %v1344 = vmul.f32 %v1343, 1.442695
        %v1345 = vpow.pop %v1344
        %v1346 = vsel %vm980, %v1345, 0.0
        %1347 = vadd.xlane.f32.xlu0 %v1346
        %v1348 = vpop.xlane.xlu0 %1347
        %v1349 = vrcp.pop %v1348
        %v1350 = vmul.f32 %v1345, %v1349
        %1353 = vrot.lane.b32.xlu0 %v1254, 64
        %v1354 = vpop.permute.xlu0 %1353
        %1355 = vrot.lane.b32.xlu0 %v1255, 64
        %v1356 = vpop.permute.xlu0 %1355
        %v1360 = vsel %vm980, %v1350, 0
        %1362 = vmatprep.subr.mxu0 0.0
        %1363 = vmatpush1.msra.mxu0 %v1354
        %1364 = vmatprep.subr.mxu0 0.0
        %1365 = vmatpush1.msra.mxu0 %v1356
        %1366 = vmatprep.subr.mxu0 0.0
        %1367 = vmatpush1.msra.mxu0 0.0
        %1368 = vmatprep.subr.mxu0 0.0
        %1369 = vmatpush1.msra.mxu0 0.0
        %1370 = vmatprep.subr.mxu0 0.0
        %1371 = vmatpush1.msra.mxu0 0.0
        %1372 = vmatprep.subr.mxu0 0.0
        %1373 = vmatpush1.msra.mxu0 0.0
        %1374 = vmatprep.subr.mxu0 0.0
        %1375 = vmatpush1.msra.mxu0 0.0
        %1376 = vmatprep.subr.mxu0 0.0
        %1377 = vmatpush1.msra.mxu0 0.0
        %1378 = vmatprep.subr.mxu0 0.0
        %1379 = vmatpush1.msra.mxu0 0.0
        %1380 = vmatprep.subr.mxu0 0.0
        %1381 = vmatpush1.msra.mxu0 0.0
        %1382 = vmatprep.subr.mxu0 0.0
        %1383 = vmatpush1.msra.mxu0 0.0
        %1384 = vmatprep.subr.mxu0 0.0
        %1385 = vmatpush1.msra.mxu0 0.0
        %1386 = vmatprep.subr.mxu0 0.0
        %1387 = vmatpush1.msra.mxu0 0.0
        %1388 = vmatprep.subr.mxu0 0.0
        %1389 = vmatpush1.msra.mxu0 0.0
        %1390 = vmatprep.subr.mxu0 0.0
        %1391 = vmatpush1.msra.mxu0 0.0
        %1392 = vmatprep.subr.mxu0 0.0
        %1393 = vmatpush1.msra.mxu0 0.0
        %1394 = vmatprep.subr.mxu0 0.0
        %1395 = vmatpush1.msra.mxu0 0.0
        %1396 = vmatprep.subr.mxu0 0.0
        %1397 = vmatpush1.msra.mxu0 0.0
        %1398 = vmatprep.subr.mxu0 0.0
        %1399 = vmatpush1.msra.mxu0 0.0
        %1400 = vmatprep.subr.mxu0 0.0
        %1401 = vmatpush1.msra.mxu0 0.0
        %1402 = vmatprep.subr.mxu0 0.0
        %1403 = vmatpush1.msra.mxu0 0.0
        %1404 = vmatprep.subr.mxu0 0.0
        %1405 = vmatpush1.msra.mxu0 0.0
        %1406 = vmatprep.subr.mxu0 0.0
        %1407 = vmatpush1.msra.mxu0 0.0
        %1408 = vmatprep.subr.mxu0 0.0
        %1409 = vmatpush1.msra.mxu0 0.0
        %1410 = vmatprep.subr.mxu0 0.0
        %1411 = vmatpush1.msra.mxu0 0.0
        %1412 = vmatprep.subr.mxu0 0.0
        %1413 = vmatpush1.msra.mxu0 0.0
        %1414 = vmatprep.subr.mxu0 0.0
        %1415 = vmatpush1.msra.mxu0 0.0
        %1416 = vmatprep.subr.mxu0 0.0
        %1417 = vmatpush1.msra.mxu0 0.0
        %1418 = vmatprep.subr.mxu0 0.0
        %1419 = vmatpush1.msra.mxu0 0.0
        %1420 = vmatprep.subr.mxu0 0.0
        %1421 = vmatpush1.msra.mxu0 0.0
        %1422 = vmatprep.subr.mxu0 0.0
        %1423 = vmatpush1.msra.mxu0 0.0
        %1424 = vmatprep.subr.mxu0 0.0
        %1425 = vmatpush1.msra.mxu0 0.0
        %1426 = vmatprep.mubr.f32.mxu0 0.0
        %1427 = vmatmul.mubr.f32.gmra.mrb[0].mxu0 %v1360
        %v1428 = vpop.f32.mrb[0].mxu0
        %v1429 = vadd.f32 0.0, %v1428
        %v1430 = vpop.f32.mrb[0].mxu0
        %1431 = vdwg.mxu0
        %1433 = vrot.lane.b32.xlu0 %v1429, 64
        %v1434 = vpop.permute.xlu0 %1433
        %vm1436 = vcmask 785920
        %1437 = vst.msk [vmem:[#allocation3] sm:$0xff] %vm1436, %v1434
        %v1438 = vld [vmem:[#allocation2] sm:$0xff]
        %v1439 = vld [vmem:[#allocation2 + $0x10] sm:$0xff]
        %v1440 = vld [vmem:[#allocation2 + $0x8] sm:$0xff]
        %v1441 = vld [vmem:[#allocation2 + $0x18] sm:$0xff]
        %1442 = vrot.lane.b32.xlu0 %v893, 32
        %v1443 = vpop.permute.xlu0 %1442
        %1446 = vrot.lane.b32.xlu0 %v1438, 32
        %v1447 = vpop.permute.xlu0 %1446
        %1448 = vrot.lane.b32.xlu0 %v1439, 32
        %v1449 = vpop.permute.xlu0 %1448
        %v1450 = vsel %vm900, %v1443, 0
        %v1452 = vsel %vm900, %v1447, 0
        %v1454 = vsel %vm900, %v1449, 0
        %1456 = vmatprep.subr.mxu0 0.0
        %1457 = vmatpush1.xpose.msra.mxu0 %v1452
        %1458 = vmatprep.subr.mxu0 0.0
        %1459 = vmatpush1.xpose.msra.mxu0 %v1454
        %1460 = vmatprep.subr.mxu0 0.0
        %1461 = vmatpush1.xpose.msra.mxu0 0.0
        %1462 = vmatprep.subr.mxu0 0.0
        %1463 = vmatpush1.xpose.msra.mxu0 0.0
        %1464 = vmatprep.subr.mxu0 0.0
        %1465 = vmatpush1.xpose.msra.mxu0 0.0
        %1466 = vmatprep.subr.mxu0 0.0
        %1467 = vmatpush1.xpose.msra.mxu0 0.0
        %1468 = vmatprep.subr.mxu0 0.0
        %1469 = vmatpush1.xpose.msra.mxu0 0.0
        %1470 = vmatprep.subr.mxu0 0.0
        %1471 = vmatpush1.xpose.msra.mxu0 0.0
        %1472 = vmatprep.subr.mxu0 0.0
        %1473 = vmatpush1.xpose.msra.mxu0 0.0
        %1474 = vmatprep.subr.mxu0 0.0
        %1475 = vmatpush1.xpose.msra.mxu0 0.0
        %1476 = vmatprep.subr.mxu0 0.0
        %1477 = vmatpush1.xpose.msra.mxu0 0.0
        %1478 = vmatprep.subr.mxu0 0.0
        %1479 = vmatpush1.xpose.msra.mxu0 0.0
        %1480 = vmatprep.subr.mxu0 0.0
        %1481 = vmatpush1.xpose.msra.mxu0 0.0
        %1482 = vmatprep.subr.mxu0 0.0
        %1483 = vmatpush1.xpose.msra.mxu0 0.0
        %1484 = vmatprep.subr.mxu0 0.0
        %1485 = vmatpush1.xpose.msra.mxu0 0.0
        %1486 = vmatprep.subr.mxu0 0.0
        %1487 = vmatpush1.xpose.msra.mxu0 0.0
        %1488 = vmatprep.subr.mxu0 0.0
        %1489 = vmatpush1.xpose.msra.mxu0 0.0
        %1490 = vmatprep.subr.mxu0 0.0
        %1491 = vmatpush1.xpose.msra.mxu0 0.0
        %1492 = vmatprep.subr.mxu0 0.0
        %1493 = vmatpush1.xpose.msra.mxu0 0.0
        %1494 = vmatprep.subr.mxu0 0.0
        %1495 = vmatpush1.xpose.msra.mxu0 0.0
        %1496 = vmatprep.subr.mxu0 0.0
        %1497 = vmatpush1.xpose.msra.mxu0 0.0
        %1498 = vmatprep.subr.mxu0 0.0
        %1499 = vmatpush1.xpose.msra.mxu0 0.0
        %1500 = vmatprep.subr.mxu0 0.0
        %1501 = vmatpush1.xpose.msra.mxu0 0.0
        %1502 = vmatprep.subr.mxu0 0.0
        %1503 = vmatpush1.xpose.msra.mxu0 0.0
        %1504 = vmatprep.subr.mxu0 0.0
        %1505 = vmatpush1.xpose.msra.mxu0 0.0
        %1506 = vmatprep.subr.mxu0 0.0
        %1507 = vmatpush1.xpose.msra.mxu0 0.0
        %1508 = vmatprep.subr.mxu0 0.0
        %1509 = vmatpush1.xpose.msra.mxu0 0.0
        %1510 = vmatprep.subr.mxu0 0.0
        %1511 = vmatpush1.xpose.msra.mxu0 0.0
        %1512 = vmatprep.subr.mxu0 0.0
        %1513 = vmatpush1.xpose.msra.mxu0 0.0
        %1514 = vmatprep.subr.mxu0 0.0
        %1515 = vmatpush1.xpose.msra.mxu0 0.0
        %1516 = vmatprep.subr.mxu0 0.0
        %1517 = vmatpush1.xpose.msra.mxu0 0.0
        %1518 = vmatprep.subr.mxu0 0.0
        %1519 = vmatpush1.xpose.msra.mxu0 0.0
        %1520 = vmatprep.mubr.f32.mxu0 0.0
        %1521 = vmatmul.mubr.f32.gmra.mrb[0].mxu0 %v1450
        %v1522 = vpop.f32.mrb[0].mxu0
        %v1523 = vadd.f32 0.0, %v1522
        %v1524 = vpop.f32.mrb[0].mxu0
        %1525 = vdwg.mxu0
        %v1526 = vsel %vm980, %v1523, -inf
        %1527 = vmax.xlane.f32.xlu0 %v1526
        %v1528 = vpop.xlane.xlu0 %1527
        %v1529 = vsub.f32 %v1523, %v1528
        %v1530 = vmul.f32 %v1529, 1.442695
        %v1531 = vpow.pop %v1530
        %v1532 = vsel %vm980, %v1531, 0.0
        %1533 = vadd.xlane.f32.xlu0 %v1532
        %v1534 = vpop.xlane.xlu0 %1533
        %v1535 = vrcp.pop %v1534
        %v1536 = vmul.f32 %v1531, %v1535
        %1539 = vrot.lane.b32.xlu0 %v1440, 32
        %v1540 = vpop.permute.xlu0 %1539
        %1541 = vrot.lane.b32.xlu0 %v1441, 32
        %v1542 = vpop.permute.xlu0 %1541
        %v1546 = vsel %vm980, %v1536, 0
        %1548 = vmatprep.subr.mxu0 0.0
        %1549 = vmatpush1.msra.mxu0 %v1540
        %1550 = vmatprep.subr.mxu0 0.0
        %1551 = vmatpush1.msra.mxu0 %v1542
        %1552 = vmatprep.subr.mxu0 0.0
        %1553 = vmatpush1.msra.mxu0 0.0
        %1554 = vmatprep.subr.mxu0 0.0
        %1555 = vmatpush1.msra.mxu0 0.0
        %1556 = vmatprep.subr.mxu0 0.0
        %1557 = vmatpush1.msra.mxu0 0.0
        %1558 = vmatprep.subr.mxu0 0.0
        %1559 = vmatpush1.msra.mxu0 0.0
        %1560 = vmatprep.subr.mxu0 0.0
        %1561 = vmatpush1.msra.mxu0 0.0
        %1562 = vmatprep.subr.mxu0 0.0
        %1563 = vmatpush1.msra.mxu0 0.0
        %1564 = vmatprep.subr.mxu0 0.0
        %1565 = vmatpush1.msra.mxu0 0.0
        %1566 = vmatprep.subr.mxu0 0.0
        %1567 = vmatpush1.msra.mxu0 0.0
        %1568 = vmatprep.subr.mxu0 0.0
        %1569 = vmatpush1.msra.mxu0 0.0
        %1570 = vmatprep.subr.mxu0 0.0
        %1571 = vmatpush1.msra.mxu0 0.0
        %1572 = vmatprep.subr.mxu0 0.0
        %1573 = vmatpush1.msra.mxu0 0.0
        %1574 = vmatprep.subr.mxu0 0.0
        %1575 = vmatpush1.msra.mxu0 0.0
        %1576 = vmatprep.subr.mxu0 0.0
        %1577 = vmatpush1.msra.mxu0 0.0
        %1578 = vmatprep.subr.mxu0 0.0
        %1579 = vmatpush1.msra.mxu0 0.0
        %1580 = vmatprep.subr.mxu0 0.0
        %1581 = vmatpush1.msra.mxu0 0.0
        %1582 = vmatprep.subr.mxu0 0.0
        %1583 = vmatpush1.msra.mxu0 0.0
        %1584 = vmatprep.subr.mxu0 0.0
        %1585 = vmatpush1.msra.mxu0 0.0
        %1586 = vmatprep.subr.mxu0 0.0
        %1587 = vmatpush1.msra.mxu0 0.0
        %1588 = vmatprep.subr.mxu0 0.0
        %1589 = vmatpush1.msra.mxu0 0.0
        %1590 = vmatprep.subr.mxu0 0.0
        %1591 = vmatpush1.msra.mxu0 0.0
        %1592 = vmatprep.subr.mxu0 0.0
        %1593 = vmatpush1.msra.mxu0 0.0
        %1594 = vmatprep.subr.mxu0 0.0
        %1595 = vmatpush1.msra.mxu0 0.0
        %1596 = vmatprep.subr.mxu0 0.0
        %1597 = vmatpush1.msra.mxu0 0.0
        %1598 = vmatprep.subr.mxu0 0.0
        %1599 = vmatpush1.msra.mxu0 0.0
        %1600 = vmatprep.subr.mxu0 0.0
        %1601 = vmatpush1.msra.mxu0 0.0
        %1602 = vmatprep.subr.mxu0 0.0
        %1603 = vmatpush1.msra.mxu0 0.0
        %1604 = vmatprep.subr.mxu0 0.0
        %1605 = vmatpush1.msra.mxu0 0.0
        %1606 = vmatprep.subr.mxu0 0.0
        %1607 = vmatpush1.msra.mxu0 0.0
        %1608 = vmatprep.subr.mxu0 0.0
        %1609 = vmatpush1.msra.mxu0 0.0
        %1610 = vmatprep.subr.mxu0 0.0
        %1611 = vmatpush1.msra.mxu0 0.0
        %1612 = vmatprep.mubr.f32.mxu0 0.0
        %1613 = vmatmul.mubr.f32.gmra.mrb[0].mxu0 %v1546
        %v1614 = vpop.f32.mrb[0].mxu0
        %v1615 = vadd.f32 0.0, %v1614
        %v1616 = vpop.f32.mrb[0].mxu0
        %1617 = vdwg.mxu0
        %1619 = vrot.lane.b32.xlu0 %v1615, 96
        %v1620 = vpop.permute.xlu0 %1619
        %vm1622 = vcmask 1048320
        %1623 = vst.msk [vmem:[#allocation3] sm:$0xff] %vm1622, %v1620
        %v1624 = vld [vmem:[#allocation3] sm:$0xff]
        %v1625 = vld [vmem:[#allocation12] sm:$0xff]
        %v1626 = vld [vmem:[#allocation12 + $0x8] sm:$0xff]
        %v1627 = vld [vmem:[#allocation12 + $0x10] sm:$0xff]
        %v1628 = vld [vmem:[#allocation12 + $0x18] sm:$0xff]
        %v1629 = vld [vmem:[#allocation12 + $0x20] sm:$0xff]
        %v1630 = vld [vmem:[#allocation12 + $0x28] sm:$0xff]
        %v1631 = vld [vmem:[#allocation12 + $0x30] sm:$0xff]
        %v1632 = vld [vmem:[#allocation12 + $0x38] sm:$0xff]
        %v1633 = vld [vmem:[#allocation12 + $0x40] sm:$0xff]
        %v1634 = vld [vmem:[#allocation12 + $0x48] sm:$0xff]
        %v1635 = vld [vmem:[#allocation12 + $0x50] sm:$0xff]
        %v1636 = vld [vmem:[#allocation12 + $0x58] sm:$0xff]
        %v1637 = vld [vmem:[#allocation12 + $0x60] sm:$0xff]
        %v1638 = vld [vmem:[#allocation12 + $0x68] sm:$0xff]
        %v1639 = vld [vmem:[#allocation12 + $0x70] sm:$0xff]
        %v1640 = vld [vmem:[#allocation12 + $0x78] sm:$0xff]
        %v1641 = vld [vmem:[%s7] sm:$0x1]
        %v1643 = vlaneseq
        %v1644 = vshrl.u32 %v1643, 7
        %v1645 = vsub.s32 0, %v1644
        %v1646 = vrot.slane %v1641, %v1645
        %1648 = vmatprep.subr.mxu0 0.0
        %1649 = vmatpush1.msra.mxu0 %v1625
        %1650 = vmatprep.subr.mxu0 0.0
        %1651 = vmatpush1.msra.mxu0 %v1626
        %1652 = vmatprep.subr.mxu0 0.0
        %1653 = vmatpush1.msra.mxu0 %v1627
        %1654 = vmatprep.subr.mxu0 0.0
        %1655 = vmatpush1.msra.mxu0 %v1628
        %1656 = vmatprep.subr.mxu0 0.0
        %1657 = vmatpush1.msra.mxu0 %v1629
        %1658 = vmatprep.subr.mxu0 0.0
        %1659 = vmatpush1.msra.mxu0 %v1630
        %1660 = vmatprep.subr.mxu0 0.0
        %1661 = vmatpush1.msra.mxu0 %v1631
        %1662 = vmatprep.subr.mxu0 0.0
        %1663 = vmatpush1.msra.mxu0 %v1632
        %1664 = vmatprep.subr.mxu0 0.0
        %1665 = vmatpush1.msra.mxu0 %v1633
        %1666 = vmatprep.subr.mxu0 0.0
        %1667 = vmatpush1.msra.mxu0 %v1634
        %1668 = vmatprep.subr.mxu0 0.0
        %1669 = vmatpush1.msra.mxu0 %v1635
        %1670 = vmatprep.subr.mxu0 0.0
        %1671 = vmatpush1.msra.mxu0 %v1636
        %1672 = vmatprep.subr.mxu0 0.0
        %1673 = vmatpush1.msra.mxu0 %v1637
        %1674 = vmatprep.subr.mxu0 0.0
        %1675 = vmatpush1.msra.mxu0 %v1638
        %1676 = vmatprep.subr.mxu0 0.0
        %1677 = vmatpush1.msra.mxu0 %v1639
        %1678 = vmatprep.subr.mxu0 0.0
        %1679 = vmatpush1.msra.mxu0 %v1640
        %1680 = vmatprep.subr.mxu0 0.0
        %1681 = vmatpush1.msra.mxu0 0.0
        %1682 = vmatprep.subr.mxu0 0.0
        %1683 = vmatpush1.msra.mxu0 0.0
        %1684 = vmatprep.subr.mxu0 0.0
        %1685 = vmatpush1.msra.mxu0 0.0
        %1686 = vmatprep.subr.mxu0 0.0
        %1687 = vmatpush1.msra.mxu0 0.0
        %1688 = vmatprep.subr.mxu0 0.0
        %1689 = vmatpush1.msra.mxu0 0.0
        %1690 = vmatprep.subr.mxu0 0.0
        %1691 = vmatpush1.msra.mxu0 0.0
        %1692 = vmatprep.subr.mxu0 0.0
        %1693 = vmatpush1.msra.mxu0 0.0
        %1694 = vmatprep.subr.mxu0 0.0
        %1695 = vmatpush1.msra.mxu0 0.0
        %1696 = vmatprep.subr.mxu0 0.0
        %1697 = vmatpush1.msra.mxu0 0.0
        %1698 = vmatprep.subr.mxu0 0.0
        %1699 = vmatpush1.msra.mxu0 0.0
        %1700 = vmatprep.subr.mxu0 0.0
        %1701 = vmatpush1.msra.mxu0 0.0
        %1702 = vmatprep.subr.mxu0 0.0
        %1703 = vmatpush1.msra.mxu0 0.0
        %1704 = vmatprep.subr.mxu0 0.0
        %1705 = vmatpush1.msra.mxu0 0.0
        %1706 = vmatprep.subr.mxu0 0.0
        %1707 = vmatpush1.msra.mxu0 0.0
        %1708 = vmatprep.subr.mxu0 0.0
        %1709 = vmatpush1.msra.mxu0 0.0
        %1710 = vmatprep.subr.mxu0 0.0
        %1711 = vmatpush1.msra.mxu0 0.0
        %1712 = vmatprep.mubr.f32.mxu0 0.0
        %1713 = vmatmul.mubr.f32.gmra.mrb[0].mxu0 %v1624
        %v1714 = vpop.f32.mrb[0].mxu0
        %v1715 = vadd.f32 %v1646, %v1714
        %v1716 = vpop.f32.mrb[0].mxu0
        %1717 = vdwg.mxu0
        %v1718 = vadd.f32 %v1715, %v802
        %v1719 = vld [vmem:[%s8] sm:$0x1]
        %v1720 = vld [vmem:[%s9] sm:$0x1]
        %1721 = vadd.xlane.f32.xlu0 %v1718
        %v1722 = vpop.xlane.xlu0 %1721
        %v1723 = vrcp.pop 128.0
        %v1724 = vmul.f32 %v1722, %v1723
        %v1725 = vsub.f32 %v1718, %v1724
        %v1726 = vmul.f32 %v1725, %v1725
        %1727 = vadd.xlane.f32.xlu0 %v1726
        %v1728 = vpop.xlane.xlu0 %1727
        %v1729 = vmul.f32 %v1728, %v1723
        %v1730 = vadd.f32 %v1729, 1e-05
        %v1731 = vrsqrt.pop %v1730
        %v1732 = vmul.f32 %v1725, %v1731
        %v1734 = vlaneseq
        %v1735 = vshrl.u32 %v1734, 7
        %v1736 = vsub.s32 0, %v1735
        %v1737 = vrot.slane %v1719, %v1736
        %v1739 = vmul.f32 %v1737, %v1732
        %v1741 = vlaneseq
        %v1742 = vshrl.u32 %v1741, 7
        %v1743 = vsub.s32 0, %v1742
        %v1744 = vrot.slane %v1720, %v1743
        %v1746 = vadd.f32 %v1739, %v1744
        %v1747 = vld [vmem:[#allocation13] sm:$0xff]
        %v1748 = vld [vmem:[#allocation13 + $0x8] sm:$0xff]
        %v1749 = vld [vmem:[#allocation13 + $0x10] sm:$0xff]
        %v1750 = vld [vmem:[#allocation13 + $0x18] sm:$0xff]
        %v1751 = vld [vmem:[#allocation13 + $0x20] sm:$0xff]
        %v1752 = vld [vmem:[#allocation13 + $0x28] sm:$0xff]
        %v1753 = vld [vmem:[#allocation13 + $0x30] sm:$0xff]
        %v1754 = vld [vmem:[#allocation13 + $0x38] sm:$0xff]
        %v1755 = vld [vmem:[#allocation13 + $0x40] sm:$0xff]
        %v1756 = vld [vmem:[#allocation13 + $0x48] sm:$0xff]
        %v1757 = vld [vmem:[#allocation13 + $0x50] sm:$0xff]
        %v1758 = vld [vmem:[#allocation13 + $0x58] sm:$0xff]
        %v1759 = vld [vmem:[#allocation13 + $0x60] sm:$0xff]
        %v1760 = vld [vmem:[#allocation13 + $0x68] sm:$0xff]
        %v1761 = vld [vmem:[#allocation13 + $0x70] sm:$0xff]
        %v1762 = vld [vmem:[#allocation13 + $0x78] sm:$0xff]
        %v1763 = vld [vmem:[#allocation13 + $0x80] sm:$0xff]
        %v1764 = vld [vmem:[#allocation13 + $0x88] sm:$0xff]
        %v1765 = vld [vmem:[#allocation13 + $0x90] sm:$0xff]
        %v1766 = vld [vmem:[#allocation13 + $0x98] sm:$0xff]
        %v1767 = vld [vmem:[#allocation13 + $0xa0] sm:$0xff]
        %v1768 = vld [vmem:[#allocation13 + $0xa8] sm:$0xff]
        %v1769 = vld [vmem:[#allocation13 + $0xb0] sm:$0xff]
        %v1770 = vld [vmem:[#allocation13 + $0xb8] sm:$0xff]
        %v1771 = vld [vmem:[#allocation13 + $0xc0] sm:$0xff]
        %v1772 = vld [vmem:[#allocation13 + $0xc8] sm:$0xff]
        %v1773 = vld [vmem:[#allocation13 + $0xd0] sm:$0xff]
        %v1774 = vld [vmem:[#allocation13 + $0xd8] sm:$0xff]
        %v1775 = vld [vmem:[#allocation13 + $0xe0] sm:$0xff]
        %v1776 = vld [vmem:[#allocation13 + $0xe8] sm:$0xff]
        %v1777 = vld [vmem:[#allocation13 + $0xf0] sm:$0xff]
        %v1778 = vld [vmem:[#allocation13 + $0xf8] sm:$0xff]
        %v1779 = vld [vmem:[%s11] sm:$0x3]
        %v1781 = vlaneseq
        %v1782 = vshrl.u32 %v1781, 7
        %v1783 = vsub.s32 0, %v1782
        %v1784 = vrot.slane %v1779, %v1783
        %v1785 = vlaneseq
        %v1786 = vshrl.u32 %v1785, 7
        %v1787 = vsub.s32 1, %v1786
        %v1788 = vrot.slane %v1779, %v1787
        %1791 = vmatprep.subr.mxu0 %v1748
        %1792 = vmatpush1.msra.mxu0 %v1747
        %1793 = vmatprep.subr.mxu0 %v1750
        %1794 = vmatpush1.msra.mxu0 %v1749
        %1795 = vmatprep.subr.mxu0 %v1752
        %1796 = vmatpush1.msra.mxu0 %v1751
        %1797 = vmatprep.subr.mxu0 %v1754
        %1798 = vmatpush1.msra.mxu0 %v1753
        %1799 = vmatprep.subr.mxu0 %v1756
        %1800 = vmatpush1.msra.mxu0 %v1755
        %1801 = vmatprep.subr.mxu0 %v1758
        %1802 = vmatpush1.msra.mxu0 %v1757
        %1803 = vmatprep.subr.mxu0 %v1760
        %1804 = vmatpush1.msra.mxu0 %v1759
        %1805 = vmatprep.subr.mxu0 %v1762
        %1806 = vmatpush1.msra.mxu0 %v1761
        %1807 = vmatprep.subr.mxu0 %v1764
        %1808 = vmatpush1.msra.mxu0 %v1763
        %1809 = vmatprep.subr.mxu0 %v1766
        %1810 = vmatpush1.msra.mxu0 %v1765
        %1811 = vmatprep.subr.mxu0 %v1768
        %1812 = vmatpush1.msra.mxu0 %v1767
        %1813 = vmatprep.subr.mxu0 %v1770
        %1814 = vmatpush1.msra.mxu0 %v1769
        %1815 = vmatprep.subr.mxu0 %v1772
        %1816 = vmatpush1.msra.mxu0 %v1771
        %1817 = vmatprep.subr.mxu0 %v1774
        %1818 = vmatpush1.msra.mxu0 %v1773
        %1819 = vmatprep.subr.mxu0 %v1776
        %1820 = vmatpush1.msra.mxu0 %v1775
        %1821 = vmatprep.subr.mxu0 %v1778
        %1822 = vmatpush1.msra.mxu0 %v1777
        %1823 = vmatprep.subr.mxu0 0.0
        %1824 = vmatpush1.msra.mxu0 0.0
        %1825 = vmatprep.subr.mxu0 0.0
        %1826 = vmatpush1.msra.mxu0 0.0
        %1827 = vmatprep.subr.mxu0 0.0
        %1828 = vmatpush1.msra.mxu0 0.0
        %1829 = vmatprep.subr.mxu0 0.0
        %1830 = vmatpush1.msra.mxu0 0.0
        %1831 = vmatprep.subr.mxu0 0.0
        %1832 = vmatpush1.msra.mxu0 0.0
        %1833 = vmatprep.subr.mxu0 0.0
        %1834 = vmatpush1.msra.mxu0 0.0
        %1835 = vmatprep.subr.mxu0 0.0
        %1836 = vmatpush1.msra.mxu0 0.0
        %1837 = vmatprep.subr.mxu0 0.0
        %1838 = vmatpush1.msra.mxu0 0.0
        %1839 = vmatprep.subr.mxu0 0.0
        %1840 = vmatpush1.msra.mxu0 0.0
        %1841 = vmatprep.subr.mxu0 0.0
        %1842 = vmatpush1.msra.mxu0 0.0
        %1843 = vmatprep.subr.mxu0 0.0
        %1844 = vmatpush1.msra.mxu0 0.0
        %1845 = vmatprep.subr.mxu0 0.0
        %1846 = vmatpush1.msra.mxu0 0.0
        %1847 = vmatprep.subr.mxu0 0.0
        %1848 = vmatpush1.msra.mxu0 0.0
        %1849 = vmatprep.subr.mxu0 0.0
        %1850 = vmatpush1.msra.mxu0 0.0
        %1851 = vmatprep.subr.mxu0 0.0
        %1852 = vmatpush1.msra.mxu0 0.0
        %1853 = vmatprep.subr.mxu0 0.0
        %1854 = vmatpush1.msra.mxu0 0.0
        %1855 = vmatprep.mubr.f32.mxu0 0.0
        %1856 = vmatmul.mubr.f32.gmra.mrb[0].mxu0 %v1746
        %v1857 = vpop.f32.mrb[0].mxu0
        %v1858 = vadd.f32 %v1784, %v1857
        %v1859 = vpop.f32.mrb[0].mxu0
        %v1860 = vadd.f32 %v1788, %v1859
        %1861 = vdwg.mxu0
        %v1862 = vmax.f32 %v1858, 0.0
        %v1863 = vmax.f32 %v1860, 0.0
        %v1864 = vld [vmem:[#allocation15] sm:$0xff]
        %v1865 = vld [vmem:[#allocation15 + $0x8] sm:$0xff]
        %v1866 = vld [vmem:[#allocation15 + $0x10] sm:$0xff]
        %v1867 = vld [vmem:[#allocation15 + $0x18] sm:$0xff]
        %v1868 = vld [vmem:[#allocation15 + $0x20] sm:$0xff]
        %v1869 = vld [vmem:[#allocation15 + $0x28] sm:$0xff]
        %v1870 = vld [vmem:[#allocation15 + $0x30] sm:$0xff]
        %v1871 = vld [vmem:[#allocation15 + $0x38] sm:$0xff]
        %v1872 = vld [vmem:[#allocation15 + $0x40] sm:$0xff]
        %v1873 = vld [vmem:[#allocation15 + $0x48] sm:$0xff]
        %v1874 = vld [vmem:[#allocation15 + $0x50] sm:$0xff]
        %v1875 = vld [vmem:[#allocation15 + $0x58] sm:$0xff]
        %v1876 = vld [vmem:[#allocation15 + $0x60] sm:$0xff]
        %v1877 = vld [vmem:[#allocation15 + $0x68] sm:$0xff]
        %v1878 = vld [vmem:[#allocation15 + $0x70] sm:$0xff]
        %v1879 = vld [vmem:[#allocation15 + $0x78] sm:$0xff]
        %v1880 = vld [vmem:[#allocation15 + $0x80] sm:$0xff]
        %v1881 = vld [vmem:[#allocation15 + $0x88] sm:$0xff]
        %v1882 = vld [vmem:[#allocation15 + $0x90] sm:$0xff]
        %v1883 = vld [vmem:[#allocation15 + $0x98] sm:$0xff]
        %v1884 = vld [vmem:[#allocation15 + $0xa0] sm:$0xff]
        %v1885 = vld [vmem:[#allocation15 + $0xa8] sm:$0xff]
        %v1886 = vld [vmem:[#allocation15 + $0xb0] sm:$0xff]
        %v1887 = vld [vmem:[#allocation15 + $0xb8] sm:$0xff]
        %v1888 = vld [vmem:[#allocation15 + $0xc0] sm:$0xff]
        %v1889 = vld [vmem:[#allocation15 + $0xc8] sm:$0xff]
        %v1890 = vld [vmem:[#allocation15 + $0xd0] sm:$0xff]
        %v1891 = vld [vmem:[#allocation15 + $0xd8] sm:$0xff]
        %v1892 = vld [vmem:[#allocation15 + $0xe0] sm:$0xff]
        %v1893 = vld [vmem:[#allocation15 + $0xe8] sm:$0xff]
        %v1894 = vld [vmem:[#allocation15 + $0xf0] sm:$0xff]
        %v1895 = vld [vmem:[#allocation15 + $0xf8] sm:$0xff]
        %v1896 = vld [vmem:[%s13] sm:$0x1]
        %v1898 = vlaneseq
        %v1899 = vshrl.u32 %v1898, 7
        %v1900 = vsub.s32 0, %v1899
        %v1901 = vrot.slane %v1896, %v1900
        %1903 = vmatprep.subr.mxu0 0.0
        %1904 = vmatpush1.msra.mxu0 %v1864
        %1905 = vmatprep.subr.mxu0 0.0
        %1906 = vmatpush1.msra.mxu0 %v1865
        %1907 = vmatprep.subr.mxu0 0.0
        %1908 = vmatpush1.msra.mxu0 %v1866
        %1909 = vmatprep.subr.mxu0 0.0
        %1910 = vmatpush1.msra.mxu0 %v1867
        %1911 = vmatprep.subr.mxu0 0.0
        %1912 = vmatpush1.msra.mxu0 %v1868
        %1913 = vmatprep.subr.mxu0 0.0
        %1914 = vmatpush1.msra.mxu0 %v1869
        %1915 = vmatprep.subr.mxu0 0.0
        %1916 = vmatpush1.msra.mxu0 %v1870
        %1917 = vmatprep.subr.mxu0 0.0
        %1918 = vmatpush1.msra.mxu0 %v1871
        %1919 = vmatprep.subr.mxu0 0.0
        %1920 = vmatpush1.msra.mxu0 %v1872
        %1921 = vmatprep.subr.mxu0 0.0
        %1922 = vmatpush1.msra.mxu0 %v1873
        %1923 = vmatprep.subr.mxu0 0.0
        %1924 = vmatpush1.msra.mxu0 %v1874
        %1925 = vmatprep.subr.mxu0 0.0
        %1926 = vmatpush1.msra.mxu0 %v1875
        %1927 = vmatprep.subr.mxu0 0.0
        %1928 = vmatpush1.msra.mxu0 %v1876
        %1929 = vmatprep.subr.mxu0 0.0
        %1930 = vmatpush1.msra.mxu0 %v1877
        %1931 = vmatprep.subr.mxu0 0.0
        %1932 = vmatpush1.msra.mxu0 %v1878
        %1933 = vmatprep.subr.mxu0 0.0
        %1934 = vmatpush1.msra.mxu0 %v1879
        %1935 = vmatprep.subr.mxu0 0.0
        %1936 = vmatpush1.msra.mxu0 %v1880
        %1937 = vmatprep.subr.mxu0 0.0
        %1938 = vmatpush1.msra.mxu0 %v1881
        %1939 = vmatprep.subr.mxu0 0.0
        %1940 = vmatpush1.msra.mxu0 %v1882
        %1941 = vmatprep.subr.mxu0 0.0
        %1942 = vmatpush1.msra.mxu0 %v1883
        %1943 = vmatprep.subr.mxu0 0.0
        %1944 = vmatpush1.msra.mxu0 %v1884
        %1945 = vmatprep.subr.mxu0 0.0
        %1946 = vmatpush1.msra.mxu0 %v1885
        %1947 = vmatprep.subr.mxu0 0.0
        %1948 = vmatpush1.msra.mxu0 %v1886
        %1949 = vmatprep.subr.mxu0 0.0
        %1950 = vmatpush1.msra.mxu0 %v1887
        %1951 = vmatprep.subr.mxu0 0.0
        %1952 = vmatpush1.msra.mxu0 %v1888
        %1953 = vmatprep.subr.mxu0 0.0
        %1954 = vmatpush1.msra.mxu0 %v1889
        %1955 = vmatprep.subr.mxu0 0.0
        %1956 = vmatpush1.msra.mxu0 %v1890
        %1957 = vmatprep.subr.mxu0 0.0
        %1958 = vmatpush1.msra.mxu0 %v1891
        %1959 = vmatprep.subr.mxu0 0.0
        %1960 = vmatpush1.msra.mxu0 %v1892
        %1961 = vmatprep.subr.mxu0 0.0
        %1962 = vmatpush1.msra.mxu0 %v1893
        %1963 = vmatprep.subr.mxu0 0.0
        %1964 = vmatpush1.msra.mxu0 %v1894
        %1965 = vmatprep.subr.mxu0 0.0
        %1966 = vmatpush1.msra.mxu0 %v1895
        %1967 = vmatprep.mubr.f32.mxu0 %v1863
        %1968 = vmatmul.mubr.f32.gmra.mrb[0].mxu0 %v1862
        %v1969 = vpop.f32.mrb[0].mxu0
        %v1970 = vadd.f32 %v1901, %v1969
        %v1971 = vpop.f32.mrb[0].mxu0
        %1972 = vdwg.mxu0
        %v1973 = vadd.f32 %v1970, %v1746
        %v1974 = vld [vmem:[%s14] sm:$0x1]
        %v1975 = vld [vmem:[%s15] sm:$0x1]
        %1976 = vadd.xlane.f32.xlu0 %v1973
        %v1977 = vpop.xlane.xlu0 %1976
        %v1978 = vmul.f32 %v1977, %v1723
        %v1979 = vsub.f32 %v1973, %v1978
        %v1980 = vmul.f32 %v1979, %v1979
        %1981 = vadd.xlane.f32.xlu0 %v1980
        %v1982 = vpop.xlane.xlu0 %1981
        %v1983 = vmul.f32 %v1982, %v1723
        %v1984 = vadd.f32 %v1983, 1e-05
        %v1985 = vrsqrt.pop %v1984
        %v1986 = vmul.f32 %v1979, %v1985
        %v1988 = vlaneseq
        %v1989 = vshrl.u32 %v1988, 7
        %v1990 = vsub.s32 0, %v1989
        %v1991 = vrot.slane %v1974, %v1990
        %v1993 = vmul.f32 %v1991, %v1986
        %v1995 = vlaneseq
        %v1996 = vshrl.u32 %v1995, 7
        %v1997 = vsub.s32 0, %v1996
        %v1998 = vrot.slane %v1975, %v1997
        %v2000 = vadd.f32 %v1993, %v1998
        %2001 = vst [vmem:[%s666] sm:$0xff] %v2000
        %s2002 = sand.u32 %s421, 1
        %s2003 = scalar_lea.sflag [#allocation6], %s2002
        %s2004 = sand.u32 %s421, 1
        %s2005 = smul.addr %s2004, 8
        %s2006 = scalar_lea.vmem [#allocation16], %s2005
        // Predicated region
        $region117: #{tpu_custom_call.1} parent=83 // pred_check
          %p2007 = pneg %p431
        $region118: #{tpu_custom_call.1} parent=83 // pred_check_branch
          %2009 = sbr.rel (%p2007) target = $region120
        $region119: #{tpu_custom_call.1} parent=83 // pred_region
          %s2010 = smul.u32 %s42, 2
          %s2011 = sadd.s32 %s2010, %s43
          %s2013 = ssub.s32 128, 128
          %2014 = vsyncadd %s2003, %s2013
          %s2015 = smul.addr %s41, 2
          %s2016 = sadd.s32 %s2011, %s2015
          %s2017 = smul.addr %s2016, 128
          %s2018 = scalar_lea.hbm %s16, %s2017
          %s2020 = sshll.u32 %s2006, 4
          %s2021 = int_to_ptr.vmem [resolvable:$true] %s2020
          %2023 = dma.vmem_to_hbm [thread:$0]  %s2021, 128, %s2018, %s2003
        $region120: #{tpu_custom_call.1} parent=83 // pred_fallthru
          _
      $region84: #{tpu_custom_call.1} parent=5 // pred_fallthru
        _
      %p2024 = scmp.le.s32.totalorder 2, %s31
      // Predicated region
      $region121: #{tpu_custom_call.1} parent=5 // pred_check
        %p2025 = pneg %p2024
      $region122: #{tpu_custom_call.1} parent=5 // pred_check_branch
        %2027 = sbr.rel (%p2025) target = $region124
      $region123: #{tpu_custom_call.1} parent=5 // pred_region
        %s2028 = ssub.s32 %s31, 2
        // Predicated region
        $region125: #{tpu_custom_call.1} parent=123 // pred_check
          %p2029 = pneg %p437
        $region126: #{tpu_custom_call.1} parent=123 // pred_check_branch
          %2031 = sbr.rel (%p2029) target = $region128
        $region127: #{tpu_custom_call.1} parent=123 // pred_region
          %s2032 = sand.u32 %s422, 1
          %s2033 = scalar_lea.sflag [#allocation6], %s2032
          %s2034 = sand.u32 %s422, 1
          %s2035 = smul.addr %s2034, 8
          %s2036 = scalar_lea.vmem [#allocation16], %s2035
          %2037 = dma.done %s2033, 128
        $region128: #{tpu_custom_call.1} parent=123 // pred_fallthru
          _
      $region124: #{tpu_custom_call.1} parent=5 // pred_fallthru
        _
    $region6: #{tpu_custom_call.1} parent=1 // loop_footer
      %s35 = sadd.s32 1, %s31
    $region7: #{tpu_custom_call.1} parent=1 // loop_footer_branch
      %30 = sbr.rel target = $region3
    $region8: #{tpu_custom_call.1} parent=1 // loop_exit
      _
    %2038 = vsyncpa [#allocation5], 1
    %s2039 = scalar_lea.sflag [#allocation5], 1
    %2040 = vsyncpa %s2039, 1
    %2041 = vsyncpa [#allocation8], 1
    %2042 = vsyncpa [#allocation11], 1
    %2043 = vsyncpa [#allocation14], 1
    %2044 = vsyncpa [#allocation6], 1
    %s2045 = scalar_lea.sflag [#allocation6], 1
    %2046 = vsyncpa %s2045, 1

// kernel: tpu_custom_call.1
$region0: #{tpu_custom_call.1}
  #allocation0 [shape = 'u32[]', space=smem, size = 0x4, offset = 0x4, fixed_abs, tag = 'smem constant byte address 0x4 - core index']
  #allocation1 [shape = 'u32[144,128]{1,0:T(1,128)}', space=vmem, size = 0x12000, scoped, tag = 'internal scratch']
  #allocation2 [shape = 'f32[16,256]{1,0:T(8,128)}', space=vmem, size = 0x4000, scoped, tag = 'scratch operand']
  #allocation3 [shape = 'f32[8,128]{1,0:T(8,128)}', space=vmem, size = 0x1000, scoped, tag = 'scratch operand']
  %s0 = inlined_call_operand.hbm [shape: f32[2,16,128], index: 0, kind: input, shape index: {}]
  %s1 = inlined_call_operand.hbm [shape: f32[2,16,128], index: 1, kind: input, shape index: {}]
  %s2 = inlined_call_operand.hbm [shape: f32[128,128], index: 2, kind: input, shape index: {}]
  %s3 = inlined_call_operand.vmem [shape: f32[1,128], index: 3, kind: input, shape index: {}]
  %s4 = inlined_call_operand.hbm [shape: f32[128,256], index: 4, kind: input, shape index: {}]
  %s5 = inlined_call_operand.vmem [shape: f32[1,256], index: 5, kind: input, shape index: {}]
  %s6 = inlined_call_operand.hbm [shape: f32[128,128], index: 6, kind: input, shape index: {}]
  %s7 = inlined_call_operand.vmem [shape: f32[1,128], index: 7, kind: input, shape index: {}]
  %s8 = inlined_call_operand.vmem [shape: f32[1,128], index: 8, kind: input, shape index: {}]
  %s9 = inlined_call_operand.vmem [shape: f32[1,128], index: 9, kind: input, shape index: {}]
  %s10 = inlined_call_operand.hbm [shape: f32[128,256], index: 10, kind: input, shape index: {}]
  %s11 = inlined_call_operand.vmem [shape: f32[1,256], index: 11, kind: input, shape index: {}]
  %s12 = inlined_call_operand.hbm [shape: f32[256,128], index: 12, kind: input, shape index: {}]
  %s13 = inlined_call_operand.vmem [shape: f32[1,128], index: 13, kind: input, shape index: {}]
  %s14 = inlined_call_operand.vmem [shape: f32[1,128], index: 14, kind: input, shape index: {}]
  %s15 = inlined_call_operand.vmem [shape: f32[1,128], index: 15, kind: input, shape index: {}]
  %s16 = inlined_call_operand.hbm [shape: f32[2,16,128], index: 16, kind: output, shape index: {}]
  %s17 = sld [smem:[#allocation0]]
  $region129: #{tpu_custom_call.1} parent=0
    _
  %s19 = ssub.s32 1, %s17
  %s20 = scalar_select 0, %s19, %s17
  $region1: #{tpu_custom_call.1} parent=0
    #allocation4 [shape = 'u8[8192]{0}', space=vmem, size = 0x2000, scoped, tag = 'input window, operand 0']
    #allocation5 [shape = 's32[2]{0}', space=sflag, size = 0x8, scoped, tag = 'scoped memory for tpu_custom_call.1']
    #allocation6 [shape = 's32[2]{0}', space=sflag, size = 0x8, scoped, tag = 'scoped memory for tpu_custom_call.1']
    #allocation7 [shape = 'u8[16384]{0}', space=vmem, size = 0x4000, scoped, tag = 'input window, operand 1']
    #allocation8 [shape = 's32[2]{0}', space=sflag, size = 0x8, scoped, tag = 'scoped memory for tpu_custom_call.1']
    #allocation9 [shape = 'u8[65536]{0}', space=vmem, size = 0x10000, scoped, tag = 'input window, operand 2, single buffered']
    #allocation10 [shape = 'u8[131072]{0}', space=vmem, size = 0x20000, scoped, tag = 'input window, operand 4, single buffered']
    #allocation11 [shape = 's32[1]{0}', space=sflag, size = 0x4, scoped, tag = 'scoped memory for tpu_custom_call.1']
    #allocation12 [shape = 'u8[65536]{0}', space=vmem, size = 0x10000, scoped, tag = 'input window, operand 6, single buffered']
    #allocation13 [shape = 'u8[131072]{0}', space=vmem, size = 0x20000, scoped, tag = 'input window, operand 10, single buffered']
    #allocation14 [shape = 's32[1]{0}', space=sflag, size = 0x4, scoped, tag = 'scoped memory for tpu_custom_call.1']
    #allocation15 [shape = 'u8[131072]{0}', space=vmem, size = 0x20000, scoped, tag = 'input window, operand 12, single buffered']
    #allocation16 [shape = 'u8[8192]{0}', space=vmem, size = 0x2000, scoped, tag = 'output window, operand 0']
    %21 = vsyncpa [#allocation5], 0
    %s22 = scalar_lea.sflag [#allocation5], 1
    %23 = vsyncpa %s22, 0
    %24 = vsyncpa [#allocation8], 0
    %s25 = scalar_lea.sflag [#allocation8], 1
    %26 = vsyncpa %s25, 0
    %27 = vsyncpa [#allocation11], 0
    %28 = vsyncpa [#allocation14], 0
    %29 = vsyncpa [#allocation6], 0
    %s30 = scalar_lea.sflag [#allocation6], 1
    %31 = vsyncpa %s30, 0
    loop: start=0, step=1, limit=6
    $region2: #{tpu_custom_call.1} parent=1 // loop_pre_header
      _
    $region3: #{tpu_custom_call.1} parent=1 // loop_header
      %s33 = sphi 0, %s37
      %p34 = scmp.ge.s32.totalorder %s33, 6
      %s40 = sphi 0, %s59
      %s41 = sphi 0, %s55
      %s42 = sphi 0, %s51
      %s43 = sphi 0, %s40
      %s44 = sphi 0, %s41
      %s45 = sphi 0, %s42
      %s46 = sphi 0, %s43
      %s47 = sphi 0, %s44
      %s48 = sphi 0, %s45
      %s68 = sphi 0, %s70
      %s71 = sphi 0, %s68
      %s72 = sphi 0, %s71
      %s88 = sphi 0, %s72
      %s94 = sphi 0, %s96
      %s97 = sphi 0, %s94
      %s98 = sphi 0, %s97
      %s114 = sphi 0, %s98
      %s118 = sphi 0, %s118
      %s120 = sphi 0, %s118
      %s121 = sphi 0, %s120
      %s135 = sphi 0, %s121
      %s139 = sphi 0, %s139
      %s141 = sphi 0, %s139
      %s142 = sphi 0, %s141
      %s156 = sphi 0, %s142
      %s160 = sphi 0, %s160
      %s162 = sphi 0, %s160
      %s163 = sphi 0, %s162
      %s177 = sphi 0, %s163
      %s181 = sphi 0, %s181
      %s183 = sphi 0, %s181
      %s184 = sphi 0, %s183
      %s198 = sphi 0, %s184
      %s202 = sphi 0, %s202
      %s204 = sphi 0, %s202
      %s205 = sphi 0, %s204
      %s219 = sphi 0, %s205
      %s223 = sphi 0, %s223
      %s225 = sphi 0, %s223
      %s226 = sphi 0, %s225
      %s240 = sphi 0, %s226
      %s244 = sphi 0, %s244
      %s246 = sphi 0, %s244
      %s247 = sphi 0, %s246
      %s261 = sphi 0, %s247
      %s265 = sphi 0, %s265
      %s267 = sphi 0, %s265
      %s268 = sphi 0, %s267
      %s282 = sphi 0, %s268
      %s286 = sphi 0, %s286
      %s288 = sphi 0, %s286
      %s289 = sphi 0, %s288
      %s303 = sphi 0, %s289
      %s307 = sphi 0, %s307
      %s309 = sphi 0, %s307
      %s310 = sphi 0, %s309
      %s324 = sphi 0, %s310
      %s328 = sphi 0, %s328
      %s330 = sphi 0, %s328
      %s331 = sphi 0, %s330
      %s345 = sphi 0, %s331
      %s349 = sphi 0, %s349
      %s351 = sphi 0, %s349
      %s352 = sphi 0, %s351
      %s366 = sphi 0, %s352
      %s370 = sphi 0, %s370
      %s372 = sphi 0, %s370
      %s373 = sphi 0, %s372
      %s387 = sphi 0, %s373
      %s391 = sphi 0, %s391
      %s393 = sphi 0, %s391
      %s394 = sphi 0, %s393
      %s408 = sphi 0, %s394
      %s420 = sphi 0, %s422
      %s423 = sphi 0, %s420
      %s424 = sphi 0, %s423
      %s440 = sphi 0, %s424
    $region4: #{tpu_custom_call.1} parent=1 // loop_header_branch
      %36 = sbr.rel (%p34) target = $region8
    $region5: #{tpu_custom_call.1} parent=1 // loop_body
      %s38 = ssub.s32 %s33, 1
      %s39 = ssub.s32 %s33, 2
      %s49 = sadd.s32 1, %s42
      %p50 = scmp.ge.s32.totalorder %s49, 2
      %s51 = scalar_select %p50, 0, %s49
      %s52 = sadd.s32 1, %s41
      %s53 = scalar_select %p50, %s52, %s41
      %p54 = scmp.ge.s32.totalorder %s53, 1
      %s55 = scalar_select %p54, 0, %s53
      %s56 = sadd.s32 1, %s40
      %s57 = scalar_select %p54, %s56, %s40
      %p58 = scmp.ge.s32.totalorder %s57, 2
      %s59 = scalar_select %p58, 0, %s57
      %s60 = smul.u32 %s41, 2
      %s61 = sadd.s32 %s60, %s42
      %s62 = smul.u32 %s55, 2
      %s63 = sadd.s32 %s62, %s51
      %s64 = ssub.s32 %s40, %s59
      %s65 = ssub.s32 %s61, %s63
      %s66 = sor.u32 %s64, %s65
      %p67 = scmp.eq.s32.totalorder %s66, 0
      %s69 = sadd.s32 %s68, 1
      %s70 = scalar_select %p67, %s68, %s69
      %p73 = pneg %p67
      %p74 = scmp.eq.s32.totalorder %s33, 3
      %p75 = por %p73, %p74
      %p76 = scmp.ne.s32.totalorder %s68, %s71
      %p77 = scmp.eq.s32.totalorder %s33, 0
      %p78 = por %p76, %p77
      %p79 = scmp.ne.s32.totalorder %s68, %s71
      %p80 = scmp.eq.s32.totalorder %s38, 3
      %p81 = por %p79, %p80
      %p82 = scmp.ne.s32.totalorder %s71, %s72
      %p83 = scmp.eq.s32.totalorder %s38, 0
      %p84 = por %p82, %p83
      %p85 = scmp.ne.s32.totalorder %s71, %s72
      %p86 = scmp.eq.s32.totalorder %s39, 3
      %p87 = por %p85, %p86
      %p89 = scmp.ne.s32.totalorder %s72, %s88
      %p90 = scmp.eq.s32.totalorder %s39, 0
      %p91 = por %p89, %p90
      %s92 = ssub.s32 %s40, %s59
      %p93 = scmp.eq.s32.totalorder %s92, 0
      %s95 = sadd.s32 %s94, 1
      %s96 = scalar_select %p93, %s94, %s95
      %p99 = pneg %p93
      %p100 = scmp.eq.s32.totalorder %s33, 3
      %p101 = por %p99, %p100
      %p102 = scmp.ne.s32.totalorder %s94, %s97
      %p103 = scmp.eq.s32.totalorder %s33, 0
      %p104 = por %p102, %p103
      %p105 = scmp.ne.s32.totalorder %s94, %s97
      %p106 = scmp.eq.s32.totalorder %s38, 3
      %p107 = por %p105, %p106
      %p108 = scmp.ne.s32.totalorder %s97, %s98
      %p109 = scmp.eq.s32.totalorder %s38, 0
      %p110 = por %p108, %p109
      %p111 = scmp.ne.s32.totalorder %s97, %s98
      %p112 = scmp.eq.s32.totalorder %s39, 3
      %p113 = por %p111, %p112
      %p115 = scmp.ne.s32.totalorder %s98, %s114
      %p116 = scmp.eq.s32.totalorder %s39, 0
      %p117 = por %p115, %p116
      %s119 = sadd.s32 %s118, 1
      %p122 = scmp.eq.s32.totalorder %s33, 3
      %p123 = scmp.ne.s32.totalorder %s118, %s120
      %p124 = scmp.eq.s32.totalorder %s33, 0
      %p125 = por %p123, %p124
      %p126 = scmp.ne.s32.totalorder %s118, %s120
      %p127 = scmp.eq.s32.totalorder %s38, 3
      %p128 = por %p126, %p127
      %p129 = scmp.ne.s32.totalorder %s120, %s121
      %p130 = scmp.eq.s32.totalorder %s38, 0
      %p131 = por %p129, %p130
      %p132 = scmp.ne.s32.totalorder %s120, %s121
      %p133 = scmp.eq.s32.totalorder %s39, 3
      %p134 = por %p132, %p133
      %p136 = scmp.ne.s32.totalorder %s121, %s135
      %p137 = scmp.eq.s32.totalorder %s39, 0
      %p138 = por %p136, %p137
      %s140 = sadd.s32 %s139, 1
      %p143 = scmp.eq.s32.totalorder %s33, 3
      %p144 = scmp.ne.s32.totalorder %s139, %s141
      %p145 = scmp.eq.s32.totalorder %s33, 0
      %p146 = por %p144, %p145
      %p147 = scmp.ne.s32.totalorder %s139, %s141
      %p148 = scmp.eq.s32.totalorder %s38, 3
      %p149 = por %p147, %p148
      %p150 = scmp.ne.s32.totalorder %s141, %s142
      %p151 = scmp.eq.s32.totalorder %s38, 0
      %p152 = por %p150, %p151
      %p153 = scmp.ne.s32.totalorder %s141, %s142
      %p154 = scmp.eq.s32.totalorder %s39, 3
      %p155 = por %p153, %p154
      %p157 = scmp.ne.s32.totalorder %s142, %s156
      %p158 = scmp.eq.s32.totalorder %s39, 0
      %p159 = por %p157, %p158
      %s161 = sadd.s32 %s160, 1
      %p164 = scmp.eq.s32.totalorder %s33, 3
      %p165 = scmp.ne.s32.totalorder %s160, %s162
      %p166 = scmp.eq.s32.totalorder %s33, 0
      %p167 = por %p165, %p166
      %p168 = scmp.ne.s32.totalorder %s160, %s162
      %p169 = scmp.eq.s32.totalorder %s38, 3
      %p170 = por %p168, %p169
      %p171 = scmp.ne.s32.totalorder %s162, %s163
      %p172 = scmp.eq.s32.totalorder %s38, 0
      %p173 = por %p171, %p172
      %p174 = scmp.ne.s32.totalorder %s162, %s163
      %p175 = scmp.eq.s32.totalorder %s39, 3
      %p176 = por %p174, %p175
      %p178 = scmp.ne.s32.totalorder %s163, %s177
      %p179 = scmp.eq.s32.totalorder %s39, 0
      %p180 = por %p178, %p179
      %s182 = sadd.s32 %s181, 1
      %p185 = scmp.eq.s32.totalorder %s33, 3
      %p186 = scmp.ne.s32.totalorder %s181, %s183
      %p187 = scmp.eq.s32.totalorder %s33, 0
      %p188 = por %p186, %p187
      %p189 = scmp.ne.s32.totalorder %s181, %s183
      %p190 = scmp.eq.s32.totalorder %s38, 3
      %p191 = por %p189, %p190
      %p192 = scmp.ne.s32.totalorder %s183, %s184
      %p193 = scmp.eq.s32.totalorder %s38, 0
      %p194 = por %p192, %p193
      %p195 = scmp.ne.s32.totalorder %s183, %s184
      %p196 = scmp.eq.s32.totalorder %s39, 3
      %p197 = por %p195, %p196
      %p199 = scmp.ne.s32.totalorder %s184, %s198
      %p200 = scmp.eq.s32.totalorder %s39, 0
      %p201 = por %p199, %p200
      %s203 = sadd.s32 %s202, 1
      %p206 = scmp.eq.s32.totalorder %s33, 3
      %p207 = scmp.ne.s32.totalorder %s202, %s204
      %p208 = scmp.eq.s32.totalorder %s33, 0
      %p209 = por %p207, %p208
      %p210 = scmp.ne.s32.totalorder %s202, %s204
      %p211 = scmp.eq.s32.totalorder %s38, 3
      %p212 = por %p210, %p211
      %p213 = scmp.ne.s32.totalorder %s204, %s205
      %p214 = scmp.eq.s32.totalorder %s38, 0
      %p215 = por %p213, %p214
      %p216 = scmp.ne.s32.totalorder %s204, %s205
      %p217 = scmp.eq.s32.totalorder %s39, 3
      %p218 = por %p216, %p217
      %p220 = scmp.ne.s32.totalorder %s205, %s219
      %p221 = scmp.eq.s32.totalorder %s39, 0
      %p222 = por %p220, %p221
      %s224 = sadd.s32 %s223, 1
      %p227 = scmp.eq.s32.totalorder %s33, 3
      %p228 = scmp.ne.s32.totalorder %s223, %s225
      %p229 = scmp.eq.s32.totalorder %s33, 0
      %p230 = por %p228, %p229
      %p231 = scmp.ne.s32.totalorder %s223, %s225
      %p232 = scmp.eq.s32.totalorder %s38, 3
      %p233 = por %p231, %p232
      %p234 = scmp.ne.s32.totalorder %s225, %s226
      %p235 = scmp.eq.s32.totalorder %s38, 0
      %p236 = por %p234, %p235
      %p237 = scmp.ne.s32.totalorder %s225, %s226
      %p238 = scmp.eq.s32.totalorder %s39, 3
      %p239 = por %p237, %p238
      %p241 = scmp.ne.s32.totalorder %s226, %s240
      %p242 = scmp.eq.s32.totalorder %s39, 0
      %p243 = por %p241, %p242
      %s245 = sadd.s32 %s244, 1
      %p248 = scmp.eq.s32.totalorder %s33, 3
      %p249 = scmp.ne.s32.totalorder %s244, %s246
      %p250 = scmp.eq.s32.totalorder %s33, 0
      %p251 = por %p249, %p250
      %p252 = scmp.ne.s32.totalorder %s244, %s246
      %p253 = scmp.eq.s32.totalorder %s38, 3
      %p254 = por %p252, %p253
      %p255 = scmp.ne.s32.totalorder %s246, %s247
      %p256 = scmp.eq.s32.totalorder %s38, 0
      %p257 = por %p255, %p256
      %p258 = scmp.ne.s32.totalorder %s246, %s247
      %p259 = scmp.eq.s32.totalorder %s39, 3
      %p260 = por %p258, %p259
      %p262 = scmp.ne.s32.totalorder %s247, %s261
      %p263 = scmp.eq.s32.totalorder %s39, 0
      %p264 = por %p262, %p263
      %s266 = sadd.s32 %s265, 1
      %p269 = scmp.eq.s32.totalorder %s33, 3
      %p270 = scmp.ne.s32.totalorder %s265, %s267
      %p271 = scmp.eq.s32.totalorder %s33, 0
      %p272 = por %p270, %p271
      %p273 = scmp.ne.s32.totalorder %s265, %s267
      %p274 = scmp.eq.s32.totalorder %s38, 3
      %p275 = por %p273, %p274
      %p276 = scmp.ne.s32.totalorder %s267, %s268
      %p277 = scmp.eq.s32.totalorder %s38, 0
      %p278 = por %p276, %p277
      %p279 = scmp.ne.s32.totalorder %s267, %s268
      %p280 = scmp.eq.s32.totalorder %s39, 3
      %p281 = por %p279, %p280
      %p283 = scmp.ne.s32.totalorder %s268, %s282
      %p284 = scmp.eq.s32.totalorder %s39, 0
      %p285 = por %p283, %p284
      %s287 = sadd.s32 %s286, 1
      %p290 = scmp.eq.s32.totalorder %s33, 3
      %p291 = scmp.ne.s32.totalorder %s286, %s288
      %p292 = scmp.eq.s32.totalorder %s33, 0
      %p293 = por %p291, %p292
      %p294 = scmp.ne.s32.totalorder %s286, %s288
      %p295 = scmp.eq.s32.totalorder %s38, 3
      %p296 = por %p294, %p295
      %p297 = scmp.ne.s32.totalorder %s288, %s289
      %p298 = scmp.eq.s32.totalorder %s38, 0
      %p299 = por %p297, %p298
      %p300 = scmp.ne.s32.totalorder %s288, %s289
      %p301 = scmp.eq.s32.totalorder %s39, 3
      %p302 = por %p300, %p301
      %p304 = scmp.ne.s32.totalorder %s289, %s303
      %p305 = scmp.eq.s32.totalorder %s39, 0
      %p306 = por %p304, %p305
      %s308 = sadd.s32 %s307, 1
      %p311 = scmp.eq.s32.totalorder %s33, 3
      %p312 = scmp.ne.s32.totalorder %s307, %s309
      %p313 = scmp.eq.s32.totalorder %s33, 0
      %p314 = por %p312, %p313
      %p315 = scmp.ne.s32.totalorder %s307, %s309
      %p316 = scmp.eq.s32.totalorder %s38, 3
      %p317 = por %p315, %p316
      %p318 = scmp.ne.s32.totalorder %s309, %s310
      %p319 = scmp.eq.s32.totalorder %s38, 0
      %p320 = por %p318, %p319
      %p321 = scmp.ne.s32.totalorder %s309, %s310
      %p322 = scmp.eq.s32.totalorder %s39, 3
      %p323 = por %p321, %p322
      %p325 = scmp.ne.s32.totalorder %s310, %s324
      %p326 = scmp.eq.s32.totalorder %s39, 0
      %p327 = por %p325, %p326
      %s329 = sadd.s32 %s328, 1
      %p332 = scmp.eq.s32.totalorder %s33, 3
      %p333 = scmp.ne.s32.totalorder %s328, %s330
      %p334 = scmp.eq.s32.totalorder %s33, 0
      %p335 = por %p333, %p334
      %p336 = scmp.ne.s32.totalorder %s328, %s330
      %p337 = scmp.eq.s32.totalorder %s38, 3
      %p338 = por %p336, %p337
      %p339 = scmp.ne.s32.totalorder %s330, %s331
      %p340 = scmp.eq.s32.totalorder %s38, 0
      %p341 = por %p339, %p340
      %p342 = scmp.ne.s32.totalorder %s330, %s331
      %p343 = scmp.eq.s32.totalorder %s39, 3
      %p344 = por %p342, %p343
      %p346 = scmp.ne.s32.totalorder %s331, %s345
      %p347 = scmp.eq.s32.totalorder %s39, 0
      %p348 = por %p346, %p347
      %s350 = sadd.s32 %s349, 1
      %p353 = scmp.eq.s32.totalorder %s33, 3
      %p354 = scmp.ne.s32.totalorder %s349, %s351
      %p355 = scmp.eq.s32.totalorder %s33, 0
      %p356 = por %p354, %p355
      %p357 = scmp.ne.s32.totalorder %s349, %s351
      %p358 = scmp.eq.s32.totalorder %s38, 3
      %p359 = por %p357, %p358
      %p360 = scmp.ne.s32.totalorder %s351, %s352
      %p361 = scmp.eq.s32.totalorder %s38, 0
      %p362 = por %p360, %p361
      %p363 = scmp.ne.s32.totalorder %s351, %s352
      %p364 = scmp.eq.s32.totalorder %s39, 3
      %p365 = por %p363, %p364
      %p367 = scmp.ne.s32.totalorder %s352, %s366
      %p368 = scmp.eq.s32.totalorder %s39, 0
      %p369 = por %p367, %p368
      %s371 = sadd.s32 %s370, 1
      %p374 = scmp.eq.s32.totalorder %s33, 3
      %p375 = scmp.ne.s32.totalorder %s370, %s372
      %p376 = scmp.eq.s32.totalorder %s33, 0
      %p377 = por %p375, %p376
      %p378 = scmp.ne.s32.totalorder %s370, %s372
      %p379 = scmp.eq.s32.totalorder %s38, 3
      %p380 = por %p378, %p379
      %p381 = scmp.ne.s32.totalorder %s372, %s373
      %p382 = scmp.eq.s32.totalorder %s38, 0
      %p383 = por %p381, %p382
      %p384 = scmp.ne.s32.totalorder %s372, %s373
      %p385 = scmp.eq.s32.totalorder %s39, 3
      %p386 = por %p384, %p385
      %p388 = scmp.ne.s32.totalorder %s373, %s387
      %p389 = scmp.eq.s32.totalorder %s39, 0
      %p390 = por %p388, %p389
      %s392 = sadd.s32 %s391, 1
      %p395 = scmp.eq.s32.totalorder %s33, 3
      %p396 = scmp.ne.s32.totalorder %s391, %s393
      %p397 = scmp.eq.s32.totalorder %s33, 0
      %p398 = por %p396, %p397
      %p399 = scmp.ne.s32.totalorder %s391, %s393
      %p400 = scmp.eq.s32.totalorder %s38, 3
      %p401 = por %p399, %p400
      %p402 = scmp.ne.s32.totalorder %s393, %s394
      %p403 = scmp.eq.s32.totalorder %s38, 0
      %p404 = por %p402, %p403
      %p405 = scmp.ne.s32.totalorder %s393, %s394
      %p406 = scmp.eq.s32.totalorder %s39, 3
      %p407 = por %p405, %p406
      %p409 = scmp.ne.s32.totalorder %s394, %s408
      %p410 = scmp.eq.s32.totalorder %s39, 0
      %p411 = por %p409, %p410
      %s412 = smul.u32 %s41, 2
      %s413 = sadd.s32 %s412, %s42
      %s414 = smul.u32 %s55, 2
      %s415 = sadd.s32 %s414, %s51
      %s416 = ssub.s32 %s40, %s59
      %s417 = ssub.s32 %s413, %s415
      %s418 = sor.u32 %s416, %s417
      %p419 = scmp.eq.s32.totalorder %s418, 0
      %s421 = sadd.s32 %s420, 1
      %s422 = scalar_select %p419, %s420, %s421
      %p425 = pneg %p419
      %p426 = scmp.eq.s32.totalorder %s33, 3
      %p427 = por %p425, %p426
      %p428 = scmp.ne.s32.totalorder %s420, %s423
      %p429 = scmp.eq.s32.totalorder %s33, 0
      %p430 = por %p428, %p429
      %p431 = scmp.ne.s32.totalorder %s420, %s423
      %p432 = scmp.eq.s32.totalorder %s38, 3
      %p433 = por %p431, %p432
      %p434 = scmp.ne.s32.totalorder %s423, %s424
      %p435 = scmp.eq.s32.totalorder %s38, 0
      %p436 = por %p434, %p435
      %p437 = scmp.ne.s32.totalorder %s423, %s424
      %p438 = scmp.eq.s32.totalorder %s39, 3
      %p439 = por %p437, %p438
      %p441 = scmp.ne.s32.totalorder %s424, %s440
      %p442 = scmp.eq.s32.totalorder %s39, 0
      %p443 = por %p441, %p442
      %p444 = scmp.le.s32.totalorder 1, %s33
      %p445 = scmp.lt.s32.totalorder %s33, 5
      %p446 = pnand %p444, %p445
      %p447 = pneg %p446
      // Predicated region
      $region9: #{tpu_custom_call.1} parent=5 // pred_check
        _
      $region10: #{tpu_custom_call.1} parent=5 // pred_check_branch
        %449 = sbr.rel (%p446) target = $region12
      $region11: #{tpu_custom_call.1} parent=5 // pred_region
        %s450 = ssub.s32 %s33, 1
        // Predicated region
        $region13: #{tpu_custom_call.1} parent=11 // pred_check
          %p451 = pneg %p131
        $region14: #{tpu_custom_call.1} parent=11 // pred_check_branch
          %453 = sbr.rel (%p451) target = $region16
        $region15: #{tpu_custom_call.1} parent=11 // pred_region
          %s455 = ssub.s32 2048, 2048
          %456 = vsyncadd [#allocation8], %s455
          %s457 = sshll.u32 [#allocation9], 4
          %s458 = int_to_ptr.vmem [resolvable:$true] %s457
          %463 = dma.hbm_to_vmem [thread:$0]  %s2, 2048, %s458, [#allocation8], 128, 128, 8
        $region16: #{tpu_custom_call.1} parent=11 // pred_fallthru
          _
        // Predicated region
        $region17: #{tpu_custom_call.1} parent=11 // pred_check
          %p464 = pneg %p152
        $region18: #{tpu_custom_call.1} parent=11 // pred_check_branch
          %466 = sbr.rel (%p464) target = $region20
        $region19: #{tpu_custom_call.1} parent=11 // pred_region
          _
        $region20: #{tpu_custom_call.1} parent=11 // pred_fallthru
          _
        // Predicated region
        $region21: #{tpu_custom_call.1} parent=11 // pred_check
          %p467 = pneg %p173
        $region22: #{tpu_custom_call.1} parent=11 // pred_check_branch
          %469 = sbr.rel (%p467) target = $region24
        $region23: #{tpu_custom_call.1} parent=11 // pred_region
          %s471 = ssub.s32 4096, 4096
          %472 = vsyncadd [#allocation11], %s471
          %s473 = sshll.u32 [#allocation10], 4
          %s474 = int_to_ptr.vmem [resolvable:$true] %s473
          %479 = dma.hbm_to_vmem [thread:$0]  %s4, 4096, %s474, [#allocation11], 256, 256, 16
        $region24: #{tpu_custom_call.1} parent=11 // pred_fallthru
          _
        // Predicated region
        $region25: #{tpu_custom_call.1} parent=11 // pred_check
          %p480 = pneg %p194
        $region26: #{tpu_custom_call.1} parent=11 // pred_check_branch
          %482 = sbr.rel (%p480) target = $region28
        $region27: #{tpu_custom_call.1} parent=11 // pred_region
          _
        $region28: #{tpu_custom_call.1} parent=11 // pred_fallthru
          _
        // Predicated region
        $region29: #{tpu_custom_call.1} parent=11 // pred_check
          %p483 = pneg %p215
        $region30: #{tpu_custom_call.1} parent=11 // pred_check_branch
          %485 = sbr.rel (%p483) target = $region32
        $region31: #{tpu_custom_call.1} parent=11 // pred_region
          %s487 = ssub.s32 2048, 2048
          %488 = vsyncadd [#allocation11], %s487
          %s489 = sshll.u32 [#allocation12], 4
          %s490 = int_to_ptr.vmem [resolvable:$true] %s489
          %495 = dma.hbm_to_vmem [thread:$0]  %s6, 2048, %s490, [#allocation11], 128, 128, 8
        $region32: #{tpu_custom_call.1} parent=11 // pred_fallthru
          _
        // Predicated region
        $region33: #{tpu_custom_call.1} parent=11 // pred_check
          %p496 = pneg %p236
        $region34: #{tpu_custom_call.1} parent=11 // pred_check_branch
          %498 = sbr.rel (%p496) target = $region36
        $region35: #{tpu_custom_call.1} parent=11 // pred_region
          _
        $region36: #{tpu_custom_call.1} parent=11 // pred_fallthru
          _
        // Predicated region
        $region37: #{tpu_custom_call.1} parent=11 // pred_check
          %p499 = pneg %p257
        $region38: #{tpu_custom_call.1} parent=11 // pred_check_branch
          %501 = sbr.rel (%p499) target = $region40
        $region39: #{tpu_custom_call.1} parent=11 // pred_region
          _
        $region40: #{tpu_custom_call.1} parent=11 // pred_fallthru
          _
        // Predicated region
        $region41: #{tpu_custom_call.1} parent=11 // pred_check
          %p502 = pneg %p278
        $region42: #{tpu_custom_call.1} parent=11 // pred_check_branch
          %504 = sbr.rel (%p502) target = $region44
        $region43: #{tpu_custom_call.1} parent=11 // pred_region
          _
        $region44: #{tpu_custom_call.1} parent=11 // pred_fallthru
          _
        // Predicated region
        $region45: #{tpu_custom_call.1} parent=11 // pred_check
          %p505 = pneg %p299
        $region46: #{tpu_custom_call.1} parent=11 // pred_check_branch
          %507 = sbr.rel (%p505) target = $region48
        $region47: #{tpu_custom_call.1} parent=11 // pred_region
          %s509 = ssub.s32 4096, 4096
          %510 = vsyncadd [#allocation14], %s509
          %s511 = sshll.u32 [#allocation13], 4
          %s512 = int_to_ptr.vmem [resolvable:$true] %s511
          %517 = dma.hbm_to_vmem [thread:$0]  %s10, 4096, %s512, [#allocation14], 256, 256, 16
        $region48: #{tpu_custom_call.1} parent=11 // pred_fallthru
          _
        // Predicated region
        $region49: #{tpu_custom_call.1} parent=11 // pred_check
          %p518 = pneg %p320
        $region50: #{tpu_custom_call.1} parent=11 // pred_check_branch
          %520 = sbr.rel (%p518) target = $region52
        $region51: #{tpu_custom_call.1} parent=11 // pred_region
          _
        $region52: #{tpu_custom_call.1} parent=11 // pred_fallthru
          _
        // Predicated region
        $region53: #{tpu_custom_call.1} parent=11 // pred_check
          %p521 = pneg %p341
        $region54: #{tpu_custom_call.1} parent=11 // pred_check_branch
          %523 = sbr.rel (%p521) target = $region56
        $region55: #{tpu_custom_call.1} parent=11 // pred_region
          %s525 = ssub.s32 4096, 4096
          %526 = vsyncadd [#allocation14], %s525
          %s527 = sshll.u32 [#allocation15], 4
          %s528 = int_to_ptr.vmem [resolvable:$true] %s527
          %533 = dma.hbm_to_vmem [thread:$0]  %s12, 4096, %s528, [#allocation14], 128, 128, 8
        $region56: #{tpu_custom_call.1} parent=11 // pred_fallthru
          _
        // Predicated region
        $region57: #{tpu_custom_call.1} parent=11 // pred_check
          %p534 = pneg %p362
        $region58: #{tpu_custom_call.1} parent=11 // pred_check_branch
          %536 = sbr.rel (%p534) target = $region60
        $region59: #{tpu_custom_call.1} parent=11 // pred_region
          _
        $region60: #{tpu_custom_call.1} parent=11 // pred_fallthru
          _
        // Predicated region
        $region61: #{tpu_custom_call.1} parent=11 // pred_check
          %p537 = pneg %p383
        $region62: #{tpu_custom_call.1} parent=11 // pred_check_branch
          %539 = sbr.rel (%p537) target = $region64
        $region63: #{tpu_custom_call.1} parent=11 // pred_region
          _
        $region64: #{tpu_custom_call.1} parent=11 // pred_fallthru
          _
        // Predicated region
        $region65: #{tpu_custom_call.1} parent=11 // pred_check
          %p540 = pneg %p404
        $region66: #{tpu_custom_call.1} parent=11 // pred_check_branch
          %542 = sbr.rel (%p540) target = $region68
        $region67: #{tpu_custom_call.1} parent=11 // pred_region
          _
        $region68: #{tpu_custom_call.1} parent=11 // pred_fallthru
          _
      $region12: #{tpu_custom_call.1} parent=5 // pred_fallthru
        _
      %p543 = scmp.lt.s32.totalorder %s33, 4
      // Predicated region
      $region69: #{tpu_custom_call.1} parent=5 // pred_check
        %p544 = pneg %p543
      $region70: #{tpu_custom_call.1} parent=5 // pred_check_branch
        %546 = sbr.rel (%p544) target = $region72
      $region71: #{tpu_custom_call.1} parent=5 // pred_region
        // Predicated region
        $region73: #{tpu_custom_call.1} parent=71 // pred_check
          %p547 = pneg %p78
        $region74: #{tpu_custom_call.1} parent=71 // pred_check_branch
          %549 = sbr.rel (%p547) target = $region76
        $region75: #{tpu_custom_call.1} parent=71 // pred_region
          %s550 = sand.u32 %s68, 1
          %s551 = scalar_lea.sflag [#allocation5], %s550
          %s552 = sand.u32 %s68, 1
          %s553 = smul.addr %s552, 8
          %s554 = scalar_lea.vmem [#allocation4], %s553
          %s555 = smul.u32 %s41, 2
          %s556 = sadd.s32 %s555, %s42
          %s558 = ssub.s32 128, 128
          %559 = vsyncadd %s551, %s558
          %s560 = smul.addr %s40, 2
          %s561 = sadd.s32 %s556, %s560
          %s562 = smul.addr %s561, 128
          %s563 = scalar_lea.hbm %s0, %s562
          %s565 = sshll.u32 %s554, 4
          %s566 = int_to_ptr.vmem [resolvable:$true] %s565
          %568 = dma.hbm_to_vmem [thread:$0]  %s563, 128, %s566, %s551
        $region76: #{tpu_custom_call.1} parent=71 // pred_fallthru
          _
        // Predicated region
        $region77: #{tpu_custom_call.1} parent=71 // pred_check
          %p569 = pneg %p104
        $region78: #{tpu_custom_call.1} parent=71 // pred_check_branch
          %571 = sbr.rel (%p569) target = $region80
        $region79: #{tpu_custom_call.1} parent=71 // pred_region
          %s572 = sand.u32 %s33, 1
          %s573 = scalar_lea.sflag [#allocation8], %s572
          %s574 = sand.u32 %s94, 1
          %s575 = smul.addr %s574, 16
          %s576 = scalar_lea.vmem [#allocation7], %s575
          %s578 = ssub.s32 256, 256
          %579 = vsyncadd %s573, %s578
          %s580 = smul.addr %s40, 2
          %s581 = smul.addr %s580, 128
          %s582 = scalar_lea.hbm %s1, %s581
          %s583 = sshll.u32 %s576, 4
          %s584 = int_to_ptr.vmem [resolvable:$true] %s583
          %589 = dma.hbm_to_vmem [thread:$0]  %s582, 256, %s584, %s573, 128, 128, 8
        $region80: #{tpu_custom_call.1} parent=71 // pred_fallthru
          _
      $region72: #{tpu_custom_call.1} parent=5 // pred_fallthru
        _
      %p590 = scmp.le.s32.totalorder 1, %s33
      %p591 = scmp.lt.s32.totalorder %s33, 5
      %p592 = pnand %p590, %p591
      %p593 = pneg %p592
      // Predicated region
      $region81: #{tpu_custom_call.1} parent=5 // pred_check
        _
      $region82: #{tpu_custom_call.1} parent=5 // pred_check_branch
        %595 = sbr.rel (%p592) target = $region84
      $region83: #{tpu_custom_call.1} parent=5 // pred_region
        %s596 = ssub.s32 %s33, 1
        %s597 = sand.u32 %s71, 1
        %s598 = scalar_lea.sflag [#allocation5], %s597
        %s599 = sand.u32 %s71, 1
        %s600 = smul.addr %s599, 8
        %s601 = scalar_lea.vmem [#allocation4], %s600
        // Predicated region
        $region85: #{tpu_custom_call.1} parent=83 // pred_check
          %p602 = pneg %p84
        $region86: #{tpu_custom_call.1} parent=83 // pred_check_branch
          %604 = sbr.rel (%p602) target = $region88
        $region87: #{tpu_custom_call.1} parent=83 // pred_region
          %605 = dma.done %s598, 128
        $region88: #{tpu_custom_call.1} parent=83 // pred_fallthru
          _
        %s606 = sand.u32 %s38, 1
        %s607 = scalar_lea.sflag [#allocation8], %s606
        %s608 = sand.u32 %s97, 1
        %s609 = smul.addr %s608, 16
        %s610 = scalar_lea.vmem [#allocation7], %s609
        // Predicated region
        $region89: #{tpu_custom_call.1} parent=83 // pred_check
          %p611 = pneg %p110
        $region90: #{tpu_custom_call.1} parent=83 // pred_check_branch
          %613 = sbr.rel (%p611) target = $region92
        $region91: #{tpu_custom_call.1} parent=83 // pred_region
          %614 = dma.done %s607, 256
        $region92: #{tpu_custom_call.1} parent=83 // pred_fallthru
          _
        // Predicated region
        $region93: #{tpu_custom_call.1} parent=83 // pred_check
          %p615 = pneg %p131
        $region94: #{tpu_custom_call.1} parent=83 // pred_check_branch
          %617 = sbr.rel (%p615) target = $region96
        $region95: #{tpu_custom_call.1} parent=83 // pred_region
          %618 = dma.done [#allocation8], 2048
        $region96: #{tpu_custom_call.1} parent=83 // pred_fallthru
          _
        // Predicated region
        $region97: #{tpu_custom_call.1} parent=83 // pred_check
          %p619 = pneg %p173
        $region98: #{tpu_custom_call.1} parent=83 // pred_check_branch
          %621 = sbr.rel (%p619) target = $region100
        $region99: #{tpu_custom_call.1} parent=83 // pred_region
          %622 = dma.done [#allocation11], 4096
        $region100: #{tpu_custom_call.1} parent=83 // pred_fallthru
          _
        // Predicated region
        $region101: #{tpu_custom_call.1} parent=83 // pred_check
          %p623 = pneg %p215
        $region102: #{tpu_custom_call.1} parent=83 // pred_check_branch
          %625 = sbr.rel (%p623) target = $region104
        $region103: #{tpu_custom_call.1} parent=83 // pred_region
          %626 = dma.done [#allocation11], 2048
        $region104: #{tpu_custom_call.1} parent=83 // pred_fallthru
          _
        // Predicated region
        $region105: #{tpu_custom_call.1} parent=83 // pred_check
          %p627 = pneg %p299
        $region106: #{tpu_custom_call.1} parent=83 // pred_check_branch
          %629 = sbr.rel (%p627) target = $region108
        $region107: #{tpu_custom_call.1} parent=83 // pred_region
          %630 = dma.done [#allocation14], 4096
        $region108: #{tpu_custom_call.1} parent=83 // pred_fallthru
          _
        // Predicated region
        $region109: #{tpu_custom_call.1} parent=83 // pred_check
          %p631 = pneg %p341
        $region110: #{tpu_custom_call.1} parent=83 // pred_check_branch
          %633 = sbr.rel (%p631) target = $region112
        $region111: #{tpu_custom_call.1} parent=83 // pred_region
          %634 = dma.done [#allocation14], 4096
        $region112: #{tpu_custom_call.1} parent=83 // pred_fallthru
          _
        %s635 = sand.u32 %s71, 1
        %s636 = scalar_lea.sflag [#allocation5], %s635
        %s637 = sand.u32 %s71, 1
        %s638 = smul.addr %s637, 8
        %s639 = scalar_lea.vmem [#allocation4], %s638
        %p640 = pneg %p84
        %p641 = pneg %p81
        %s642 = sand.u32 %s38, 1
        %s643 = scalar_lea.sflag [#allocation8], %s642
        %s644 = sand.u32 %s97, 1
        %s645 = smul.addr %s644, 16
        %s646 = scalar_lea.vmem [#allocation7], %s645
        %p647 = pneg %p110
        %p648 = pneg %p107
        %p649 = pneg %p131
        %p650 = pneg %p128
        %p651 = pneg %p152
        %p652 = pneg %p149
        %p653 = pneg %p173
        %p654 = pneg %p170
        %p655 = pneg %p194
        %p656 = pneg %p191
        %p657 = pneg %p215
        %p658 = pneg %p212
        %p659 = pneg %p236
        %p660 = pneg %p233
        %p661 = pneg %p257
        %p662 = pneg %p254
        %p663 = pneg %p278
        %p664 = pneg %p275
        %p665 = pneg %p299
        %p666 = pneg %p296
        %p667 = pneg %p320
        %p668 = pneg %p317
        %p669 = pneg %p341
        %p670 = pneg %p338
        %p671 = pneg %p362
        %p672 = pneg %p359
        %p673 = pneg %p383
        %p674 = pneg %p380
        %p675 = pneg %p404
        %p676 = pneg %p401
        %p677 = pneg %p436
        %p678 = pneg %p433
        %s679 = sand.u32 %s423, 1
        %s680 = scalar_lea.sflag [#allocation6], %s679
        %s681 = sand.u32 %s423, 1
        %s682 = smul.addr %s681, 8
        %s683 = scalar_lea.vmem [#allocation16], %s682
        %s684 = smul.u32 %s44, 2
        %s685 = sadd.s32 %s684, %s45
        %s686 = smul.u32 %s44, 2
        %s687 = sadd.s32 %s686, %s45
        %p688 = scmp.eq.s32.totalorder %s45, 0
        // Predicated region
        $region113: #{tpu_custom_call.1} parent=83 // pred_check
          %p689 = pneg %p688
        $region114: #{tpu_custom_call.1} parent=83 // pred_check_branch
          %691 = sbr.rel (%p689) target = $region116
        $region115: #{tpu_custom_call.1} parent=83 // pred_region
          %v692 = vld [vmem:[%s610] sm:$0xff]
          %v693 = vld [vmem:[%s610 + $0x8] sm:$0xff]
          %v694 = vld [vmem:[#allocation10] sm:$0xff]
          %v695 = vld [vmem:[#allocation10 + $0x8] sm:$0xff]
          %v696 = vld [vmem:[#allocation10 + $0x10] sm:$0xff]
          %v697 = vld [vmem:[#allocation10 + $0x18] sm:$0xff]
          %v698 = vld [vmem:[#allocation10 + $0x20] sm:$0xff]
          %v699 = vld [vmem:[#allocation10 + $0x28] sm:$0xff]
          %v700 = vld [vmem:[#allocation10 + $0x30] sm:$0xff]
          %v701 = vld [vmem:[#allocation10 + $0x38] sm:$0xff]
          %v702 = vld [vmem:[#allocation10 + $0x40] sm:$0xff]
          %v703 = vld [vmem:[#allocation10 + $0x48] sm:$0xff]
          %v704 = vld [vmem:[#allocation10 + $0x50] sm:$0xff]
          %v705 = vld [vmem:[#allocation10 + $0x58] sm:$0xff]
          %v706 = vld [vmem:[#allocation10 + $0x60] sm:$0xff]
          %v707 = vld [vmem:[#allocation10 + $0x68] sm:$0xff]
          %v708 = vld [vmem:[#allocation10 + $0x70] sm:$0xff]
          %v709 = vld [vmem:[#allocation10 + $0x78] sm:$0xff]
          %v710 = vld [vmem:[#allocation10 + $0x80] sm:$0xff]
          %v711 = vld [vmem:[#allocation10 + $0x88] sm:$0xff]
          %v712 = vld [vmem:[#allocation10 + $0x90] sm:$0xff]
          %v713 = vld [vmem:[#allocation10 + $0x98] sm:$0xff]
          %v714 = vld [vmem:[#allocation10 + $0xa0] sm:$0xff]
          %v715 = vld [vmem:[#allocation10 + $0xa8] sm:$0xff]
          %v716 = vld [vmem:[#allocation10 + $0xb0] sm:$0xff]
          %v717 = vld [vmem:[#allocation10 + $0xb8] sm:$0xff]
          %v718 = vld [vmem:[#allocation10 + $0xc0] sm:$0xff]
          %v719 = vld [vmem:[#allocation10 + $0xc8] sm:$0xff]
          %v720 = vld [vmem:[#allocation10 + $0xd0] sm:$0xff]
          %v721 = vld [vmem:[#allocation10 + $0xd8] sm:$0xff]
          %v722 = vld [vmem:[#allocation10 + $0xe0] sm:$0xff]
          %v723 = vld [vmem:[#allocation10 + $0xe8] sm:$0xff]
          %v724 = vld [vmem:[#allocation10 + $0xf0] sm:$0xff]
          %v725 = vld [vmem:[#allocation10 + $0xf8] sm:$0xff]
          %v726 = vld [vmem:[%s5] sm:$0x3]
          %v728 = vlaneseq
          %v729 = vshrl.u32 %v728, 7
          %v730 = vsub.s32 0, %v729
          %v731 = vrot.slane %v726, %v730
          %v732 = vlaneseq
          %v733 = vshrl.u32 %v732, 7
          %v734 = vsub.s32 1, %v733
          %v735 = vrot.slane %v726, %v734
          %738 = vmatprep.subr.mxu0 %v695
          %739 = vmatpush1.msra.mxu0 %v694
          %740 = vmatprep.subr.mxu0 %v697
          %741 = vmatpush1.msra.mxu0 %v696
          %742 = vmatprep.subr.mxu0 %v699
          %743 = vmatpush1.msra.mxu0 %v698
          %744 = vmatprep.subr.mxu0 %v701
          %745 = vmatpush1.msra.mxu0 %v700
          %746 = vmatprep.subr.mxu0 %v703
          %747 = vmatpush1.msra.mxu0 %v702
          %748 = vmatprep.subr.mxu0 %v705
          %749 = vmatpush1.msra.mxu0 %v704
          %750 = vmatprep.subr.mxu0 %v707
          %751 = vmatpush1.msra.mxu0 %v706
          %752 = vmatprep.subr.mxu0 %v709
          %753 = vmatpush1.msra.mxu0 %v708
          %754 = vmatprep.subr.mxu0 %v711
          %755 = vmatpush1.msra.mxu0 %v710
          %756 = vmatprep.subr.mxu0 %v713
          %757 = vmatpush1.msra.mxu0 %v712
          %758 = vmatprep.subr.mxu0 %v715
          %759 = vmatpush1.msra.mxu0 %v714
          %760 = vmatprep.subr.mxu0 %v717
          %761 = vmatpush1.msra.mxu0 %v716
          %762 = vmatprep.subr.mxu0 %v719
          %763 = vmatpush1.msra.mxu0 %v718
          %764 = vmatprep.subr.mxu0 %v721
          %765 = vmatpush1.msra.mxu0 %v720
          %766 = vmatprep.subr.mxu0 %v723
          %767 = vmatpush1.msra.mxu0 %v722
          %768 = vmatprep.subr.mxu0 %v725
          %769 = vmatpush1.msra.mxu0 %v724
          %770 = vmatprep.subr.mxu0 0.0
          %771 = vmatpush1.msra.mxu0 0.0
          %772 = vmatprep.subr.mxu0 0.0
          %773 = vmatpush1.msra.mxu0 0.0
          %774 = vmatprep.subr.mxu0 0.0
          %775 = vmatpush1.msra.mxu0 0.0
          %776 = vmatprep.subr.mxu0 0.0
          %777 = vmatpush1.msra.mxu0 0.0
          %778 = vmatprep.subr.mxu0 0.0
          %779 = vmatpush1.msra.mxu0 0.0
          %780 = vmatprep.subr.mxu0 0.0
          %781 = vmatpush1.msra.mxu0 0.0
          %782 = vmatprep.subr.mxu0 0.0
          %783 = vmatpush1.msra.mxu0 0.0
          %784 = vmatprep.subr.mxu0 0.0
          %785 = vmatpush1.msra.mxu0 0.0
          %786 = vmatprep.subr.mxu0 0.0
          %787 = vmatpush1.msra.mxu0 0.0
          %788 = vmatprep.subr.mxu0 0.0
          %789 = vmatpush1.msra.mxu0 0.0
          %790 = vmatprep.subr.mxu0 0.0
          %791 = vmatpush1.msra.mxu0 0.0
          %792 = vmatprep.subr.mxu0 0.0
          %793 = vmatpush1.msra.mxu0 0.0
          %794 = vmatprep.subr.mxu0 0.0
          %795 = vmatpush1.msra.mxu0 0.0
          %796 = vmatprep.subr.mxu0 0.0
          %797 = vmatpush1.msra.mxu0 0.0
          %798 = vmatprep.subr.mxu0 0.0
          %799 = vmatpush1.msra.mxu0 0.0
          %800 = vmatprep.subr.mxu0 0.0
          %801 = vmatpush1.msra.mxu0 0.0
          %802 = vmatprep.mubr.f32.mxu0 0.0
          %803 = vmatmul.mubr.f32.gmra.mrb[0].mxu0 %v692
          %v804 = vpop.f32.mrb[0].mxu0
          %v805 = vadd.f32 %v731, %v804
          %v806 = vpop.f32.mrb[0].mxu0
          %v807 = vadd.f32 %v735, %v806
          %808 = vmatprep.mubr.f32.mxu0 0.0
          %809 = vmatmul.mubr.f32.gmra.mrb[0].mxu0 %v693
          %v810 = vpop.f32.mrb[0].mxu0
          %v811 = vadd.f32 %v731, %v810
          %v812 = vpop.f32.mrb[0].mxu0
          %v813 = vadd.f32 %v735, %v812
          %814 = vdwg.mxu0
          %815 = vst [vmem:[#allocation2] sm:$0xff] %v805
          %816 = vst [vmem:[#allocation2 + $0x8] sm:$0xff] %v807
          %817 = vst [vmem:[#allocation2 + $0x10] sm:$0xff] %v811
          %818 = vst [vmem:[#allocation2 + $0x18] sm:$0xff] %v813
        $region116: #{tpu_custom_call.1} parent=83 // pred_fallthru
          _
        %v819 = vld [vmem:[%s601] sm:$0xff]
        %v820 = vld [vmem:[#allocation9] sm:$0xff]
        %v821 = vld [vmem:[#allocation9 + $0x8] sm:$0xff]
        %v822 = vld [vmem:[#allocation9 + $0x10] sm:$0xff]
        %v823 = vld [vmem:[#allocation9 + $0x18] sm:$0xff]
        %v824 = vld [vmem:[#allocation9 + $0x20] sm:$0xff]
        %v825 = vld [vmem:[#allocation9 + $0x28] sm:$0xff]
        %v826 = vld [vmem:[#allocation9 + $0x30] sm:$0xff]
        %v827 = vld [vmem:[#allocation9 + $0x38] sm:$0xff]
        %v828 = vld [vmem:[#allocation9 + $0x40] sm:$0xff]
        %v829 = vld [vmem:[#allocation9 + $0x48] sm:$0xff]
        %v830 = vld [vmem:[#allocation9 + $0x50] sm:$0xff]
        %v831 = vld [vmem:[#allocation9 + $0x58] sm:$0xff]
        %v832 = vld [vmem:[#allocation9 + $0x60] sm:$0xff]
        %v833 = vld [vmem:[#allocation9 + $0x68] sm:$0xff]
        %v834 = vld [vmem:[#allocation9 + $0x70] sm:$0xff]
        %v835 = vld [vmem:[#allocation9 + $0x78] sm:$0xff]
        %v836 = vld [vmem:[%s3] sm:$0x1]
        %v838 = vlaneseq
        %v839 = vshrl.u32 %v838, 7
        %v840 = vsub.s32 0, %v839
        %v841 = vrot.slane %v836, %v840
        %843 = vmatprep.subr.mxu0 0.0
        %844 = vmatpush1.msra.mxu0 %v820
        %845 = vmatprep.subr.mxu0 0.0
        %846 = vmatpush1.msra.mxu0 %v821
        %847 = vmatprep.subr.mxu0 0.0
        %848 = vmatpush1.msra.mxu0 %v822
        %849 = vmatprep.subr.mxu0 0.0
        %850 = vmatpush1.msra.mxu0 %v823
        %851 = vmatprep.subr.mxu0 0.0
        %852 = vmatpush1.msra.mxu0 %v824
        %853 = vmatprep.subr.mxu0 0.0
        %854 = vmatpush1.msra.mxu0 %v825
        %855 = vmatprep.subr.mxu0 0.0
        %856 = vmatpush1.msra.mxu0 %v826
        %857 = vmatprep.subr.mxu0 0.0
        %858 = vmatpush1.msra.mxu0 %v827
        %859 = vmatprep.subr.mxu0 0.0
        %860 = vmatpush1.msra.mxu0 %v828
        %861 = vmatprep.subr.mxu0 0.0
        %862 = vmatpush1.msra.mxu0 %v829
        %863 = vmatprep.subr.mxu0 0.0
        %864 = vmatpush1.msra.mxu0 %v830
        %865 = vmatprep.subr.mxu0 0.0
        %866 = vmatpush1.msra.mxu0 %v831
        %867 = vmatprep.subr.mxu0 0.0
        %868 = vmatpush1.msra.mxu0 %v832
        %869 = vmatprep.subr.mxu0 0.0
        %870 = vmatpush1.msra.mxu0 %v833
        %871 = vmatprep.subr.mxu0 0.0
        %872 = vmatpush1.msra.mxu0 %v834
        %873 = vmatprep.subr.mxu0 0.0
        %874 = vmatpush1.msra.mxu0 %v835
        %875 = vmatprep.subr.mxu0 0.0
        %876 = vmatpush1.msra.mxu0 0.0
        %877 = vmatprep.subr.mxu0 0.0
        %878 = vmatpush1.msra.mxu0 0.0
        %879 = vmatprep.subr.mxu0 0.0
        %880 = vmatpush1.msra.mxu0 0.0
        %881 = vmatprep.subr.mxu0 0.0
        %882 = vmatpush1.msra.mxu0 0.0
        %883 = vmatprep.subr.mxu0 0.0
        %884 = vmatpush1.msra.mxu0 0.0
        %885 = vmatprep.subr.mxu0 0.0
        %886 = vmatpush1.msra.mxu0 0.0
        %887 = vmatprep.subr.mxu0 0.0
        %888 = vmatpush1.msra.mxu0 0.0
        %889 = vmatprep.subr.mxu0 0.0
        %890 = vmatpush1.msra.mxu0 0.0
        %891 = vmatprep.subr.mxu0 0.0
        %892 = vmatpush1.msra.mxu0 0.0
        %893 = vmatprep.subr.mxu0 0.0
        %894 = vmatpush1.msra.mxu0 0.0
        %895 = vmatprep.subr.mxu0 0.0
        %896 = vmatpush1.msra.mxu0 0.0
        %897 = vmatprep.subr.mxu0 0.0
        %898 = vmatpush1.msra.mxu0 0.0
        %899 = vmatprep.subr.mxu0 0.0
        %900 = vmatpush1.msra.mxu0 0.0
        %901 = vmatprep.subr.mxu0 0.0
        %902 = vmatpush1.msra.mxu0 0.0
        %903 = vmatprep.subr.mxu0 0.0
        %904 = vmatpush1.msra.mxu0 0.0
        %905 = vmatprep.subr.mxu0 0.0
        %906 = vmatpush1.msra.mxu0 0.0
        %907 = vmatprep.mubr.f32.mxu0 0.0
        %908 = vmatmul.mubr.f32.gmra.mrb[0].mxu0 %v819
        %v909 = vpop.f32.mrb[0].mxu0
        %v910 = vadd.f32 %v841, %v909
        %v911 = vpop.f32.mrb[0].mxu0
        %912 = vdwg.mxu0
        %v913 = vld [vmem:[#allocation2] sm:$0xff]
        %v914 = vld [vmem:[#allocation2 + $0x10] sm:$0xff]
        %v915 = vld [vmem:[#allocation2 + $0x8] sm:$0xff]
        %v916 = vld [vmem:[#allocation2 + $0x18] sm:$0xff]
        %vm917 = vcmask 261120
        %v919 = vsel %vm917, %v910, 0
        %v922 = vsel %vm917, %v913, 0
        %v925 = vsel %vm917, %v914, 0
        %927 = vmatprep.subr.mxu0 0.0
        %928 = vmatpush1.xpose.msra.mxu0 %v922
        %929 = vmatprep.subr.mxu0 0.0
        %930 = vmatpush1.xpose.msra.mxu0 %v925
        %931 = vmatprep.subr.mxu0 0.0
        %932 = vmatpush1.xpose.msra.mxu0 0.0
        %933 = vmatprep.subr.mxu0 0.0
        %934 = vmatpush1.xpose.msra.mxu0 0.0
        %935 = vmatprep.subr.mxu0 0.0
        %936 = vmatpush1.xpose.msra.mxu0 0.0
        %937 = vmatprep.subr.mxu0 0.0
        %938 = vmatpush1.xpose.msra.mxu0 0.0
        %939 = vmatprep.subr.mxu0 0.0
        %940 = vmatpush1.xpose.msra.mxu0 0.0
        %941 = vmatprep.subr.mxu0 0.0
        %942 = vmatpush1.xpose.msra.mxu0 0.0
        %943 = vmatprep.subr.mxu0 0.0
        %944 = vmatpush1.xpose.msra.mxu0 0.0
        %945 = vmatprep.subr.mxu0 0.0
        %946 = vmatpush1.xpose.msra.mxu0 0.0
        %947 = vmatprep.subr.mxu0 0.0
        %948 = vmatpush1.xpose.msra.mxu0 0.0
        %949 = vmatprep.subr.mxu0 0.0
        %950 = vmatpush1.xpose.msra.mxu0 0.0
        %951 = vmatprep.subr.mxu0 0.0
        %952 = vmatpush1.xpose.msra.mxu0 0.0
        %953 = vmatprep.subr.mxu0 0.0
        %954 = vmatpush1.xpose.msra.mxu0 0.0
        %955 = vmatprep.subr.mxu0 0.0
        %956 = vmatpush1.xpose.msra.mxu0 0.0
        %957 = vmatprep.subr.mxu0 0.0
        %958 = vmatpush1.xpose.msra.mxu0 0.0
        %959 = vmatprep.subr.mxu0 0.0
        %960 = vmatpush1.xpose.msra.mxu0 0.0
        %961 = vmatprep.subr.mxu0 0.0
        %962 = vmatpush1.xpose.msra.mxu0 0.0
        %963 = vmatprep.subr.mxu0 0.0
        %964 = vmatpush1.xpose.msra.mxu0 0.0
        %965 = vmatprep.subr.mxu0 0.0
        %966 = vmatpush1.xpose.msra.mxu0 0.0
        %967 = vmatprep.subr.mxu0 0.0
        %968 = vmatpush1.xpose.msra.mxu0 0.0
        %969 = vmatprep.subr.mxu0 0.0
        %970 = vmatpush1.xpose.msra.mxu0 0.0
        %971 = vmatprep.subr.mxu0 0.0
        %972 = vmatpush1.xpose.msra.mxu0 0.0
        %973 = vmatprep.subr.mxu0 0.0
        %974 = vmatpush1.xpose.msra.mxu0 0.0
        %975 = vmatprep.subr.mxu0 0.0
        %976 = vmatpush1.xpose.msra.mxu0 0.0
        %977 = vmatprep.subr.mxu0 0.0
        %978 = vmatpush1.xpose.msra.mxu0 0.0
        %979 = vmatprep.subr.mxu0 0.0
        %980 = vmatpush1.xpose.msra.mxu0 0.0
        %981 = vmatprep.subr.mxu0 0.0
        %982 = vmatpush1.xpose.msra.mxu0 0.0
        %983 = vmatprep.subr.mxu0 0.0
        %984 = vmatpush1.xpose.msra.mxu0 0.0
        %985 = vmatprep.subr.mxu0 0.0
        %986 = vmatpush1.xpose.msra.mxu0 0.0
        %987 = vmatprep.subr.mxu0 0.0
        %988 = vmatpush1.xpose.msra.mxu0 0.0
        %989 = vmatprep.subr.mxu0 0.0
        %990 = vmatpush1.xpose.msra.mxu0 0.0
        %991 = vmatprep.mubr.f32.mxu0 0.0
        %992 = vmatmul.mubr.f32.gmra.mrb[0].mxu0 %v919
        %v993 = vpop.f32.mrb[0].mxu0
        %v994 = vadd.f32 0.0, %v993
        %v995 = vpop.f32.mrb[0].mxu0
        %996 = vdwg.mxu0
        %vm997 = vcmask 130048
        %v998 = vsel %vm997, %v994, -inf
        %999 = vmax.xlane.f32.xlu0 %v998
        %v1000 = vpop.xlane.xlu0 %999
        %v1001 = vsub.f32 %v994, %v1000
        %v1002 = vmul.f32 %v1001, 1.442695
        %v1003 = vpow.pop %v1002
        %v1004 = vsel %vm997, %v1003, 0.0
        %1005 = vadd.xlane.f32.xlu0 %v1004
        %v1006 = vpop.xlane.xlu0 %1005
        %v1007 = vrcp.pop %v1006
        %v1008 = vmul.f32 %v1003, %v1007
        %v1010 = vsel %vm997, %v1008, 0
        %1012 = vmatprep.subr.mxu0 0.0
        %1013 = vmatpush1.msra.mxu0 %v915
        %1014 = vmatprep.subr.mxu0 0.0
        %1015 = vmatpush1.msra.mxu0 %v916
        %1016 = vmatprep.subr.mxu0 0.0
        %1017 = vmatpush1.msra.mxu0 0.0
        %1018 = vmatprep.subr.mxu0 0.0
        %1019 = vmatpush1.msra.mxu0 0.0
        %1020 = vmatprep.subr.mxu0 0.0
        %1021 = vmatpush1.msra.mxu0 0.0
        %1022 = vmatprep.subr.mxu0 0.0
        %1023 = vmatpush1.msra.mxu0 0.0
        %1024 = vmatprep.subr.mxu0 0.0
        %1025 = vmatpush1.msra.mxu0 0.0
        %1026 = vmatprep.subr.mxu0 0.0
        %1027 = vmatpush1.msra.mxu0 0.0
        %1028 = vmatprep.subr.mxu0 0.0
        %1029 = vmatpush1.msra.mxu0 0.0
        %1030 = vmatprep.subr.mxu0 0.0
        %1031 = vmatpush1.msra.mxu0 0.0
        %1032 = vmatprep.subr.mxu0 0.0
        %1033 = vmatpush1.msra.mxu0 0.0
        %1034 = vmatprep.subr.mxu0 0.0
        %1035 = vmatpush1.msra.mxu0 0.0
        %1036 = vmatprep.subr.mxu0 0.0
        %1037 = vmatpush1.msra.mxu0 0.0
        %1038 = vmatprep.subr.mxu0 0.0
        %1039 = vmatpush1.msra.mxu0 0.0
        %1040 = vmatprep.subr.mxu0 0.0
        %1041 = vmatpush1.msra.mxu0 0.0
        %1042 = vmatprep.subr.mxu0 0.0
        %1043 = vmatpush1.msra.mxu0 0.0
        %1044 = vmatprep.subr.mxu0 0.0
        %1045 = vmatpush1.msra.mxu0 0.0
        %1046 = vmatprep.subr.mxu0 0.0
        %1047 = vmatpush1.msra.mxu0 0.0
        %1048 = vmatprep.subr.mxu0 0.0
        %1049 = vmatpush1.msra.mxu0 0.0
        %1050 = vmatprep.subr.mxu0 0.0
        %1051 = vmatpush1.msra.mxu0 0.0
        %1052 = vmatprep.subr.mxu0 0.0
        %1053 = vmatpush1.msra.mxu0 0.0
        %1054 = vmatprep.subr.mxu0 0.0
        %1055 = vmatpush1.msra.mxu0 0.0
        %1056 = vmatprep.subr.mxu0 0.0
        %1057 = vmatpush1.msra.mxu0 0.0
        %1058 = vmatprep.subr.mxu0 0.0
        %1059 = vmatpush1.msra.mxu0 0.0
        %1060 = vmatprep.subr.mxu0 0.0
        %1061 = vmatpush1.msra.mxu0 0.0
        %1062 = vmatprep.subr.mxu0 0.0
        %1063 = vmatpush1.msra.mxu0 0.0
        %1064 = vmatprep.subr.mxu0 0.0
        %1065 = vmatpush1.msra.mxu0 0.0
        %1066 = vmatprep.subr.mxu0 0.0
        %1067 = vmatpush1.msra.mxu0 0.0
        %1068 = vmatprep.subr.mxu0 0.0
        %1069 = vmatpush1.msra.mxu0 0.0
        %1070 = vmatprep.subr.mxu0 0.0
        %1071 = vmatpush1.msra.mxu0 0.0
        %1072 = vmatprep.subr.mxu0 0.0
        %1073 = vmatpush1.msra.mxu0 0.0
        %1074 = vmatprep.subr.mxu0 0.0
        %1075 = vmatpush1.msra.mxu0 0.0
        %1076 = vmatprep.mubr.f32.mxu0 0.0
        %1077 = vmatmul.mubr.f32.gmra.mrb[0].mxu0 %v1010
        %v1078 = vpop.f32.mrb[0].mxu0
        %v1079 = vadd.f32 0.0, %v1078
        %v1080 = vpop.f32.mrb[0].mxu0
        %1081 = vdwg.mxu0
        %1082 = vst.msk [vmem:[#allocation3] sm:$0xff] %vm917, %v1079
        %v1083 = vld [vmem:[#allocation2] sm:$0xff]
        %v1084 = vld [vmem:[#allocation2 + $0x10] sm:$0xff]
        %v1085 = vld [vmem:[#allocation2 + $0x8] sm:$0xff]
        %v1086 = vld [vmem:[#allocation2 + $0x18] sm:$0xff]
        %1087 = vrot.lane.b32.xlu0 %v910, 96
        %v1088 = vpop.permute.xlu0 %1087
        %1091 = vrot.lane.b32.xlu0 %v1083, 96
        %v1092 = vpop.permute.xlu0 %1091
        %1093 = vrot.lane.b32.xlu0 %v1084, 96
        %v1094 = vpop.permute.xlu0 %1093
        %v1095 = vsel %vm917, %v1088, 0
        %v1097 = vsel %vm917, %v1092, 0
        %v1099 = vsel %vm917, %v1094, 0
        %1101 = vmatprep.subr.mxu0 0.0
        %1102 = vmatpush1.xpose.msra.mxu0 %v1097
        %1103 = vmatprep.subr.mxu0 0.0
        %1104 = vmatpush1.xpose.msra.mxu0 %v1099
        %1105 = vmatprep.subr.mxu0 0.0
        %1106 = vmatpush1.xpose.msra.mxu0 0.0
        %1107 = vmatprep.subr.mxu0 0.0
        %1108 = vmatpush1.xpose.msra.mxu0 0.0
        %1109 = vmatprep.subr.mxu0 0.0
        %1110 = vmatpush1.xpose.msra.mxu0 0.0
        %1111 = vmatprep.subr.mxu0 0.0
        %1112 = vmatpush1.xpose.msra.mxu0 0.0
        %1113 = vmatprep.subr.mxu0 0.0
        %1114 = vmatpush1.xpose.msra.mxu0 0.0
        %1115 = vmatprep.subr.mxu0 0.0
        %1116 = vmatpush1.xpose.msra.mxu0 0.0
        %1117 = vmatprep.subr.mxu0 0.0
        %1118 = vmatpush1.xpose.msra.mxu0 0.0
        %1119 = vmatprep.subr.mxu0 0.0
        %1120 = vmatpush1.xpose.msra.mxu0 0.0
        %1121 = vmatprep.subr.mxu0 0.0
        %1122 = vmatpush1.xpose.msra.mxu0 0.0
        %1123 = vmatprep.subr.mxu0 0.0
        %1124 = vmatpush1.xpose.msra.mxu0 0.0
        %1125 = vmatprep.subr.mxu0 0.0
        %1126 = vmatpush1.xpose.msra.mxu0 0.0
        %1127 = vmatprep.subr.mxu0 0.0
        %1128 = vmatpush1.xpose.msra.mxu0 0.0
        %1129 = vmatprep.subr.mxu0 0.0
        %1130 = vmatpush1.xpose.msra.mxu0 0.0
        %1131 = vmatprep.subr.mxu0 0.0
        %1132 = vmatpush1.xpose.msra.mxu0 0.0
        %1133 = vmatprep.subr.mxu0 0.0
        %1134 = vmatpush1.xpose.msra.mxu0 0.0
        %1135 = vmatprep.subr.mxu0 0.0
        %1136 = vmatpush1.xpose.msra.mxu0 0.0
        %1137 = vmatprep.subr.mxu0 0.0
        %1138 = vmatpush1.xpose.msra.mxu0 0.0
        %1139 = vmatprep.subr.mxu0 0.0
        %1140 = vmatpush1.xpose.msra.mxu0 0.0
        %1141 = vmatprep.subr.mxu0 0.0
        %1142 = vmatpush1.xpose.msra.mxu0 0.0
        %1143 = vmatprep.subr.mxu0 0.0
        %1144 = vmatpush1.xpose.msra.mxu0 0.0
        %1145 = vmatprep.subr.mxu0 0.0
        %1146 = vmatpush1.xpose.msra.mxu0 0.0
        %1147 = vmatprep.subr.mxu0 0.0
        %1148 = vmatpush1.xpose.msra.mxu0 0.0
        %1149 = vmatprep.subr.mxu0 0.0
        %1150 = vmatpush1.xpose.msra.mxu0 0.0
        %1151 = vmatprep.subr.mxu0 0.0
        %1152 = vmatpush1.xpose.msra.mxu0 0.0
        %1153 = vmatprep.subr.mxu0 0.0
        %1154 = vmatpush1.xpose.msra.mxu0 0.0
        %1155 = vmatprep.subr.mxu0 0.0
        %1156 = vmatpush1.xpose.msra.mxu0 0.0
        %1157 = vmatprep.subr.mxu0 0.0
        %1158 = vmatpush1.xpose.msra.mxu0 0.0
        %1159 = vmatprep.subr.mxu0 0.0
        %1160 = vmatpush1.xpose.msra.mxu0 0.0
        %1161 = vmatprep.subr.mxu0 0.0
        %1162 = vmatpush1.xpose.msra.mxu0 0.0
        %1163 = vmatprep.subr.mxu0 0.0
        %1164 = vmatpush1.xpose.msra.mxu0 0.0
        %1165 = vmatprep.mubr.f32.mxu0 0.0
        %1166 = vmatmul.mubr.f32.gmra.mrb[0].mxu0 %v1095
        %v1167 = vpop.f32.mrb[0].mxu0
        %v1168 = vadd.f32 0.0, %v1167
        %v1169 = vpop.f32.mrb[0].mxu0
        %1170 = vdwg.mxu0
        %v1171 = vsel %vm997, %v1168, -inf
        %1172 = vmax.xlane.f32.xlu0 %v1171
        %v1173 = vpop.xlane.xlu0 %1172
        %v1174 = vsub.f32 %v1168, %v1173
        %v1175 = vmul.f32 %v1174, 1.442695
        %v1176 = vpow.pop %v1175
        %v1177 = vsel %vm997, %v1176, 0.0
        %1178 = vadd.xlane.f32.xlu0 %v1177
        %v1179 = vpop.xlane.xlu0 %1178
        %v1180 = vrcp.pop %v1179
        %v1181 = vmul.f32 %v1176, %v1180
        %1184 = vrot.lane.b32.xlu0 %v1085, 96
        %v1185 = vpop.permute.xlu0 %1184
        %1186 = vrot.lane.b32.xlu0 %v1086, 96
        %v1187 = vpop.permute.xlu0 %1186
        %v1191 = vsel %vm997, %v1181, 0
        %1193 = vmatprep.subr.mxu0 0.0
        %1194 = vmatpush1.msra.mxu0 %v1185
        %1195 = vmatprep.subr.mxu0 0.0
        %1196 = vmatpush1.msra.mxu0 %v1187
        %1197 = vmatprep.subr.mxu0 0.0
        %1198 = vmatpush1.msra.mxu0 0.0
        %1199 = vmatprep.subr.mxu0 0.0
        %1200 = vmatpush1.msra.mxu0 0.0
        %1201 = vmatprep.subr.mxu0 0.0
        %1202 = vmatpush1.msra.mxu0 0.0
        %1203 = vmatprep.subr.mxu0 0.0
        %1204 = vmatpush1.msra.mxu0 0.0
        %1205 = vmatprep.subr.mxu0 0.0
        %1206 = vmatpush1.msra.mxu0 0.0
        %1207 = vmatprep.subr.mxu0 0.0
        %1208 = vmatpush1.msra.mxu0 0.0
        %1209 = vmatprep.subr.mxu0 0.0
        %1210 = vmatpush1.msra.mxu0 0.0
        %1211 = vmatprep.subr.mxu0 0.0
        %1212 = vmatpush1.msra.mxu0 0.0
        %1213 = vmatprep.subr.mxu0 0.0
        %1214 = vmatpush1.msra.mxu0 0.0
        %1215 = vmatprep.subr.mxu0 0.0
        %1216 = vmatpush1.msra.mxu0 0.0
        %1217 = vmatprep.subr.mxu0 0.0
        %1218 = vmatpush1.msra.mxu0 0.0
        %1219 = vmatprep.subr.mxu0 0.0
        %1220 = vmatpush1.msra.mxu0 0.0
        %1221 = vmatprep.subr.mxu0 0.0
        %1222 = vmatpush1.msra.mxu0 0.0
        %1223 = vmatprep.subr.mxu0 0.0
        %1224 = vmatpush1.msra.mxu0 0.0
        %1225 = vmatprep.subr.mxu0 0.0
        %1226 = vmatpush1.msra.mxu0 0.0
        %1227 = vmatprep.subr.mxu0 0.0
        %1228 = vmatpush1.msra.mxu0 0.0
        %1229 = vmatprep.subr.mxu0 0.0
        %1230 = vmatpush1.msra.mxu0 0.0
        %1231 = vmatprep.subr.mxu0 0.0
        %1232 = vmatpush1.msra.mxu0 0.0
        %1233 = vmatprep.subr.mxu0 0.0
        %1234 = vmatpush1.msra.mxu0 0.0
        %1235 = vmatprep.subr.mxu0 0.0
        %1236 = vmatpush1.msra.mxu0 0.0
        %1237 = vmatprep.subr.mxu0 0.0
        %1238 = vmatpush1.msra.mxu0 0.0
        %1239 = vmatprep.subr.mxu0 0.0
        %1240 = vmatpush1.msra.mxu0 0.0
        %1241 = vmatprep.subr.mxu0 0.0
        %1242 = vmatpush1.msra.mxu0 0.0
        %1243 = vmatprep.subr.mxu0 0.0
        %1244 = vmatpush1.msra.mxu0 0.0
        %1245 = vmatprep.subr.mxu0 0.0
        %1246 = vmatpush1.msra.mxu0 0.0
        %1247 = vmatprep.subr.mxu0 0.0
        %1248 = vmatpush1.msra.mxu0 0.0
        %1249 = vmatprep.subr.mxu0 0.0
        %1250 = vmatpush1.msra.mxu0 0.0
        %1251 = vmatprep.subr.mxu0 0.0
        %1252 = vmatpush1.msra.mxu0 0.0
        %1253 = vmatprep.subr.mxu0 0.0
        %1254 = vmatpush1.msra.mxu0 0.0
        %1255 = vmatprep.subr.mxu0 0.0
        %1256 = vmatpush1.msra.mxu0 0.0
        %1257 = vmatprep.mubr.f32.mxu0 0.0
        %1258 = vmatmul.mubr.f32.gmra.mrb[0].mxu0 %v1191
        %v1259 = vpop.f32.mrb[0].mxu0
        %v1260 = vadd.f32 0.0, %v1259
        %v1261 = vpop.f32.mrb[0].mxu0
        %1262 = vdwg.mxu0
        %1264 = vrot.lane.b32.xlu0 %v1260, 32
        %v1265 = vpop.permute.xlu0 %1264
        %vm1267 = vcmask 523520
        %1268 = vst.msk [vmem:[#allocation3] sm:$0xff] %vm1267, %v1265
        %v1269 = vld [vmem:[#allocation2] sm:$0xff]
        %v1270 = vld [vmem:[#allocation2 + $0x10] sm:$0xff]
        %v1271 = vld [vmem:[#allocation2 + $0x8] sm:$0xff]
        %v1272 = vld [vmem:[#allocation2 + $0x18] sm:$0xff]
        %1273 = vrot.lane.b32.xlu0 %v910, 64
        %v1274 = vpop.permute.xlu0 %1273
        %1277 = vrot.lane.b32.xlu0 %v1269, 64
        %v1278 = vpop.permute.xlu0 %1277
        %1279 = vrot.lane.b32.xlu0 %v1270, 64
        %v1280 = vpop.permute.xlu0 %1279
        %v1281 = vsel %vm917, %v1274, 0
        %v1283 = vsel %vm917, %v1278, 0
        %v1285 = vsel %vm917, %v1280, 0
        %1287 = vmatprep.subr.mxu0 0.0
        %1288 = vmatpush1.xpose.msra.mxu0 %v1283
        %1289 = vmatprep.subr.mxu0 0.0
        %1290 = vmatpush1.xpose.msra.mxu0 %v1285
        %1291 = vmatprep.subr.mxu0 0.0
        %1292 = vmatpush1.xpose.msra.mxu0 0.0
        %1293 = vmatprep.subr.mxu0 0.0
        %1294 = vmatpush1.xpose.msra.mxu0 0.0
        %1295 = vmatprep.subr.mxu0 0.0
        %1296 = vmatpush1.xpose.msra.mxu0 0.0
        %1297 = vmatprep.subr.mxu0 0.0
        %1298 = vmatpush1.xpose.msra.mxu0 0.0
        %1299 = vmatprep.subr.mxu0 0.0
        %1300 = vmatpush1.xpose.msra.mxu0 0.0
        %1301 = vmatprep.subr.mxu0 0.0
        %1302 = vmatpush1.xpose.msra.mxu0 0.0
        %1303 = vmatprep.subr.mxu0 0.0
        %1304 = vmatpush1.xpose.msra.mxu0 0.0
        %1305 = vmatprep.subr.mxu0 0.0
        %1306 = vmatpush1.xpose.msra.mxu0 0.0
        %1307 = vmatprep.subr.mxu0 0.0
        %1308 = vmatpush1.xpose.msra.mxu0 0.0
        %1309 = vmatprep.subr.mxu0 0.0
        %1310 = vmatpush1.xpose.msra.mxu0 0.0
        %1311 = vmatprep.subr.mxu0 0.0
        %1312 = vmatpush1.xpose.msra.mxu0 0.0
        %1313 = vmatprep.subr.mxu0 0.0
        %1314 = vmatpush1.xpose.msra.mxu0 0.0
        %1315 = vmatprep.subr.mxu0 0.0
        %1316 = vmatpush1.xpose.msra.mxu0 0.0
        %1317 = vmatprep.subr.mxu0 0.0
        %1318 = vmatpush1.xpose.msra.mxu0 0.0
        %1319 = vmatprep.subr.mxu0 0.0
        %1320 = vmatpush1.xpose.msra.mxu0 0.0
        %1321 = vmatprep.subr.mxu0 0.0
        %1322 = vmatpush1.xpose.msra.mxu0 0.0
        %1323 = vmatprep.subr.mxu0 0.0
        %1324 = vmatpush1.xpose.msra.mxu0 0.0
        %1325 = vmatprep.subr.mxu0 0.0
        %1326 = vmatpush1.xpose.msra.mxu0 0.0
        %1327 = vmatprep.subr.mxu0 0.0
        %1328 = vmatpush1.xpose.msra.mxu0 0.0
        %1329 = vmatprep.subr.mxu0 0.0
        %1330 = vmatpush1.xpose.msra.mxu0 0.0
        %1331 = vmatprep.subr.mxu0 0.0
        %1332 = vmatpush1.xpose.msra.mxu0 0.0
        %1333 = vmatprep.subr.mxu0 0.0
        %1334 = vmatpush1.xpose.msra.mxu0 0.0
        %1335 = vmatprep.subr.mxu0 0.0
        %1336 = vmatpush1.xpose.msra.mxu0 0.0
        %1337 = vmatprep.subr.mxu0 0.0
        %1338 = vmatpush1.xpose.msra.mxu0 0.0
        %1339 = vmatprep.subr.mxu0 0.0
        %1340 = vmatpush1.xpose.msra.mxu0 0.0
        %1341 = vmatprep.subr.mxu0 0.0
        %1342 = vmatpush1.xpose.msra.mxu0 0.0
        %1343 = vmatprep.subr.mxu0 0.0
        %1344 = vmatpush1.xpose.msra.mxu0 0.0
        %1345 = vmatprep.subr.mxu0 0.0
        %1346 = vmatpush1.xpose.msra.mxu0 0.0
        %1347 = vmatprep.subr.mxu0 0.0
        %1348 = vmatpush1.xpose.msra.mxu0 0.0
        %1349 = vmatprep.subr.mxu0 0.0
        %1350 = vmatpush1.xpose.msra.mxu0 0.0
        %1351 = vmatprep.mubr.f32.mxu0 0.0
        %1352 = vmatmul.mubr.f32.gmra.mrb[0].mxu0 %v1281
        %v1353 = vpop.f32.mrb[0].mxu0
        %v1354 = vadd.f32 0.0, %v1353
        %v1355 = vpop.f32.mrb[0].mxu0
        %1356 = vdwg.mxu0
        %v1357 = vsel %vm997, %v1354, -inf
        %1358 = vmax.xlane.f32.xlu0 %v1357
        %v1359 = vpop.xlane.xlu0 %1358
        %v1360 = vsub.f32 %v1354, %v1359
        %v1361 = vmul.f32 %v1360, 1.442695
        %v1362 = vpow.pop %v1361
        %v1363 = vsel %vm997, %v1362, 0.0
        %1364 = vadd.xlane.f32.xlu0 %v1363
        %v1365 = vpop.xlane.xlu0 %1364
        %v1366 = vrcp.pop %v1365
        %v1367 = vmul.f32 %v1362, %v1366
        %1370 = vrot.lane.b32.xlu0 %v1271, 64
        %v1371 = vpop.permute.xlu0 %1370
        %1372 = vrot.lane.b32.xlu0 %v1272, 64
        %v1373 = vpop.permute.xlu0 %1372
        %v1377 = vsel %vm997, %v1367, 0
        %1379 = vmatprep.subr.mxu0 0.0
        %1380 = vmatpush1.msra.mxu0 %v1371
        %1381 = vmatprep.subr.mxu0 0.0
        %1382 = vmatpush1.msra.mxu0 %v1373
        %1383 = vmatprep.subr.mxu0 0.0
        %1384 = vmatpush1.msra.mxu0 0.0
        %1385 = vmatprep.subr.mxu0 0.0
        %1386 = vmatpush1.msra.mxu0 0.0
        %1387 = vmatprep.subr.mxu0 0.0
        %1388 = vmatpush1.msra.mxu0 0.0
        %1389 = vmatprep.subr.mxu0 0.0
        %1390 = vmatpush1.msra.mxu0 0.0
        %1391 = vmatprep.subr.mxu0 0.0
        %1392 = vmatpush1.msra.mxu0 0.0
        %1393 = vmatprep.subr.mxu0 0.0
        %1394 = vmatpush1.msra.mxu0 0.0
        %1395 = vmatprep.subr.mxu0 0.0
        %1396 = vmatpush1.msra.mxu0 0.0
        %1397 = vmatprep.subr.mxu0 0.0
        %1398 = vmatpush1.msra.mxu0 0.0
        %1399 = vmatprep.subr.mxu0 0.0
        %1400 = vmatpush1.msra.mxu0 0.0
        %1401 = vmatprep.subr.mxu0 0.0
        %1402 = vmatpush1.msra.mxu0 0.0
        %1403 = vmatprep.subr.mxu0 0.0
        %1404 = vmatpush1.msra.mxu0 0.0
        %1405 = vmatprep.subr.mxu0 0.0
        %1406 = vmatpush1.msra.mxu0 0.0
        %1407 = vmatprep.subr.mxu0 0.0
        %1408 = vmatpush1.msra.mxu0 0.0
        %1409 = vmatprep.subr.mxu0 0.0
        %1410 = vmatpush1.msra.mxu0 0.0
        %1411 = vmatprep.subr.mxu0 0.0
        %1412 = vmatpush1.msra.mxu0 0.0
        %1413 = vmatprep.subr.mxu0 0.0
        %1414 = vmatpush1.msra.mxu0 0.0
        %1415 = vmatprep.subr.mxu0 0.0
        %1416 = vmatpush1.msra.mxu0 0.0
        %1417 = vmatprep.subr.mxu0 0.0
        %1418 = vmatpush1.msra.mxu0 0.0
        %1419 = vmatprep.subr.mxu0 0.0
        %1420 = vmatpush1.msra.mxu0 0.0
        %1421 = vmatprep.subr.mxu0 0.0
        %1422 = vmatpush1.msra.mxu0 0.0
        %1423 = vmatprep.subr.mxu0 0.0
        %1424 = vmatpush1.msra.mxu0 0.0
        %1425 = vmatprep.subr.mxu0 0.0
        %1426 = vmatpush1.msra.mxu0 0.0
        %1427 = vmatprep.subr.mxu0 0.0
        %1428 = vmatpush1.msra.mxu0 0.0
        %1429 = vmatprep.subr.mxu0 0.0
        %1430 = vmatpush1.msra.mxu0 0.0
        %1431 = vmatprep.subr.mxu0 0.0
        %1432 = vmatpush1.msra.mxu0 0.0
        %1433 = vmatprep.subr.mxu0 0.0
        %1434 = vmatpush1.msra.mxu0 0.0
        %1435 = vmatprep.subr.mxu0 0.0
        %1436 = vmatpush1.msra.mxu0 0.0
        %1437 = vmatprep.subr.mxu0 0.0
        %1438 = vmatpush1.msra.mxu0 0.0
        %1439 = vmatprep.subr.mxu0 0.0
        %1440 = vmatpush1.msra.mxu0 0.0
        %1441 = vmatprep.subr.mxu0 0.0
        %1442 = vmatpush1.msra.mxu0 0.0
        %1443 = vmatprep.mubr.f32.mxu0 0.0
        %1444 = vmatmul.mubr.f32.gmra.mrb[0].mxu0 %v1377
        %v1445 = vpop.f32.mrb[0].mxu0
        %v1446 = vadd.f32 0.0, %v1445
        %v1447 = vpop.f32.mrb[0].mxu0
        %1448 = vdwg.mxu0
        %1450 = vrot.lane.b32.xlu0 %v1446, 64
        %v1451 = vpop.permute.xlu0 %1450
        %vm1453 = vcmask 785920
        %1454 = vst.msk [vmem:[#allocation3] sm:$0xff] %vm1453, %v1451
        %v1455 = vld [vmem:[#allocation2] sm:$0xff]
        %v1456 = vld [vmem:[#allocation2 + $0x10] sm:$0xff]
        %v1457 = vld [vmem:[#allocation2 + $0x8] sm:$0xff]
        %v1458 = vld [vmem:[#allocation2 + $0x18] sm:$0xff]
        %1459 = vrot.lane.b32.xlu0 %v910, 32
        %v1460 = vpop.permute.xlu0 %1459
        %1463 = vrot.lane.b32.xlu0 %v1455, 32
        %v1464 = vpop.permute.xlu0 %1463
        %1465 = vrot.lane.b32.xlu0 %v1456, 32
        %v1466 = vpop.permute.xlu0 %1465
        %v1467 = vsel %vm917, %v1460, 0
        %v1469 = vsel %vm917, %v1464, 0
        %v1471 = vsel %vm917, %v1466, 0
        %1473 = vmatprep.subr.mxu0 0.0
        %1474 = vmatpush1.xpose.msra.mxu0 %v1469
        %1475 = vmatprep.subr.mxu0 0.0
        %1476 = vmatpush1.xpose.msra.mxu0 %v1471
        %1477 = vmatprep.subr.mxu0 0.0
        %1478 = vmatpush1.xpose.msra.mxu0 0.0
        %1479 = vmatprep.subr.mxu0 0.0
        %1480 = vmatpush1.xpose.msra.mxu0 0.0
        %1481 = vmatprep.subr.mxu0 0.0
        %1482 = vmatpush1.xpose.msra.mxu0 0.0
        %1483 = vmatprep.subr.mxu0 0.0
        %1484 = vmatpush1.xpose.msra.mxu0 0.0
        %1485 = vmatprep.subr.mxu0 0.0
        %1486 = vmatpush1.xpose.msra.mxu0 0.0
        %1487 = vmatprep.subr.mxu0 0.0
        %1488 = vmatpush1.xpose.msra.mxu0 0.0
        %1489 = vmatprep.subr.mxu0 0.0
        %1490 = vmatpush1.xpose.msra.mxu0 0.0
        %1491 = vmatprep.subr.mxu0 0.0
        %1492 = vmatpush1.xpose.msra.mxu0 0.0
        %1493 = vmatprep.subr.mxu0 0.0
        %1494 = vmatpush1.xpose.msra.mxu0 0.0
        %1495 = vmatprep.subr.mxu0 0.0
        %1496 = vmatpush1.xpose.msra.mxu0 0.0
        %1497 = vmatprep.subr.mxu0 0.0
        %1498 = vmatpush1.xpose.msra.mxu0 0.0
        %1499 = vmatprep.subr.mxu0 0.0
        %1500 = vmatpush1.xpose.msra.mxu0 0.0
        %1501 = vmatprep.subr.mxu0 0.0
        %1502 = vmatpush1.xpose.msra.mxu0 0.0
        %1503 = vmatprep.subr.mxu0 0.0
        %1504 = vmatpush1.xpose.msra.mxu0 0.0
        %1505 = vmatprep.subr.mxu0 0.0
        %1506 = vmatpush1.xpose.msra.mxu0 0.0
        %1507 = vmatprep.subr.mxu0 0.0
        %1508 = vmatpush1.xpose.msra.mxu0 0.0
        %1509 = vmatprep.subr.mxu0 0.0
        %1510 = vmatpush1.xpose.msra.mxu0 0.0
        %1511 = vmatprep.subr.mxu0 0.0
        %1512 = vmatpush1.xpose.msra.mxu0 0.0
        %1513 = vmatprep.subr.mxu0 0.0
        %1514 = vmatpush1.xpose.msra.mxu0 0.0
        %1515 = vmatprep.subr.mxu0 0.0
        %1516 = vmatpush1.xpose.msra.mxu0 0.0
        %1517 = vmatprep.subr.mxu0 0.0
        %1518 = vmatpush1.xpose.msra.mxu0 0.0
        %1519 = vmatprep.subr.mxu0 0.0
        %1520 = vmatpush1.xpose.msra.mxu0 0.0
        %1521 = vmatprep.subr.mxu0 0.0
        %1522 = vmatpush1.xpose.msra.mxu0 0.0
        %1523 = vmatprep.subr.mxu0 0.0
        %1524 = vmatpush1.xpose.msra.mxu0 0.0
        %1525 = vmatprep.subr.mxu0 0.0
        %1526 = vmatpush1.xpose.msra.mxu0 0.0
        %1527 = vmatprep.subr.mxu0 0.0
        %1528 = vmatpush1.xpose.msra.mxu0 0.0
        %1529 = vmatprep.subr.mxu0 0.0
        %1530 = vmatpush1.xpose.msra.mxu0 0.0
        %1531 = vmatprep.subr.mxu0 0.0
        %1532 = vmatpush1.xpose.msra.mxu0 0.0
        %1533 = vmatprep.subr.mxu0 0.0
        %1534 = vmatpush1.xpose.msra.mxu0 0.0
        %1535 = vmatprep.subr.mxu0 0.0
        %1536 = vmatpush1.xpose.msra.mxu0 0.0
        %1537 = vmatprep.mubr.f32.mxu0 0.0
        %1538 = vmatmul.mubr.f32.gmra.mrb[0].mxu0 %v1467
        %v1539 = vpop.f32.mrb[0].mxu0
        %v1540 = vadd.f32 0.0, %v1539
        %v1541 = vpop.f32.mrb[0].mxu0
        %1542 = vdwg.mxu0
        %v1543 = vsel %vm997, %v1540, -inf
        %1544 = vmax.xlane.f32.xlu0 %v1543
        %v1545 = vpop.xlane.xlu0 %1544
        %v1546 = vsub.f32 %v1540, %v1545
        %v1547 = vmul.f32 %v1546, 1.442695
        %v1548 = vpow.pop %v1547
        %v1549 = vsel %vm997, %v1548, 0.0
        %1550 = vadd.xlane.f32.xlu0 %v1549
        %v1551 = vpop.xlane.xlu0 %1550
        %v1552 = vrcp.pop %v1551
        %v1553 = vmul.f32 %v1548, %v1552
        %1556 = vrot.lane.b32.xlu0 %v1457, 32
        %v1557 = vpop.permute.xlu0 %1556
        %1558 = vrot.lane.b32.xlu0 %v1458, 32
        %v1559 = vpop.permute.xlu0 %1558
        %v1563 = vsel %vm997, %v1553, 0
        %1565 = vmatprep.subr.mxu0 0.0
        %1566 = vmatpush1.msra.mxu0 %v1557
        %1567 = vmatprep.subr.mxu0 0.0
        %1568 = vmatpush1.msra.mxu0 %v1559
        %1569 = vmatprep.subr.mxu0 0.0
        %1570 = vmatpush1.msra.mxu0 0.0
        %1571 = vmatprep.subr.mxu0 0.0
        %1572 = vmatpush1.msra.mxu0 0.0
        %1573 = vmatprep.subr.mxu0 0.0
        %1574 = vmatpush1.msra.mxu0 0.0
        %1575 = vmatprep.subr.mxu0 0.0
        %1576 = vmatpush1.msra.mxu0 0.0
        %1577 = vmatprep.subr.mxu0 0.0
        %1578 = vmatpush1.msra.mxu0 0.0
        %1579 = vmatprep.subr.mxu0 0.0
        %1580 = vmatpush1.msra.mxu0 0.0
        %1581 = vmatprep.subr.mxu0 0.0
        %1582 = vmatpush1.msra.mxu0 0.0
        %1583 = vmatprep.subr.mxu0 0.0
        %1584 = vmatpush1.msra.mxu0 0.0
        %1585 = vmatprep.subr.mxu0 0.0
        %1586 = vmatpush1.msra.mxu0 0.0
        %1587 = vmatprep.subr.mxu0 0.0
        %1588 = vmatpush1.msra.mxu0 0.0
        %1589 = vmatprep.subr.mxu0 0.0
        %1590 = vmatpush1.msra.mxu0 0.0
        %1591 = vmatprep.subr.mxu0 0.0
        %1592 = vmatpush1.msra.mxu0 0.0
        %1593 = vmatprep.subr.mxu0 0.0
        %1594 = vmatpush1.msra.mxu0 0.0
        %1595 = vmatprep.subr.mxu0 0.0
        %1596 = vmatpush1.msra.mxu0 0.0
        %1597 = vmatprep.subr.mxu0 0.0
        %1598 = vmatpush1.msra.mxu0 0.0
        %1599 = vmatprep.subr.mxu0 0.0
        %1600 = vmatpush1.msra.mxu0 0.0
        %1601 = vmatprep.subr.mxu0 0.0
        %1602 = vmatpush1.msra.mxu0 0.0
        %1603 = vmatprep.subr.mxu0 0.0
        %1604 = vmatpush1.msra.mxu0 0.0
        %1605 = vmatprep.subr.mxu0 0.0
        %1606 = vmatpush1.msra.mxu0 0.0
        %1607 = vmatprep.subr.mxu0 0.0
        %1608 = vmatpush1.msra.mxu0 0.0
        %1609 = vmatprep.subr.mxu0 0.0
        %1610 = vmatpush1.msra.mxu0 0.0
        %1611 = vmatprep.subr.mxu0 0.0
        %1612 = vmatpush1.msra.mxu0 0.0
        %1613 = vmatprep.subr.mxu0 0.0
        %1614 = vmatpush1.msra.mxu0 0.0
        %1615 = vmatprep.subr.mxu0 0.0
        %1616 = vmatpush1.msra.mxu0 0.0
        %1617 = vmatprep.subr.mxu0 0.0
        %1618 = vmatpush1.msra.mxu0 0.0
        %1619 = vmatprep.subr.mxu0 0.0
        %1620 = vmatpush1.msra.mxu0 0.0
        %1621 = vmatprep.subr.mxu0 0.0
        %1622 = vmatpush1.msra.mxu0 0.0
        %1623 = vmatprep.subr.mxu0 0.0
        %1624 = vmatpush1.msra.mxu0 0.0
        %1625 = vmatprep.subr.mxu0 0.0
        %1626 = vmatpush1.msra.mxu0 0.0
        %1627 = vmatprep.subr.mxu0 0.0
        %1628 = vmatpush1.msra.mxu0 0.0
        %1629 = vmatprep.mubr.f32.mxu0 0.0
        %1630 = vmatmul.mubr.f32.gmra.mrb[0].mxu0 %v1563
        %v1631 = vpop.f32.mrb[0].mxu0
        %v1632 = vadd.f32 0.0, %v1631
        %v1633 = vpop.f32.mrb[0].mxu0
        %1634 = vdwg.mxu0
        %1636 = vrot.lane.b32.xlu0 %v1632, 96
        %v1637 = vpop.permute.xlu0 %1636
        %vm1639 = vcmask 1048320
        %1640 = vst.msk [vmem:[#allocation3] sm:$0xff] %vm1639, %v1637
        %v1641 = vld [vmem:[#allocation3] sm:$0xff]
        %v1642 = vld [vmem:[#allocation12] sm:$0xff]
        %v1643 = vld [vmem:[#allocation12 + $0x8] sm:$0xff]
        %v1644 = vld [vmem:[#allocation12 + $0x10] sm:$0xff]
        %v1645 = vld [vmem:[#allocation12 + $0x18] sm:$0xff]
        %v1646 = vld [vmem:[#allocation12 + $0x20] sm:$0xff]
        %v1647 = vld [vmem:[#allocation12 + $0x28] sm:$0xff]
        %v1648 = vld [vmem:[#allocation12 + $0x30] sm:$0xff]
        %v1649 = vld [vmem:[#allocation12 + $0x38] sm:$0xff]
        %v1650 = vld [vmem:[#allocation12 + $0x40] sm:$0xff]
        %v1651 = vld [vmem:[#allocation12 + $0x48] sm:$0xff]
        %v1652 = vld [vmem:[#allocation12 + $0x50] sm:$0xff]
        %v1653 = vld [vmem:[#allocation12 + $0x58] sm:$0xff]
        %v1654 = vld [vmem:[#allocation12 + $0x60] sm:$0xff]
        %v1655 = vld [vmem:[#allocation12 + $0x68] sm:$0xff]
        %v1656 = vld [vmem:[#allocation12 + $0x70] sm:$0xff]
        %v1657 = vld [vmem:[#allocation12 + $0x78] sm:$0xff]
        %v1658 = vld [vmem:[%s7] sm:$0x1]
        %v1660 = vlaneseq
        %v1661 = vshrl.u32 %v1660, 7
        %v1662 = vsub.s32 0, %v1661
        %v1663 = vrot.slane %v1658, %v1662
        %1665 = vmatprep.subr.mxu0 0.0
        %1666 = vmatpush1.msra.mxu0 %v1642
        %1667 = vmatprep.subr.mxu0 0.0
        %1668 = vmatpush1.msra.mxu0 %v1643
        %1669 = vmatprep.subr.mxu0 0.0
        %1670 = vmatpush1.msra.mxu0 %v1644
        %1671 = vmatprep.subr.mxu0 0.0
        %1672 = vmatpush1.msra.mxu0 %v1645
        %1673 = vmatprep.subr.mxu0 0.0
        %1674 = vmatpush1.msra.mxu0 %v1646
        %1675 = vmatprep.subr.mxu0 0.0
        %1676 = vmatpush1.msra.mxu0 %v1647
        %1677 = vmatprep.subr.mxu0 0.0
        %1678 = vmatpush1.msra.mxu0 %v1648
        %1679 = vmatprep.subr.mxu0 0.0
        %1680 = vmatpush1.msra.mxu0 %v1649
        %1681 = vmatprep.subr.mxu0 0.0
        %1682 = vmatpush1.msra.mxu0 %v1650
        %1683 = vmatprep.subr.mxu0 0.0
        %1684 = vmatpush1.msra.mxu0 %v1651
        %1685 = vmatprep.subr.mxu0 0.0
        %1686 = vmatpush1.msra.mxu0 %v1652
        %1687 = vmatprep.subr.mxu0 0.0
        %1688 = vmatpush1.msra.mxu0 %v1653
        %1689 = vmatprep.subr.mxu0 0.0
        %1690 = vmatpush1.msra.mxu0 %v1654
        %1691 = vmatprep.subr.mxu0 0.0
        %1692 = vmatpush1.msra.mxu0 %v1655
        %1693 = vmatprep.subr.mxu0 0.0
        %1694 = vmatpush1.msra.mxu0 %v1656
        %1695 = vmatprep.subr.mxu0 0.0
        %1696 = vmatpush1.msra.mxu0 %v1657
        %1697 = vmatprep.subr.mxu0 0.0
        %1698 = vmatpush1.msra.mxu0 0.0
        %1699 = vmatprep.subr.mxu0 0.0
        %1700 = vmatpush1.msra.mxu0 0.0
        %1701 = vmatprep.subr.mxu0 0.0
        %1702 = vmatpush1.msra.mxu0 0.0
        %1703 = vmatprep.subr.mxu0 0.0
        %1704 = vmatpush1.msra.mxu0 0.0
        %1705 = vmatprep.subr.mxu0 0.0
        %1706 = vmatpush1.msra.mxu0 0.0
        %1707 = vmatprep.subr.mxu0 0.0
        %1708 = vmatpush1.msra.mxu0 0.0
        %1709 = vmatprep.subr.mxu0 0.0
        %1710 = vmatpush1.msra.mxu0 0.0
        %1711 = vmatprep.subr.mxu0 0.0
        %1712 = vmatpush1.msra.mxu0 0.0
        %1713 = vmatprep.subr.mxu0 0.0
        %1714 = vmatpush1.msra.mxu0 0.0
        %1715 = vmatprep.subr.mxu0 0.0
        %1716 = vmatpush1.msra.mxu0 0.0
        %1717 = vmatprep.subr.mxu0 0.0
        %1718 = vmatpush1.msra.mxu0 0.0
        %1719 = vmatprep.subr.mxu0 0.0
        %1720 = vmatpush1.msra.mxu0 0.0
        %1721 = vmatprep.subr.mxu0 0.0
        %1722 = vmatpush1.msra.mxu0 0.0
        %1723 = vmatprep.subr.mxu0 0.0
        %1724 = vmatpush1.msra.mxu0 0.0
        %1725 = vmatprep.subr.mxu0 0.0
        %1726 = vmatpush1.msra.mxu0 0.0
        %1727 = vmatprep.subr.mxu0 0.0
        %1728 = vmatpush1.msra.mxu0 0.0
        %1729 = vmatprep.mubr.f32.mxu0 0.0
        %1730 = vmatmul.mubr.f32.gmra.mrb[0].mxu0 %v1641
        %v1731 = vpop.f32.mrb[0].mxu0
        %v1732 = vadd.f32 %v1663, %v1731
        %v1733 = vpop.f32.mrb[0].mxu0
        %1734 = vdwg.mxu0
        %v1735 = vadd.f32 %v1732, %v819
        %v1736 = vld [vmem:[%s8] sm:$0x1]
        %v1737 = vld [vmem:[%s9] sm:$0x1]
        %1738 = vadd.xlane.f32.xlu0 %v1735
        %v1739 = vpop.xlane.xlu0 %1738
        %v1740 = vrcp.pop 128.0
        %v1741 = vmul.f32 %v1739, %v1740
        %v1742 = vsub.f32 %v1735, %v1741
        %v1743 = vmul.f32 %v1742, %v1742
        %1744 = vadd.xlane.f32.xlu0 %v1743
        %v1745 = vpop.xlane.xlu0 %1744
        %v1746 = vmul.f32 %v1745, %v1740
        %v1747 = vadd.f32 %v1746, 1e-05
        %v1748 = vrsqrt.pop %v1747
        %v1749 = vmul.f32 %v1742, %v1748
        %v1751 = vlaneseq
        %v1752 = vshrl.u32 %v1751, 7
        %v1753 = vsub.s32 0, %v1752
        %v1754 = vrot.slane %v1736, %v1753
        %v1756 = vmul.f32 %v1754, %v1749
        %v1758 = vlaneseq
        %v1759 = vshrl.u32 %v1758, 7
        %v1760 = vsub.s32 0, %v1759
        %v1761 = vrot.slane %v1737, %v1760
        %v1763 = vadd.f32 %v1756, %v1761
        %v1764 = vld [vmem:[#allocation13] sm:$0xff]
        %v1765 = vld [vmem:[#allocation13 + $0x8] sm:$0xff]
        %v1766 = vld [vmem:[#allocation13 + $0x10] sm:$0xff]
        %v1767 = vld [vmem:[#allocation13 + $0x18] sm:$0xff]
        %v1768 = vld [vmem:[#allocation13 + $0x20] sm:$0xff]
        %v1769 = vld [vmem:[#allocation13 + $0x28] sm:$0xff]
        %v1770 = vld [vmem:[#allocation13 + $0x30] sm:$0xff]
        %v1771 = vld [vmem:[#allocation13 + $0x38] sm:$0xff]
        %v1772 = vld [vmem:[#allocation13 + $0x40] sm:$0xff]
        %v1773 = vld [vmem:[#allocation13 + $0x48] sm:$0xff]
        %v1774 = vld [vmem:[#allocation13 + $0x50] sm:$0xff]
        %v1775 = vld [vmem:[#allocation13 + $0x58] sm:$0xff]
        %v1776 = vld [vmem:[#allocation13 + $0x60] sm:$0xff]
        %v1777 = vld [vmem:[#allocation13 + $0x68] sm:$0xff]
        %v1778 = vld [vmem:[#allocation13 + $0x70] sm:$0xff]
        %v1779 = vld [vmem:[#allocation13 + $0x78] sm:$0xff]
        %v1780 = vld [vmem:[#allocation13 + $0x80] sm:$0xff]
        %v1781 = vld [vmem:[#allocation13 + $0x88] sm:$0xff]
        %v1782 = vld [vmem:[#allocation13 + $0x90] sm:$0xff]
        %v1783 = vld [vmem:[#allocation13 + $0x98] sm:$0xff]
        %v1784 = vld [vmem:[#allocation13 + $0xa0] sm:$0xff]
        %v1785 = vld [vmem:[#allocation13 + $0xa8] sm:$0xff]
        %v1786 = vld [vmem:[#allocation13 + $0xb0] sm:$0xff]
        %v1787 = vld [vmem:[#allocation13 + $0xb8] sm:$0xff]
        %v1788 = vld [vmem:[#allocation13 + $0xc0] sm:$0xff]
        %v1789 = vld [vmem:[#allocation13 + $0xc8] sm:$0xff]
        %v1790 = vld [vmem:[#allocation13 + $0xd0] sm:$0xff]
        %v1791 = vld [vmem:[#allocation13 + $0xd8] sm:$0xff]
        %v1792 = vld [vmem:[#allocation13 + $0xe0] sm:$0xff]
        %v1793 = vld [vmem:[#allocation13 + $0xe8] sm:$0xff]
        %v1794 = vld [vmem:[#allocation13 + $0xf0] sm:$0xff]
        %v1795 = vld [vmem:[#allocation13 + $0xf8] sm:$0xff]
        %v1796 = vld [vmem:[%s11] sm:$0x3]
        %v1798 = vlaneseq
        %v1799 = vshrl.u32 %v1798, 7
        %v1800 = vsub.s32 0, %v1799
        %v1801 = vrot.slane %v1796, %v1800
        %v1802 = vlaneseq
        %v1803 = vshrl.u32 %v1802, 7
        %v1804 = vsub.s32 1, %v1803
        %v1805 = vrot.slane %v1796, %v1804
        %1808 = vmatprep.subr.mxu0 %v1765
        %1809 = vmatpush1.msra.mxu0 %v1764
        %1810 = vmatprep.subr.mxu0 %v1767
        %1811 = vmatpush1.msra.mxu0 %v1766
        %1812 = vmatprep.subr.mxu0 %v1769
        %1813 = vmatpush1.msra.mxu0 %v1768
        %1814 = vmatprep.subr.mxu0 %v1771
        %1815 = vmatpush1.msra.mxu0 %v1770
        %1816 = vmatprep.subr.mxu0 %v1773
        %1817 = vmatpush1.msra.mxu0 %v1772
        %1818 = vmatprep.subr.mxu0 %v1775
        %1819 = vmatpush1.msra.mxu0 %v1774
        %1820 = vmatprep.subr.mxu0 %v1777
        %1821 = vmatpush1.msra.mxu0 %v1776
        %1822 = vmatprep.subr.mxu0 %v1779
        %1823 = vmatpush1.msra.mxu0 %v1778
        %1824 = vmatprep.subr.mxu0 %v1781
        %1825 = vmatpush1.msra.mxu0 %v1780
        %1826 = vmatprep.subr.mxu0 %v1783
        %1827 = vmatpush1.msra.mxu0 %v1782
        %1828 = vmatprep.subr.mxu0 %v1785
        %1829 = vmatpush1.msra.mxu0 %v1784
        %1830 = vmatprep.subr.mxu0 %v1787
        %1831 = vmatpush1.msra.mxu0 %v1786
        %1832 = vmatprep.subr.mxu0 %v1789
        %1833 = vmatpush1.msra.mxu0 %v1788
        %1834 = vmatprep.subr.mxu0 %v1791
        %1835 = vmatpush1.msra.mxu0 %v1790
        %1836 = vmatprep.subr.mxu0 %v1793
        %1837 = vmatpush1.msra.mxu0 %v1792
        %1838 = vmatprep.subr.mxu0 %v1795
        %1839 = vmatpush1.msra.mxu0 %v1794
        %1840 = vmatprep.subr.mxu0 0.0
        %1841 = vmatpush1.msra.mxu0 0.0
        %1842 = vmatprep.subr.mxu0 0.0
        %1843 = vmatpush1.msra.mxu0 0.0
        %1844 = vmatprep.subr.mxu0 0.0
        %1845 = vmatpush1.msra.mxu0 0.0
        %1846 = vmatprep.subr.mxu0 0.0
        %1847 = vmatpush1.msra.mxu0 0.0
        %1848 = vmatprep.subr.mxu0 0.0
        %1849 = vmatpush1.msra.mxu0 0.0
        %1850 = vmatprep.subr.mxu0 0.0
        %1851 = vmatpush1.msra.mxu0 0.0
        %1852 = vmatprep.subr.mxu0 0.0
        %1853 = vmatpush1.msra.mxu0 0.0
        %1854 = vmatprep.subr.mxu0 0.0
        %1855 = vmatpush1.msra.mxu0 0.0
        %1856 = vmatprep.subr.mxu0 0.0
        %1857 = vmatpush1.msra.mxu0 0.0
        %1858 = vmatprep.subr.mxu0 0.0
        %1859 = vmatpush1.msra.mxu0 0.0
        %1860 = vmatprep.subr.mxu0 0.0
        %1861 = vmatpush1.msra.mxu0 0.0
        %1862 = vmatprep.subr.mxu0 0.0
        %1863 = vmatpush1.msra.mxu0 0.0
        %1864 = vmatprep.subr.mxu0 0.0
        %1865 = vmatpush1.msra.mxu0 0.0
        %1866 = vmatprep.subr.mxu0 0.0
        %1867 = vmatpush1.msra.mxu0 0.0
        %1868 = vmatprep.subr.mxu0 0.0
        %1869 = vmatpush1.msra.mxu0 0.0
        %1870 = vmatprep.subr.mxu0 0.0
        %1871 = vmatpush1.msra.mxu0 0.0
        %1872 = vmatprep.mubr.f32.mxu0 0.0
        %1873 = vmatmul.mubr.f32.gmra.mrb[0].mxu0 %v1763
        %v1874 = vpop.f32.mrb[0].mxu0
        %v1875 = vadd.f32 %v1801, %v1874
        %v1876 = vpop.f32.mrb[0].mxu0
        %v1877 = vadd.f32 %v1805, %v1876
        %1878 = vdwg.mxu0
        %v1879 = vmax.f32 %v1875, 0.0
        %v1880 = vmax.f32 %v1877, 0.0
        %v1881 = vld [vmem:[#allocation15] sm:$0xff]
        %v1882 = vld [vmem:[#allocation15 + $0x8] sm:$0xff]
        %v1883 = vld [vmem:[#allocation15 + $0x10] sm:$0xff]
        %v1884 = vld [vmem:[#allocation15 + $0x18] sm:$0xff]
        %v1885 = vld [vmem:[#allocation15 + $0x20] sm:$0xff]
        %v1886 = vld [vmem:[#allocation15 + $0x28] sm:$0xff]
        %v1887 = vld [vmem:[#allocation15 + $0x30] sm:$0xff]
        %v1888 = vld [vmem:[#allocation15 + $0x38] sm:$0xff]
        %v1889 = vld [vmem:[#allocation15 + $0x40] sm:$0xff]
        %v1890 = vld [vmem:[#allocation15 + $0x48] sm:$0xff]
        %v1891 = vld [vmem:[#allocation15 + $0x50] sm:$0xff]
        %v1892 = vld [vmem:[#allocation15 + $0x58] sm:$0xff]
        %v1893 = vld [vmem:[#allocation15 + $0x60] sm:$0xff]
        %v1894 = vld [vmem:[#allocation15 + $0x68] sm:$0xff]
        %v1895 = vld [vmem:[#allocation15 + $0x70] sm:$0xff]
        %v1896 = vld [vmem:[#allocation15 + $0x78] sm:$0xff]
        %v1897 = vld [vmem:[#allocation15 + $0x80] sm:$0xff]
        %v1898 = vld [vmem:[#allocation15 + $0x88] sm:$0xff]
        %v1899 = vld [vmem:[#allocation15 + $0x90] sm:$0xff]
        %v1900 = vld [vmem:[#allocation15 + $0x98] sm:$0xff]
        %v1901 = vld [vmem:[#allocation15 + $0xa0] sm:$0xff]
        %v1902 = vld [vmem:[#allocation15 + $0xa8] sm:$0xff]
        %v1903 = vld [vmem:[#allocation15 + $0xb0] sm:$0xff]
        %v1904 = vld [vmem:[#allocation15 + $0xb8] sm:$0xff]
        %v1905 = vld [vmem:[#allocation15 + $0xc0] sm:$0xff]
        %v1906 = vld [vmem:[#allocation15 + $0xc8] sm:$0xff]
        %v1907 = vld [vmem:[#allocation15 + $0xd0] sm:$0xff]
        %v1908 = vld [vmem:[#allocation15 + $0xd8] sm:$0xff]
        %v1909 = vld [vmem:[#allocation15 + $0xe0] sm:$0xff]
        %v1910 = vld [vmem:[#allocation15 + $0xe8] sm:$0xff]
        %v1911 = vld [vmem:[#allocation15 + $0xf0] sm:$0xff]
        %v1912 = vld [vmem:[#allocation15 + $0xf8] sm:$0xff]
        %v1913 = vld [vmem:[%s13] sm:$0x1]
        %v1915 = vlaneseq
        %v1916 = vshrl.u32 %v1915, 7
        %v1917 = vsub.s32 0, %v1916
        %v1918 = vrot.slane %v1913, %v1917
        %1920 = vmatprep.subr.mxu0 0.0
        %1921 = vmatpush1.msra.mxu0 %v1881
        %1922 = vmatprep.subr.mxu0 0.0
        %1923 = vmatpush1.msra.mxu0 %v1882
        %1924 = vmatprep.subr.mxu0 0.0
        %1925 = vmatpush1.msra.mxu0 %v1883
        %1926 = vmatprep.subr.mxu0 0.0
        %1927 = vmatpush1.msra.mxu0 %v1884
        %1928 = vmatprep.subr.mxu0 0.0
        %1929 = vmatpush1.msra.mxu0 %v1885
        %1930 = vmatprep.subr.mxu0 0.0
        %1931 = vmatpush1.msra.mxu0 %v1886
        %1932 = vmatprep.subr.mxu0 0.0
        %1933 = vmatpush1.msra.mxu0 %v1887
        %1934 = vmatprep.subr.mxu0 0.0
        %1935 = vmatpush1.msra.mxu0 %v1888
        %1936 = vmatprep.subr.mxu0 0.0
        %1937 = vmatpush1.msra.mxu0 %v1889
        %1938 = vmatprep.subr.mxu0 0.0
        %1939 = vmatpush1.msra.mxu0 %v1890
        %1940 = vmatprep.subr.mxu0 0.0
        %1941 = vmatpush1.msra.mxu0 %v1891
        %1942 = vmatprep.subr.mxu0 0.0
        %1943 = vmatpush1.msra.mxu0 %v1892
        %1944 = vmatprep.subr.mxu0 0.0
        %1945 = vmatpush1.msra.mxu0 %v1893
        %1946 = vmatprep.subr.mxu0 0.0
        %1947 = vmatpush1.msra.mxu0 %v1894
        %1948 = vmatprep.subr.mxu0 0.0
        %1949 = vmatpush1.msra.mxu0 %v1895
        %1950 = vmatprep.subr.mxu0 0.0
        %1951 = vmatpush1.msra.mxu0 %v1896
        %1952 = vmatprep.subr.mxu0 0.0
        %1953 = vmatpush1.msra.mxu0 %v1897
        %1954 = vmatprep.subr.mxu0 0.0
        %1955 = vmatpush1.msra.mxu0 %v1898
        %1956 = vmatprep.subr.mxu0 0.0
        %1957 = vmatpush1.msra.mxu0 %v1899
        %1958 = vmatprep.subr.mxu0 0.0
        %1959 = vmatpush1.msra.mxu0 %v1900
        %1960 = vmatprep.subr.mxu0 0.0
        %1961 = vmatpush1.msra.mxu0 %v1901
        %1962 = vmatprep.subr.mxu0 0.0
        %1963 = vmatpush1.msra.mxu0 %v1902
        %1964 = vmatprep.subr.mxu0 0.0
        %1965 = vmatpush1.msra.mxu0 %v1903
        %1966 = vmatprep.subr.mxu0 0.0
        %1967 = vmatpush1.msra.mxu0 %v1904
        %1968 = vmatprep.subr.mxu0 0.0
        %1969 = vmatpush1.msra.mxu0 %v1905
        %1970 = vmatprep.subr.mxu0 0.0
        %1971 = vmatpush1.msra.mxu0 %v1906
        %1972 = vmatprep.subr.mxu0 0.0
        %1973 = vmatpush1.msra.mxu0 %v1907
        %1974 = vmatprep.subr.mxu0 0.0
        %1975 = vmatpush1.msra.mxu0 %v1908
        %1976 = vmatprep.subr.mxu0 0.0
        %1977 = vmatpush1.msra.mxu0 %v1909
        %1978 = vmatprep.subr.mxu0 0.0
        %1979 = vmatpush1.msra.mxu0 %v1910
        %1980 = vmatprep.subr.mxu0 0.0
        %1981 = vmatpush1.msra.mxu0 %v1911
        %1982 = vmatprep.subr.mxu0 0.0
        %1983 = vmatpush1.msra.mxu0 %v1912
        %1984 = vmatprep.mubr.f32.mxu0 %v1880
        %1985 = vmatmul.mubr.f32.gmra.mrb[0].mxu0 %v1879
        %v1986 = vpop.f32.mrb[0].mxu0
        %v1987 = vadd.f32 %v1918, %v1986
        %v1988 = vpop.f32.mrb[0].mxu0
        %1989 = vdwg.mxu0
        %v1990 = vadd.f32 %v1987, %v1763
        %v1991 = vld [vmem:[%s14] sm:$0x1]
        %v1992 = vld [vmem:[%s15] sm:$0x1]
        %1993 = vadd.xlane.f32.xlu0 %v1990
        %v1994 = vpop.xlane.xlu0 %1993
        %v1995 = vmul.f32 %v1994, %v1740
        %v1996 = vsub.f32 %v1990, %v1995
        %v1997 = vmul.f32 %v1996, %v1996
        %1998 = vadd.xlane.f32.xlu0 %v1997
        %v1999 = vpop.xlane.xlu0 %1998
        %v2000 = vmul.f32 %v1999, %v1740
        %v2001 = vadd.f32 %v2000, 1e-05
        %v2002 = vrsqrt.pop %v2001
        %v2003 = vmul.f32 %v1996, %v2002
        %v2005 = vlaneseq
        %v2006 = vshrl.u32 %v2005, 7
        %v2007 = vsub.s32 0, %v2006
        %v2008 = vrot.slane %v1991, %v2007
        %v2010 = vmul.f32 %v2008, %v2003
        %v2012 = vlaneseq
        %v2013 = vshrl.u32 %v2012, 7
        %v2014 = vsub.s32 0, %v2013
        %v2015 = vrot.slane %v1992, %v2014
        %v2017 = vadd.f32 %v2010, %v2015
        %2018 = vst [vmem:[%s683] sm:$0xff] %v2017
        %s2019 = sand.u32 %s423, 1
        %s2020 = scalar_lea.sflag [#allocation6], %s2019
        %s2021 = sand.u32 %s423, 1
        %s2022 = smul.addr %s2021, 8
        %s2023 = scalar_lea.vmem [#allocation16], %s2022
        // Predicated region
        $region117: #{tpu_custom_call.1} parent=83 // pred_check
          %p2024 = pneg %p433
        $region118: #{tpu_custom_call.1} parent=83 // pred_check_branch
          %2026 = sbr.rel (%p2024) target = $region120
        $region119: #{tpu_custom_call.1} parent=83 // pred_region
          %s2027 = smul.u32 %s44, 2
          %s2028 = sadd.s32 %s2027, %s45
          %s2030 = ssub.s32 128, 128
          %2031 = vsyncadd %s2020, %s2030
          %s2032 = smul.addr %s43, 2
          %s2033 = sadd.s32 %s2028, %s2032
          %s2034 = smul.addr %s2033, 128
          %s2035 = scalar_lea.hbm %s16, %s2034
          %s2037 = sshll.u32 %s2023, 4
          %s2038 = int_to_ptr.vmem [resolvable:$true] %s2037
          %2040 = dma.vmem_to_hbm [thread:$0]  %s2038, 128, %s2035, %s2020
        $region120: #{tpu_custom_call.1} parent=83 // pred_fallthru
          _
      $region84: #{tpu_custom_call.1} parent=5 // pred_fallthru
        _
      %p2041 = scmp.le.s32.totalorder 2, %s33
      // Predicated region
      $region121: #{tpu_custom_call.1} parent=5 // pred_check
        %p2042 = pneg %p2041
      $region122: #{tpu_custom_call.1} parent=5 // pred_check_branch
        %2044 = sbr.rel (%p2042) target = $region124
      $region123: #{tpu_custom_call.1} parent=5 // pred_region
        %s2045 = ssub.s32 %s33, 2
        // Predicated region
        $region125: #{tpu_custom_call.1} parent=123 // pred_check
          %p2046 = pneg %p439
        $region126: #{tpu_custom_call.1} parent=123 // pred_check_branch
          %2048 = sbr.rel (%p2046) target = $region128
        $region127: #{tpu_custom_call.1} parent=123 // pred_region
          %s2049 = sand.u32 %s424, 1
          %s2050 = scalar_lea.sflag [#allocation6], %s2049
          %s2051 = sand.u32 %s424, 1
          %s2052 = smul.addr %s2051, 8
          %s2053 = scalar_lea.vmem [#allocation16], %s2052
          %2054 = dma.done %s2050, 128
        $region128: #{tpu_custom_call.1} parent=123 // pred_fallthru
          _
      $region124: #{tpu_custom_call.1} parent=5 // pred_fallthru
        _
    $region6: #{tpu_custom_call.1} parent=1 // loop_footer
      %s37 = sadd.s32 1, %s33
    $region7: #{tpu_custom_call.1} parent=1 // loop_footer_branch
      %32 = sbr.rel target = $region3
    $region8: #{tpu_custom_call.1} parent=1 // loop_exit
      _
    %2055 = vsyncpa [#allocation5], 1
    %s2056 = scalar_lea.sflag [#allocation5], 1
    %2057 = vsyncpa %s2056, 1
    %2058 = vsyncpa [#allocation8], 1
    %s2059 = scalar_lea.sflag [#allocation8], 1
    %2060 = vsyncpa %s2059, 1
    %2061 = vsyncpa [#allocation11], 1
    %2062 = vsyncpa [#allocation14], 1
    %2063 = vsyncpa [#allocation6], 1
    %s2064 = scalar_lea.sflag [#allocation6], 1
    %2065 = vsyncpa %s2064, 1

</llo_original>
